<compile_context>
chip_gen: v7x
topology: tpu7x:2x2x1
jax: 0.10.0
libtpu: 0.0.40
codegen_flags: <defaults>
</compile_context>

<pallas_src>
import jax
import jax.numpy as jnp
from jax.experimental import pallas as pl
from jax.experimental.pallas import tpu as pltpu

# ---- static architecture constants (SimpleCNN_header) ----
H = W = 32
KH = KW = 5
C0, C1, C2 = 3, 6, 16          # input / conv1 / conv2 channels
LANE = 128
SSEL = 32                      # 5*5=25 flattened spatial positions, padded

# flat-lane slab lengths (everything lives on a 32-wide flat spatial grid)
XPAD = 1536      # conv1 reads x[q + 32*i + j],  q < L_A1, offset <= 132
L_A1 = 1280      # conv1 output slab
L_P1 = 1152      # pool1 output slab (reads a1[q + {0,1,32,33}])
L_A2 = 768       # conv2 output slab (reads p1[q + 64*i + 2*j], offset <= 264)
L_P2 = 640       # pool2 output slab (reads a2[q + {0,2,64,66}])

CDT = jnp.bfloat16             # MXU input dtype


# ------------------------------ fused kernel ------------------------------

def fused_forward_kernel(x_ref, sel_ref, wc1_ref, bc1_ref, wc2_ref, bc2_ref,
                         w1_ref, b1_ref, w2_ref, b2_ref, wcls_ref, bcls_ref,
                         h_ref, y_ref, a1, p1, a2, p2):
    # ---- conv1 + bias + ReLU: 25 shifted slabs -> one MXU matmul ----
    taps = [x_ref[0, :, 32 * i + j: 32 * i + j + L_A1]
            for i in range(KH) for j in range(KW)]
    stack = jnp.concatenate(taps, axis=0).astype(CDT)             # (75, L_A1)
    acc = jnp.dot(wc1_ref[...], stack, preferred_element_type=jnp.float32)
    a1[...] = jnp.maximum(acc + bc1_ref[...], 0.0)

    # ---- maxpool1 2x2 stride 2: window offsets {0, 1, 32, 33} ----
    p1[...] = jnp.maximum(
        jnp.maximum(a1[:, 0:L_P1], a1[:, 1:L_P1 + 1]),
        jnp.maximum(a1[:, 32:L_P1 + 32], a1[:, 33:L_P1 + 33]))

    # ---- conv2 + bias + ReLU on the sparse grid: offsets 64*i + 2*j ----
    taps = [p1[:, 64 * i + 2 * j: 64 * i + 2 * j + L_A2]
            for i in range(KH) for j in range(KW)]
    stack = jnp.concatenate(taps, axis=0).astype(CDT)             # (150, L_A2)
    acc = jnp.dot(wc2_ref[...], stack, preferred_element_type=jnp.float32)
    a2[...] = jnp.maximum(acc + bc2_ref[...], 0.0)

    # ---- maxpool2 2x2: sparse window offsets {0, 2, 64, 66} ----
    p2[...] = jnp.maximum(
        jnp.maximum(a2[:, 0:L_P2], a2[:, 2:L_P2 + 2]),
        jnp.maximum(a2[:, 64:L_P2 + 64], a2[:, 66:L_P2 + 66]))

    # ---- gather the 25 valid lanes (at 128*y + 4*x) -> compact (16, 32) ----
    compact = jnp.dot(p2[...].astype(CDT), sel_ref[...],
                      preferred_element_type=jnp.float32).astype(CDT)

    # ---- fc1 + ReLU: channel-major flatten folded into per-channel matmuls ----
    acc = jnp.zeros((1, LANE), jnp.float32)
    for c in range(C2):
        acc = acc + jnp.dot(compact[c:c + 1, :], w1_ref[c],
                            preferred_element_type=jnp.float32)
    h1 = jnp.maximum(acc + b1_ref[...], 0.0)                      # (1, 128)

    # ---- fc2 + ReLU (backbone output h) ----
    h2 = jnp.maximum(
        jnp.dot(h1.astype(CDT), w2_ref[...],
                preferred_element_type=jnp.float32) + b2_ref[...], 0.0)
    h_ref[0] = h2

    # ---- classifier ----
    y_ref[0] = jnp.dot(h2.astype(CDT), wcls_ref[...],
                       preferred_element_type=jnp.float32) + bcls_ref[...]


# ------------------------------ wrapper ------------------------------

def model_cifar_forward(params, x_nchw):
    """Returns (h, x, y) exactly like model_cifar.forward (simple-cnn path)."""
    B = x_nchw.shape[0]
    hid1 = params["fc1_b"].shape[0]        # 120
    hid2 = params["fc2_b"].shape[0]        # 84
    ncls = params["cls_b"].shape[0]        # 10

    # flatten spatial onto the lane axis (row-major y*32+x) and pad lanes
    xf = x_nchw.reshape(B, C0, H * W).astype(jnp.float32)
    xf = jnp.pad(xf, ((0, 0), (0, 0), (0, XPAD - H * W)))

    # ---- weight re-layouts (tiny, wrapper-side glue) ----
    wc1 = jnp.transpose(params["conv1_w"], (2, 3, 1, 0)).reshape(
        KH * KW * C0, C1).T.astype(CDT)                           # (6, 75)
    wc2 = jnp.transpose(params["conv2_w"], (2, 3, 1, 0)).reshape(
        KH * KW * C1, C2).T.astype(CDT)                           # (16, 150)
    bc1 = params["conv1_b"].reshape(C1, 1).astype(jnp.float32)
    bc2 = params["conv2_b"].reshape(C2, 1).astype(jnp.float32)
    w1 = jnp.pad(params["fc1_w"].reshape(C2, 25, hid1),
                 ((0, 0), (0, SSEL - 25), (0, LANE - hid1))).astype(CDT)
    b1 = jnp.pad(params["fc1_b"], (0, LANE - hid1)).reshape(1, LANE).astype(jnp.float32)
    w2 = jnp.pad(params["fc2_w"], ((0, LANE - hid1), (0, LANE - hid2))).astype(CDT)
    b2 = jnp.pad(params["fc2_b"], (0, LANE - hid2)).reshape(1, LANE).astype(jnp.float32)
    wc = jnp.pad(params["cls_w"], ((0, LANE - hid2), (0, LANE - ncls))).astype(CDT)
    bc = jnp.pad(params["cls_b"], (0, LANE - ncls)).reshape(1, LANE).astype(jnp.float32)

    # selection matrix: sparse pool2 lane 128*y + 4*x  ->  column y*5 + x
    p_idx = jnp.arange(L_P2)[:, None]
    q_idx = jnp.arange(SSEL)[None, :]
    sel = ((p_idx == 128 * (q_idx // 5) + 4 * (q_idx % 5))
           & (q_idx < 25)).astype(CDT)                            # (640, 32)

    def full(shape):
        return pl.BlockSpec(shape, lambda b, _s=shape: (0,) * len(_s))

    h_pad, y_pad = pl.pallas_call(
        fused_forward_kernel,
        out_shape=(jax.ShapeDtypeStruct((B, 1, LANE), jnp.float32),
                   jax.ShapeDtypeStruct((B, 1, LANE), jnp.float32)),
        grid=(B,),
        in_specs=[
            pl.BlockSpec((1, C0, XPAD), lambda b: (b, 0, 0)),     # image
            full((L_P2, SSEL)),                                   # sel
            full((C1, KH * KW * C0)), full((C1, 1)),              # conv1 w,b
            full((C2, KH * KW * C1)), full((C2, 1)),              # conv2 w,b
            full((C2, SSEL, LANE)),   full((1, LANE)),            # fc1 w,b
            full((LANE, LANE)),       full((1, LANE)),            # fc2 w,b
            full((LANE, LANE)),       full((1, LANE)),            # cls w,b
        ],
        out_specs=(pl.BlockSpec((1, 1, LANE), lambda b: (b, 0, 0)),
                   pl.BlockSpec((1, 1, LANE), lambda b: (b, 0, 0))),
        scratch_shapes=[
            pltpu.VMEM((C1, L_A1), jnp.float32),
            pltpu.VMEM((C1, L_P1), jnp.float32),
            pltpu.VMEM((C2, L_A2), jnp.float32),
            pltpu.VMEM((C2, L_P2), jnp.float32),
        ],
        compiler_params=pltpu.CompilerParams(
            dimension_semantics=("parallel",)),
    )(xf, sel, wc1, bc1, wc2, bc2, w1, b1, w2, b2, wc, bc)

    h = h_pad[:, 0, :hid2]
    y = y_pad[:, 0, :ncls]
    if B == 1:                      # torch .squeeze() also drops a batch of 1
        h = h[0]
        y = y[0]
    return h, h, y                  # model_cifar returns (h, x, y) with x = h


# ------------------------------ params & main ------------------------------

def init_params(key, n_classes=10):
    ks = jax.random.split(key, 10)

    def w(k, shape, scale):
        return jax.random.normal(k, shape, jnp.float32) * scale

    return {
        # PyTorch conv weight layout (out_c, in_c, kh, kw)
        "conv1_w": w(ks[0], (C1, C0, KH, KW), 0.1),
        "conv1_b": w(ks[1], (C1,), 0.1),
        "conv2_w": w(ks[2], (C2, C1, KH, KW), 0.1),
        "conv2_b": w(ks[3], (C2,), 0.1),
        # linear weights stored as (in, out)  (== PyTorch weight.T)
        "fc1_w": w(ks[4], (C2 * 5 * 5, 120), 0.05),
        "fc1_b": w(ks[5], (120,), 0.05),
        "fc2_w": w(ks[6], (120, 84), 0.05),
        "fc2_b": w(ks[7], (84,), 0.05),
        "cls_w": w(ks[8], (84, n_classes), 0.05),
        "cls_b": w(ks[9], (n_classes,), 0.05),
    }


if __name__ == "__main__":
    key = jax.random.PRNGKey(0)
    pkey, xkey = jax.random.split(key)
    params = init_params(pkey, n_classes=10)
    # CIFAR-sized input: spatial must be 32 for the 16*5*5 flatten to hold.
    x = jax.random.normal(xkey, (2, 3, 32, 32), jnp.float32)   # NCHW
    fwd = jax.jit(model_cifar_forward)
    h, x_out, y = fwd(params, x)
    jax.block_until_ready((h, x_out, y))
    assert h.shape == (2, 84) and x_out.shape == (2, 84) and y.shape == (2, 10)
    print("KERNEL_OK")
</pallas_src>

<mosaic_0001>
module attributes {stable_mosaic.version = 11 : i64} {
  func.func @fused_forward_kernel(%arg0: i32, %arg1: memref<1x3x1536xf32, #tpu.memory_space<vmem>>, %arg2: memref<640x32xbf16, #tpu.memory_space<vmem>>, %arg3: memref<6x75xbf16, #tpu.memory_space<vmem>>, %arg4: memref<6x1xf32, #tpu.memory_space<vmem>>, %arg5: memref<16x150xbf16, #tpu.memory_space<vmem>>, %arg6: memref<16x1xf32, #tpu.memory_space<vmem>>, %arg7: memref<16x32x128xbf16, #tpu.memory_space<vmem>>, %arg8: memref<1x128xf32, #tpu.memory_space<vmem>>, %arg9: memref<128x128xbf16, #tpu.memory_space<vmem>>, %arg10: memref<1x128xf32, #tpu.memory_space<vmem>>, %arg11: memref<128x128xbf16, #tpu.memory_space<vmem>>, %arg12: memref<1x128xf32, #tpu.memory_space<vmem>>, %arg13: memref<1x1x128xf32, #tpu.memory_space<vmem>>, %arg14: memref<1x1x128xf32, #tpu.memory_space<vmem>>, %arg15: memref<6x1280xf32, #tpu.memory_space<vmem>>, %arg16: memref<6x1152xf32, #tpu.memory_space<vmem>>, %arg17: memref<16x768xf32, #tpu.memory_space<vmem>>, %arg18: memref<16x640xf32, #tpu.memory_space<vmem>>) attributes {dimension_semantics = [#tpu.dimension_semantics<parallel>], iteration_bounds = array<i64: 2>, scalar_prefetch = 0 : i64, scratch_operands = 4 : i64, tpu.core_type = #tpu.core_type<tc>, window_params = [{transform_indices = @transform_0, window_bounds = array<i64: 1, 3, 1536>}, {pipeline_mode = #tpu.pipeline_mode<synchronous>, transform_indices = @transform_1, window_bounds = array<i64: 640, 32>}, {pipeline_mode = #tpu.pipeline_mode<synchronous>, transform_indices = @transform_2, window_bounds = array<i64: 6, 75>}, {pipeline_mode = #tpu.pipeline_mode<synchronous>, transform_indices = @transform_3, window_bounds = array<i64: 6, 1>}, {pipeline_mode = #tpu.pipeline_mode<synchronous>, transform_indices = @transform_4, window_bounds = array<i64: 16, 150>}, {pipeline_mode = #tpu.pipeline_mode<synchronous>, transform_indices = @transform_5, window_bounds = array<i64: 16, 1>}, {pipeline_mode = #tpu.pipeline_mode<synchronous>, transform_indices = @transform_6, window_bounds = array<i64: 16, 32, 128>}, {pipeline_mode = #tpu.pipeline_mode<synchronous>, transform_indices = @transform_7, window_bounds = array<i64: 1, 128>}, {pipeline_mode = #tpu.pipeline_mode<synchronous>, transform_indices = @transform_8, window_bounds = array<i64: 128, 128>}, {pipeline_mode = #tpu.pipeline_mode<synchronous>, transform_indices = @transform_9, window_bounds = array<i64: 1, 128>}, {pipeline_mode = #tpu.pipeline_mode<synchronous>, transform_indices = @transform_10, window_bounds = array<i64: 128, 128>}, {pipeline_mode = #tpu.pipeline_mode<synchronous>, transform_indices = @transform_11, window_bounds = array<i64: 1, 128>}, {transform_indices = @transform_12, window_bounds = array<i64: 1, 1, 128>}, {transform_indices = @transform_13, window_bounds = array<i64: 1, 1, 128>}]} {
    %c0 = arith.constant 0 : index
    %c0_0 = arith.constant 0 : index
    %c0_1 = arith.constant 0 : index
    %0 = vector.load %arg1[%c0, %c0_0, %c0_1] : memref<1x3x1536xf32, #tpu.memory_space<vmem>>, vector<1x3x1280xf32>
    %1 = vector.shape_cast %0 : vector<1x3x1280xf32> to vector<3x1280xf32>
    %c0_2 = arith.constant 0 : index
    %c0_3 = arith.constant 0 : index
    %c1 = arith.constant 1 : index
    %2 = vector.load %arg1[%c0_2, %c0_3, %c1] : memref<1x3x1536xf32, #tpu.memory_space<vmem>>, vector<1x3x1280xf32>
    %3 = vector.shape_cast %2 : vector<1x3x1280xf32> to vector<3x1280xf32>
    %c0_4 = arith.constant 0 : index
    %c0_5 = arith.constant 0 : index
    %c2 = arith.constant 2 : index
    %4 = vector.load %arg1[%c0_4, %c0_5, %c2] : memref<1x3x1536xf32, #tpu.memory_space<vmem>>, vector<1x3x1280xf32>
    %5 = vector.shape_cast %4 : vector<1x3x1280xf32> to vector<3x1280xf32>
    %c0_6 = arith.constant 0 : index
    %c0_7 = arith.constant 0 : index
    %c3 = arith.constant 3 : index
    %6 = vector.load %arg1[%c0_6, %c0_7, %c3] : memref<1x3x1536xf32, #tpu.memory_space<vmem>>, vector<1x3x1280xf32>
    %7 = vector.shape_cast %6 : vector<1x3x1280xf32> to vector<3x1280xf32>
    %c0_8 = arith.constant 0 : index
    %c0_9 = arith.constant 0 : index
    %c4 = arith.constant 4 : index
    %8 = vector.load %arg1[%c0_8, %c0_9, %c4] : memref<1x3x1536xf32, #tpu.memory_space<vmem>>, vector<1x3x1280xf32>
    %9 = vector.shape_cast %8 : vector<1x3x1280xf32> to vector<3x1280xf32>
    %c0_10 = arith.constant 0 : index
    %c0_11 = arith.constant 0 : index
    %c32 = arith.constant 32 : index
    %10 = vector.load %arg1[%c0_10, %c0_11, %c32] : memref<1x3x1536xf32, #tpu.memory_space<vmem>>, vector<1x3x1280xf32>
    %11 = vector.shape_cast %10 : vector<1x3x1280xf32> to vector<3x1280xf32>
    %c0_12 = arith.constant 0 : index
    %c0_13 = arith.constant 0 : index
    %c33 = arith.constant 33 : index
    %12 = vector.load %arg1[%c0_12, %c0_13, %c33] : memref<1x3x1536xf32, #tpu.memory_space<vmem>>, vector<1x3x1280xf32>
    %13 = vector.shape_cast %12 : vector<1x3x1280xf32> to vector<3x1280xf32>
    %c0_14 = arith.constant 0 : index
    %c0_15 = arith.constant 0 : index
    %c34 = arith.constant 34 : index
    %14 = vector.load %arg1[%c0_14, %c0_15, %c34] : memref<1x3x1536xf32, #tpu.memory_space<vmem>>, vector<1x3x1280xf32>
    %15 = vector.shape_cast %14 : vector<1x3x1280xf32> to vector<3x1280xf32>
    %c0_16 = arith.constant 0 : index
    %c0_17 = arith.constant 0 : index
    %c35 = arith.constant 35 : index
    %16 = vector.load %arg1[%c0_16, %c0_17, %c35] : memref<1x3x1536xf32, #tpu.memory_space<vmem>>, vector<1x3x1280xf32>
    %17 = vector.shape_cast %16 : vector<1x3x1280xf32> to vector<3x1280xf32>
    %c0_18 = arith.constant 0 : index
    %c0_19 = arith.constant 0 : index
    %c36 = arith.constant 36 : index
    %18 = vector.load %arg1[%c0_18, %c0_19, %c36] : memref<1x3x1536xf32, #tpu.memory_space<vmem>>, vector<1x3x1280xf32>
    %19 = vector.shape_cast %18 : vector<1x3x1280xf32> to vector<3x1280xf32>
    %c0_20 = arith.constant 0 : index
    %c0_21 = arith.constant 0 : index
    %c64 = arith.constant 64 : index
    %20 = vector.load %arg1[%c0_20, %c0_21, %c64] : memref<1x3x1536xf32, #tpu.memory_space<vmem>>, vector<1x3x1280xf32>
    %21 = vector.shape_cast %20 : vector<1x3x1280xf32> to vector<3x1280xf32>
    %c0_22 = arith.constant 0 : index
    %c0_23 = arith.constant 0 : index
    %c65 = arith.constant 65 : index
    %22 = vector.load %arg1[%c0_22, %c0_23, %c65] : memref<1x3x1536xf32, #tpu.memory_space<vmem>>, vector<1x3x1280xf32>
    %23 = vector.shape_cast %22 : vector<1x3x1280xf32> to vector<3x1280xf32>
    %c0_24 = arith.constant 0 : index
    %c0_25 = arith.constant 0 : index
    %c66 = arith.constant 66 : index
    %24 = vector.load %arg1[%c0_24, %c0_25, %c66] : memref<1x3x1536xf32, #tpu.memory_space<vmem>>, vector<1x3x1280xf32>
    %25 = vector.shape_cast %24 : vector<1x3x1280xf32> to vector<3x1280xf32>
    %c0_26 = arith.constant 0 : index
    %c0_27 = arith.constant 0 : index
    %c67 = arith.constant 67 : index
    %26 = vector.load %arg1[%c0_26, %c0_27, %c67] : memref<1x3x1536xf32, #tpu.memory_space<vmem>>, vector<1x3x1280xf32>
    %27 = vector.shape_cast %26 : vector<1x3x1280xf32> to vector<3x1280xf32>
    %c0_28 = arith.constant 0 : index
    %c0_29 = arith.constant 0 : index
    %c68 = arith.constant 68 : index
    %28 = vector.load %arg1[%c0_28, %c0_29, %c68] : memref<1x3x1536xf32, #tpu.memory_space<vmem>>, vector<1x3x1280xf32>
    %29 = vector.shape_cast %28 : vector<1x3x1280xf32> to vector<3x1280xf32>
    %c0_30 = arith.constant 0 : index
    %c0_31 = arith.constant 0 : index
    %c96 = arith.constant 96 : index
    %30 = vector.load %arg1[%c0_30, %c0_31, %c96] : memref<1x3x1536xf32, #tpu.memory_space<vmem>>, vector<1x3x1280xf32>
    %31 = vector.shape_cast %30 : vector<1x3x1280xf32> to vector<3x1280xf32>
    %c0_32 = arith.constant 0 : index
    %c0_33 = arith.constant 0 : index
    %c97 = arith.constant 97 : index
    %32 = vector.load %arg1[%c0_32, %c0_33, %c97] : memref<1x3x1536xf32, #tpu.memory_space<vmem>>, vector<1x3x1280xf32>
    %33 = vector.shape_cast %32 : vector<1x3x1280xf32> to vector<3x1280xf32>
    %c0_34 = arith.constant 0 : index
    %c0_35 = arith.constant 0 : index
    %c98 = arith.constant 98 : index
    %34 = vector.load %arg1[%c0_34, %c0_35, %c98] : memref<1x3x1536xf32, #tpu.memory_space<vmem>>, vector<1x3x1280xf32>
    %35 = vector.shape_cast %34 : vector<1x3x1280xf32> to vector<3x1280xf32>
    %c0_36 = arith.constant 0 : index
    %c0_37 = arith.constant 0 : index
    %c99 = arith.constant 99 : index
    %36 = vector.load %arg1[%c0_36, %c0_37, %c99] : memref<1x3x1536xf32, #tpu.memory_space<vmem>>, vector<1x3x1280xf32>
    %37 = vector.shape_cast %36 : vector<1x3x1280xf32> to vector<3x1280xf32>
    %c0_38 = arith.constant 0 : index
    %c0_39 = arith.constant 0 : index
    %c100 = arith.constant 100 : index
    %38 = vector.load %arg1[%c0_38, %c0_39, %c100] : memref<1x3x1536xf32, #tpu.memory_space<vmem>>, vector<1x3x1280xf32>
    %39 = vector.shape_cast %38 : vector<1x3x1280xf32> to vector<3x1280xf32>
    %c0_40 = arith.constant 0 : index
    %c0_41 = arith.constant 0 : index
    %c128 = arith.constant 128 : index
    %40 = vector.load %arg1[%c0_40, %c0_41, %c128] : memref<1x3x1536xf32, #tpu.memory_space<vmem>>, vector<1x3x1280xf32>
    %41 = vector.shape_cast %40 : vector<1x3x1280xf32> to vector<3x1280xf32>
    %c0_42 = arith.constant 0 : index
    %c0_43 = arith.constant 0 : index
    %c129 = arith.constant 129 : index
    %42 = vector.load %arg1[%c0_42, %c0_43, %c129] : memref<1x3x1536xf32, #tpu.memory_space<vmem>>, vector<1x3x1280xf32>
    %43 = vector.shape_cast %42 : vector<1x3x1280xf32> to vector<3x1280xf32>
    %c0_44 = arith.constant 0 : index
    %c0_45 = arith.constant 0 : index
    %c130 = arith.constant 130 : index
    %44 = vector.load %arg1[%c0_44, %c0_45, %c130] : memref<1x3x1536xf32, #tpu.memory_space<vmem>>, vector<1x3x1280xf32>
    %45 = vector.shape_cast %44 : vector<1x3x1280xf32> to vector<3x1280xf32>
    %c0_46 = arith.constant 0 : index
    %c0_47 = arith.constant 0 : index
    %c131 = arith.constant 131 : index
    %46 = vector.load %arg1[%c0_46, %c0_47, %c131] : memref<1x3x1536xf32, #tpu.memory_space<vmem>>, vector<1x3x1280xf32>
    %47 = vector.shape_cast %46 : vector<1x3x1280xf32> to vector<3x1280xf32>
    %c0_48 = arith.constant 0 : index
    %c0_49 = arith.constant 0 : index
    %c132 = arith.constant 132 : index
    %48 = vector.load %arg1[%c0_48, %c0_49, %c132] : memref<1x3x1536xf32, #tpu.memory_space<vmem>>, vector<1x3x1280xf32>
    %49 = vector.shape_cast %48 : vector<1x3x1280xf32> to vector<3x1280xf32>
    %50 = tpu.concatenate %1, %3, %5, %7, %9, %11, %13, %15, %17, %19, %21, %23, %25, %27, %29, %31 in 0 : vector<3x1280xf32>, vector<3x1280xf32>, vector<3x1280xf32>, vector<3x1280xf32>, vector<3x1280xf32>, vector<3x1280xf32>, vector<3x1280xf32>, vector<3x1280xf32>, vector<3x1280xf32>, vector<3x1280xf32>, vector<3x1280xf32>, vector<3x1280xf32>, vector<3x1280xf32>, vector<3x1280xf32>, vector<3x1280xf32>, vector<3x1280xf32> -> vector<48x1280xf32>
    %51 = tpu.concatenate %33, %35, %37, %39, %41, %43, %45, %47, %49 in 0 : vector<3x1280xf32>, vector<3x1280xf32>, vector<3x1280xf32>, vector<3x1280xf32>, vector<3x1280xf32>, vector<3x1280xf32>, vector<3x1280xf32>, vector<3x1280xf32>, vector<3x1280xf32> -> vector<27x1280xf32>
    %52 = tpu.concatenate %50, %51 in 0 : vector<48x1280xf32>, vector<27x1280xf32> -> vector<75x1280xf32>
    %53 = arith.truncf %52 : vector<75x1280xf32> to vector<75x1280xbf16>
    %c0_50 = arith.constant 0 : index
    %c0_51 = arith.constant 0 : index
    %54 = vector.load %arg3[%c0_50, %c0_51] : memref<6x75xbf16, #tpu.memory_space<vmem>>, vector<6x75xbf16>
    %cst = arith.constant dense<0.000000e+00> : vector<6x1280xf32>
    %55 = tpu.matmul %54, %53, %cst {dimension_numbers = #tpu.dot_dimension_numbers<[1], [0], [0], [1], [0, 0, 1, 1], [], []>} : vector<6x75xbf16>, vector<75x1280xbf16>, vector<6x1280xf32> -> vector<6x1280xf32>
    %c0_52 = arith.constant 0 : index
    %c0_53 = arith.constant 0 : index
    %56 = vector.load %arg4[%c0_52, %c0_53] : memref<6x1xf32, #tpu.memory_space<vmem>>, vector<6x1xf32>
    %57 = vector.broadcast %56 : vector<6x1xf32> to vector<6x1280xf32>
    %58 = arith.addf %55, %57 : vector<6x1280xf32>
    %cst_54 = arith.constant 0.000000e+00 : f32
    %59 = vector.broadcast %cst_54 : f32 to vector<6x1280xf32>
    %60 = arith.maximumf %58, %59 : vector<6x1280xf32>
    %c0_55 = arith.constant 0 : index
    %c0_56 = arith.constant 0 : index
    %61 = vector.load %arg15[%c0_55, %c0_56] : memref<6x1280xf32, #tpu.memory_space<vmem>>, vector<6x1280xf32>
    tpu.vector_store %arg15[%c0_55, %c0_56], %60 {strides = array<i32>} : memref<6x1280xf32, #tpu.memory_space<vmem>>, vector<6x1280xf32>,
    %c0_57 = arith.constant 0 : index
    %c0_58 = arith.constant 0 : index
    %62 = vector.load %arg15[%c0_57, %c0_58] : memref<6x1280xf32, #tpu.memory_space<vmem>>, vector<6x1152xf32>
    %c0_59 = arith.constant 0 : index
    %c1_60 = arith.constant 1 : index
    %63 = vector.load %arg15[%c0_59, %c1_60] : memref<6x1280xf32, #tpu.memory_space<vmem>>, vector<6x1152xf32>
    %64 = arith.maximumf %62, %63 : vector<6x1152xf32>
    %c0_61 = arith.constant 0 : index
    %c32_62 = arith.constant 32 : index
    %65 = vector.load %arg15[%c0_61, %c32_62] : memref<6x1280xf32, #tpu.memory_space<vmem>>, vector<6x1152xf32>
    %c0_63 = arith.constant 0 : index
    %c33_64 = arith.constant 33 : index
    %66 = vector.load %arg15[%c0_63, %c33_64] : memref<6x1280xf32, #tpu.memory_space<vmem>>, vector<6x1152xf32>
    %67 = arith.maximumf %65, %66 : vector<6x1152xf32>
    %68 = arith.maximumf %64, %67 : vector<6x1152xf32>
    %c0_65 = arith.constant 0 : index
    %c0_66 = arith.constant 0 : index
    %69 = vector.load %arg16[%c0_65, %c0_66] : memref<6x1152xf32, #tpu.memory_space<vmem>>, vector<6x1152xf32>
    tpu.vector_store %arg16[%c0_65, %c0_66], %68 {strides = array<i32>} : memref<6x1152xf32, #tpu.memory_space<vmem>>, vector<6x1152xf32>,
    %c0_67 = arith.constant 0 : index
    %c0_68 = arith.constant 0 : index
    %70 = vector.load %arg16[%c0_67, %c0_68] : memref<6x1152xf32, #tpu.memory_space<vmem>>, vector<6x768xf32>
    %c0_69 = arith.constant 0 : index
    %c2_70 = arith.constant 2 : index
    %71 = vector.load %arg16[%c0_69, %c2_70] : memref<6x1152xf32, #tpu.memory_space<vmem>>, vector<6x768xf32>
    %c0_71 = arith.constant 0 : index
    %c4_72 = arith.constant 4 : index
    %72 = vector.load %arg16[%c0_71, %c4_72] : memref<6x1152xf32, #tpu.memory_space<vmem>>, vector<6x768xf32>
    %c0_73 = arith.constant 0 : index
    %c6 = arith.constant 6 : index
    %73 = vector.load %arg16[%c0_73, %c6] : memref<6x1152xf32, #tpu.memory_space<vmem>>, vector<6x768xf32>
    %c0_74 = arith.constant 0 : index
    %c8 = arith.constant 8 : index
    %74 = vector.load %arg16[%c0_74, %c8] : memref<6x1152xf32, #tpu.memory_space<vmem>>, vector<6x768xf32>
    %c0_75 = arith.constant 0 : index
    %c64_76 = arith.constant 64 : index
    %75 = vector.load %arg16[%c0_75, %c64_76] : memref<6x1152xf32, #tpu.memory_space<vmem>>, vector<6x768xf32>
    %c0_77 = arith.constant 0 : index
    %c66_78 = arith.constant 66 : index
    %76 = vector.load %arg16[%c0_77, %c66_78] : memref<6x1152xf32, #tpu.memory_space<vmem>>, vector<6x768xf32>
    %c0_79 = arith.constant 0 : index
    %c68_80 = arith.constant 68 : index
    %77 = vector.load %arg16[%c0_79, %c68_80] : memref<6x1152xf32, #tpu.memory_space<vmem>>, vector<6x768xf32>
    %c0_81 = arith.constant 0 : index
    %c70 = arith.constant 70 : index
    %78 = vector.load %arg16[%c0_81, %c70] : memref<6x1152xf32, #tpu.memory_space<vmem>>, vector<6x768xf32>
    %c0_82 = arith.constant 0 : index
    %c72 = arith.constant 72 : index
    %79 = vector.load %arg16[%c0_82, %c72] : memref<6x1152xf32, #tpu.memory_space<vmem>>, vector<6x768xf32>
    %c0_83 = arith.constant 0 : index
    %c128_84 = arith.constant 128 : index
    %80 = vector.load %arg16[%c0_83, %c128_84] : memref<6x1152xf32, #tpu.memory_space<vmem>>, vector<6x768xf32>
    %c0_85 = arith.constant 0 : index
    %c130_86 = arith.constant 130 : index
    %81 = vector.load %arg16[%c0_85, %c130_86] : memref<6x1152xf32, #tpu.memory_space<vmem>>, vector<6x768xf32>
    %c0_87 = arith.constant 0 : index
    %c132_88 = arith.constant 132 : index
    %82 = vector.load %arg16[%c0_87, %c132_88] : memref<6x1152xf32, #tpu.memory_space<vmem>>, vector<6x768xf32>
    %c0_89 = arith.constant 0 : index
    %c134 = arith.constant 134 : index
    %83 = vector.load %arg16[%c0_89, %c134] : memref<6x1152xf32, #tpu.memory_space<vmem>>, vector<6x768xf32>
    %c0_90 = arith.constant 0 : index
    %c136 = arith.constant 136 : index
    %84 = vector.load %arg16[%c0_90, %c136] : memref<6x1152xf32, #tpu.memory_space<vmem>>, vector<6x768xf32>
    %c0_91 = arith.constant 0 : index
    %c192 = arith.constant 192 : index
    %85 = vector.load %arg16[%c0_91, %c192] : memref<6x1152xf32, #tpu.memory_space<vmem>>, vector<6x768xf32>
    %c0_92 = arith.constant 0 : index
    %c194 = arith.constant 194 : index
    %86 = vector.load %arg16[%c0_92, %c194] : memref<6x1152xf32, #tpu.memory_space<vmem>>, vector<6x768xf32>
    %c0_93 = arith.constant 0 : index
    %c196 = arith.constant 196 : index
    %87 = vector.load %arg16[%c0_93, %c196] : memref<6x1152xf32, #tpu.memory_space<vmem>>, vector<6x768xf32>
    %c0_94 = arith.constant 0 : index
    %c198 = arith.constant 198 : index
    %88 = vector.load %arg16[%c0_94, %c198] : memref<6x1152xf32, #tpu.memory_space<vmem>>, vector<6x768xf32>
    %c0_95 = arith.constant 0 : index
    %c200 = arith.constant 200 : index
    %89 = vector.load %arg16[%c0_95, %c200] : memref<6x1152xf32, #tpu.memory_space<vmem>>, vector<6x768xf32>
    %c0_96 = arith.constant 0 : index
    %c256 = arith.constant 256 : index
    %90 = vector.load %arg16[%c0_96, %c256] : memref<6x1152xf32, #tpu.memory_space<vmem>>, vector<6x768xf32>
    %c0_97 = arith.constant 0 : index
    %c258 = arith.constant 258 : index
    %91 = vector.load %arg16[%c0_97, %c258] : memref<6x1152xf32, #tpu.memory_space<vmem>>, vector<6x768xf32>
    %c0_98 = arith.constant 0 : index
    %c260 = arith.constant 260 : index
    %92 = vector.load %arg16[%c0_98, %c260] : memref<6x1152xf32, #tpu.memory_space<vmem>>, vector<6x768xf32>
    %c0_99 = arith.constant 0 : index
    %c262 = arith.constant 262 : index
    %93 = vector.load %arg16[%c0_99, %c262] : memref<6x1152xf32, #tpu.memory_space<vmem>>, vector<6x768xf32>
    %c0_100 = arith.constant 0 : index
    %c264 = arith.constant 264 : index
    %94 = vector.load %arg16[%c0_100, %c264] : memref<6x1152xf32, #tpu.memory_space<vmem>>, vector<6x768xf32>
    %95 = tpu.concatenate %70, %71, %72, %73, %74, %75, %76, %77, %78, %79, %80, %81, %82, %83, %84, %85 in 0 : vector<6x768xf32>, vector<6x768xf32>, vector<6x768xf32>, vector<6x768xf32>, vector<6x768xf32>, vector<6x768xf32>, vector<6x768xf32>, vector<6x768xf32>, vector<6x768xf32>, vector<6x768xf32>, vector<6x768xf32>, vector<6x768xf32>, vector<6x768xf32>, vector<6x768xf32>, vector<6x768xf32>, vector<6x768xf32> -> vector<96x768xf32>
    %96 = tpu.concatenate %86, %87, %88, %89, %90, %91, %92, %93, %94 in 0 : vector<6x768xf32>, vector<6x768xf32>, vector<6x768xf32>, vector<6x768xf32>, vector<6x768xf32>, vector<6x768xf32>, vector<6x768xf32>, vector<6x768xf32>, vector<6x768xf32> -> vector<54x768xf32>
    %97 = tpu.concatenate %95, %96 in 0 : vector<96x768xf32>, vector<54x768xf32> -> vector<150x768xf32>
    %98 = arith.truncf %97 : vector<150x768xf32> to vector<150x768xbf16>
    %c0_101 = arith.constant 0 : index
    %c0_102 = arith.constant 0 : index
    %99 = vector.load %arg5[%c0_101, %c0_102] : memref<16x150xbf16, #tpu.memory_space<vmem>>, vector<16x150xbf16>
    %cst_103 = arith.constant dense<0.000000e+00> : vector<16x768xf32>
    %100 = tpu.matmul %99, %98, %cst_103 {dimension_numbers = #tpu.dot_dimension_numbers<[1], [0], [0], [1], [0, 0, 1, 1], [], []>} : vector<16x150xbf16>, vector<150x768xbf16>, vector<16x768xf32> -> vector<16x768xf32>
    %c0_104 = arith.constant 0 : index
    %c0_105 = arith.constant 0 : index
    %101 = vector.load %arg6[%c0_104, %c0_105] : memref<16x1xf32, #tpu.memory_space<vmem>>, vector<16x1xf32>
    %102 = vector.broadcast %101 : vector<16x1xf32> to vector<16x768xf32>
    %103 = arith.addf %100, %102 : vector<16x768xf32>
    %cst_106 = arith.constant 0.000000e+00 : f32
    %104 = vector.broadcast %cst_106 : f32 to vector<16x768xf32>
    %105 = arith.maximumf %103, %104 : vector<16x768xf32>
    %c0_107 = arith.constant 0 : index
    %c0_108 = arith.constant 0 : index
    %106 = vector.load %arg17[%c0_107, %c0_108] : memref<16x768xf32, #tpu.memory_space<vmem>>, vector<16x768xf32>
    tpu.vector_store %arg17[%c0_107, %c0_108], %105 {strides = array<i32>} : memref<16x768xf32, #tpu.memory_space<vmem>>, vector<16x768xf32>,
    %c0_109 = arith.constant 0 : index
    %c0_110 = arith.constant 0 : index
    %107 = vector.load %arg17[%c0_109, %c0_110] : memref<16x768xf32, #tpu.memory_space<vmem>>, vector<16x640xf32>
    %c0_111 = arith.constant 0 : index
    %c2_112 = arith.constant 2 : index
    %108 = vector.load %arg17[%c0_111, %c2_112] : memref<16x768xf32, #tpu.memory_space<vmem>>, vector<16x640xf32>
    %109 = arith.maximumf %107, %108 : vector<16x640xf32>
    %c0_113 = arith.constant 0 : index
    %c64_114 = arith.constant 64 : index
    %110 = vector.load %arg17[%c0_113, %c64_114] : memref<16x768xf32, #tpu.memory_space<vmem>>, vector<16x640xf32>
    %c0_115 = arith.constant 0 : index
    %c66_116 = arith.constant 66 : index
    %111 = vector.load %arg17[%c0_115, %c66_116] : memref<16x768xf32, #tpu.memory_space<vmem>>, vector<16x640xf32>
    %112 = arith.maximumf %110, %111 : vector<16x640xf32>
    %113 = arith.maximumf %109, %112 : vector<16x640xf32>
    %c0_117 = arith.constant 0 : index
    %c0_118 = arith.constant 0 : index
    %114 = vector.load %arg18[%c0_117, %c0_118] : memref<16x640xf32, #tpu.memory_space<vmem>>, vector<16x640xf32>
    tpu.vector_store %arg18[%c0_117, %c0_118], %113 {strides = array<i32>} : memref<16x640xf32, #tpu.memory_space<vmem>>, vector<16x640xf32>,
    %c0_119 = arith.constant 0 : index
    %c0_120 = arith.constant 0 : index
    %115 = vector.load %arg18[%c0_119, %c0_120] : memref<16x640xf32, #tpu.memory_space<vmem>>, vector<16x640xf32>
    %116 = arith.truncf %115 : vector<16x640xf32> to vector<16x640xbf16>
    %c0_121 = arith.constant 0 : index
    %c0_122 = arith.constant 0 : index
    %117 = vector.load %arg2[%c0_121, %c0_122] : memref<640x32xbf16, #tpu.memory_space<vmem>>, vector<640x32xbf16>
    %cst_123 = arith.constant dense<0.000000e+00> : vector<16x32xf32>
    %118 = tpu.matmul %116, %117, %cst_123 {dimension_numbers = #tpu.dot_dimension_numbers<[1], [0], [0], [1], [0, 0, 1, 1], [], []>} : vector<16x640xbf16>, vector<640x32xbf16>, vector<16x32xf32> -> vector<16x32xf32>
    %119 = arith.truncf %118 : vector<16x32xf32> to vector<16x32xbf16>
    %cst_124 = arith.constant 0.000000e+00 : f32
    %120 = vector.broadcast %cst_124 : f32 to vector<1x128xf32>
    %121 = vector.extract_strided_slice %119 {offsets = [0, 0], sizes = [1, 32], strides = [1, 1]} : vector<16x32xbf16> to vector<1x32xbf16>
    %c0_125 = arith.constant 0 : index
    %c0_126 = arith.constant 0 : index
    %c0_127 = arith.constant 0 : index
    %122 = vector.load %arg7[%c0_125, %c0_126, %c0_127] : memref<16x32x128xbf16, #tpu.memory_space<vmem>>, vector<1x32x128xbf16>
    %123 = vector.shape_cast %122 : vector<1x32x128xbf16> to vector<32x128xbf16>
    %cst_128 = arith.constant dense<0.000000e+00> : vector<1x128xf32>
    %124 = tpu.matmul %121, %123, %cst_128 {dimension_numbers = #tpu.dot_dimension_numbers<[1], [0], [0], [1], [0, 0, 1, 1], [], []>} : vector<1x32xbf16>, vector<32x128xbf16>, vector<1x128xf32> -> vector<1x128xf32>
    %125 = arith.addf %120, %124 : vector<1x128xf32>
    %126 = vector.extract_strided_slice %119 {offsets = [1, 0], sizes = [1, 32], strides = [1, 1]} : vector<16x32xbf16> to vector<1x32xbf16>
    %c1_129 = arith.constant 1 : index
    %c0_130 = arith.constant 0 : index
    %c0_131 = arith.constant 0 : index
    %127 = vector.load %arg7[%c1_129, %c0_130, %c0_131] : memref<16x32x128xbf16, #tpu.memory_space<vmem>>, vector<1x32x128xbf16>
    %128 = vector.shape_cast %127 : vector<1x32x128xbf16> to vector<32x128xbf16>
    %cst_132 = arith.constant dense<0.000000e+00> : vector<1x128xf32>
    %129 = tpu.matmul %126, %128, %cst_132 {dimension_numbers = #tpu.dot_dimension_numbers<[1], [0], [0], [1], [0, 0, 1, 1], [], []>} : vector<1x32xbf16>, vector<32x128xbf16>, vector<1x128xf32> -> vector<1x128xf32>
    %130 = arith.addf %125, %129 : vector<1x128xf32>
    %131 = vector.extract_strided_slice %119 {offsets = [2, 0], sizes = [1, 32], strides = [1, 1]} : vector<16x32xbf16> to vector<1x32xbf16>
    %c2_133 = arith.constant 2 : index
    %c0_134 = arith.constant 0 : index
    %c0_135 = arith.constant 0 : index
    %132 = vector.load %arg7[%c2_133, %c0_134, %c0_135] : memref<16x32x128xbf16, #tpu.memory_space<vmem>>, vector<1x32x128xbf16>
    %133 = vector.shape_cast %132 : vector<1x32x128xbf16> to vector<32x128xbf16>
    %cst_136 = arith.constant dense<0.000000e+00> : vector<1x128xf32>
    %134 = tpu.matmul %131, %133, %cst_136 {dimension_numbers = #tpu.dot_dimension_numbers<[1], [0], [0], [1], [0, 0, 1, 1], [], []>} : vector<1x32xbf16>, vector<32x128xbf16>, vector<1x128xf32> -> vector<1x128xf32>
    %135 = arith.addf %130, %134 : vector<1x128xf32>
    %136 = vector.extract_strided_slice %119 {offsets = [3, 0], sizes = [1, 32], strides = [1, 1]} : vector<16x32xbf16> to vector<1x32xbf16>
    %c3_137 = arith.constant 3 : index
    %c0_138 = arith.constant 0 : index
    %c0_139 = arith.constant 0 : index
    %137 = vector.load %arg7[%c3_137, %c0_138, %c0_139] : memref<16x32x128xbf16, #tpu.memory_space<vmem>>, vector<1x32x128xbf16>
    %138 = vector.shape_cast %137 : vector<1x32x128xbf16> to vector<32x128xbf16>
    %cst_140 = arith.constant dense<0.000000e+00> : vector<1x128xf32>
    %139 = tpu.matmul %136, %138, %cst_140 {dimension_numbers = #tpu.dot_dimension_numbers<[1], [0], [0], [1], [0, 0, 1, 1], [], []>} : vector<1x32xbf16>, vector<32x128xbf16>, vector<1x128xf32> -> vector<1x128xf32>
    %140 = arith.addf %135, %139 : vector<1x128xf32>
    %141 = vector.extract_strided_slice %119 {offsets = [4, 0], sizes = [1, 32], strides = [1, 1]} : vector<16x32xbf16> to vector<1x32xbf16>
    %c4_141 = arith.constant 4 : index
    %c0_142 = arith.constant 0 : index
    %c0_143 = arith.constant 0 : index
    %142 = vector.load %arg7[%c4_141, %c0_142, %c0_143] : memref<16x32x128xbf16, #tpu.memory_space<vmem>>, vector<1x32x128xbf16>
    %143 = vector.shape_cast %142 : vector<1x32x128xbf16> to vector<32x128xbf16>
    %cst_144 = arith.constant dense<0.000000e+00> : vector<1x128xf32>
    %144 = tpu.matmul %141, %143, %cst_144 {dimension_numbers = #tpu.dot_dimension_numbers<[1], [0], [0], [1], [0, 0, 1, 1], [], []>} : vector<1x32xbf16>, vector<32x128xbf16>, vector<1x128xf32> -> vector<1x128xf32>
    %145 = arith.addf %140, %144 : vector<1x128xf32>
    %146 = vector.extract_strided_slice %119 {offsets = [5, 0], sizes = [1, 32], strides = [1, 1]} : vector<16x32xbf16> to vector<1x32xbf16>
    %c5 = arith.constant 5 : index
    %c0_145 = arith.constant 0 : index
    %c0_146 = arith.constant 0 : index
    %147 = vector.load %arg7[%c5, %c0_145, %c0_146] : memref<16x32x128xbf16, #tpu.memory_space<vmem>>, vector<1x32x128xbf16>
    %148 = vector.shape_cast %147 : vector<1x32x128xbf16> to vector<32x128xbf16>
    %cst_147 = arith.constant dense<0.000000e+00> : vector<1x128xf32>
    %149 = tpu.matmul %146, %148, %cst_147 {dimension_numbers = #tpu.dot_dimension_numbers<[1], [0], [0], [1], [0, 0, 1, 1], [], []>} : vector<1x32xbf16>, vector<32x128xbf16>, vector<1x128xf32> -> vector<1x128xf32>
    %150 = arith.addf %145, %149 : vector<1x128xf32>
    %151 = vector.extract_strided_slice %119 {offsets = [6, 0], sizes = [1, 32], strides = [1, 1]} : vector<16x32xbf16> to vector<1x32xbf16>
    %c6_148 = arith.constant 6 : index
    %c0_149 = arith.constant 0 : index
    %c0_150 = arith.constant 0 : index
    %152 = vector.load %arg7[%c6_148, %c0_149, %c0_150] : memref<16x32x128xbf16, #tpu.memory_space<vmem>>, vector<1x32x128xbf16>
    %153 = vector.shape_cast %152 : vector<1x32x128xbf16> to vector<32x128xbf16>
    %cst_151 = arith.constant dense<0.000000e+00> : vector<1x128xf32>
    %154 = tpu.matmul %151, %153, %cst_151 {dimension_numbers = #tpu.dot_dimension_numbers<[1], [0], [0], [1], [0, 0, 1, 1], [], []>} : vector<1x32xbf16>, vector<32x128xbf16>, vector<1x128xf32> -> vector<1x128xf32>
    %155 = arith.addf %150, %154 : vector<1x128xf32>
    %156 = vector.extract_strided_slice %119 {offsets = [7, 0], sizes = [1, 32], strides = [1, 1]} : vector<16x32xbf16> to vector<1x32xbf16>
    %c7 = arith.constant 7 : index
    %c0_152 = arith.constant 0 : index
    %c0_153 = arith.constant 0 : index
    %157 = vector.load %arg7[%c7, %c0_152, %c0_153] : memref<16x32x128xbf16, #tpu.memory_space<vmem>>, vector<1x32x128xbf16>
    %158 = vector.shape_cast %157 : vector<1x32x128xbf16> to vector<32x128xbf16>
    %cst_154 = arith.constant dense<0.000000e+00> : vector<1x128xf32>
    %159 = tpu.matmul %156, %158, %cst_154 {dimension_numbers = #tpu.dot_dimension_numbers<[1], [0], [0], [1], [0, 0, 1, 1], [], []>} : vector<1x32xbf16>, vector<32x128xbf16>, vector<1x128xf32> -> vector<1x128xf32>
    %160 = arith.addf %155, %159 : vector<1x128xf32>
    %161 = vector.extract_strided_slice %119 {offsets = [8, 0], sizes = [1, 32], strides = [1, 1]} : vector<16x32xbf16> to vector<1x32xbf16>
    %c8_155 = arith.constant 8 : index
    %c0_156 = arith.constant 0 : index
    %c0_157 = arith.constant 0 : index
    %162 = vector.load %arg7[%c8_155, %c0_156, %c0_157] : memref<16x32x128xbf16, #tpu.memory_space<vmem>>, vector<1x32x128xbf16>
    %163 = vector.shape_cast %162 : vector<1x32x128xbf16> to vector<32x128xbf16>
    %cst_158 = arith.constant dense<0.000000e+00> : vector<1x128xf32>
    %164 = tpu.matmul %161, %163, %cst_158 {dimension_numbers = #tpu.dot_dimension_numbers<[1], [0], [0], [1], [0, 0, 1, 1], [], []>} : vector<1x32xbf16>, vector<32x128xbf16>, vector<1x128xf32> -> vector<1x128xf32>
    %165 = arith.addf %160, %164 : vector<1x128xf32>
    %166 = vector.extract_strided_slice %119 {offsets = [9, 0], sizes = [1, 32], strides = [1, 1]} : vector<16x32xbf16> to vector<1x32xbf16>
    %c9 = arith.constant 9 : index
    %c0_159 = arith.constant 0 : index
    %c0_160 = arith.constant 0 : index
    %167 = vector.load %arg7[%c9, %c0_159, %c0_160] : memref<16x32x128xbf16, #tpu.memory_space<vmem>>, vector<1x32x128xbf16>
    %168 = vector.shape_cast %167 : vector<1x32x128xbf16> to vector<32x128xbf16>
    %cst_161 = arith.constant dense<0.000000e+00> : vector<1x128xf32>
    %169 = tpu.matmul %166, %168, %cst_161 {dimension_numbers = #tpu.dot_dimension_numbers<[1], [0], [0], [1], [0, 0, 1, 1], [], []>} : vector<1x32xbf16>, vector<32x128xbf16>, vector<1x128xf32> -> vector<1x128xf32>
    %170 = arith.addf %165, %169 : vector<1x128xf32>
    %171 = vector.extract_strided_slice %119 {offsets = [10, 0], sizes = [1, 32], strides = [1, 1]} : vector<16x32xbf16> to vector<1x32xbf16>
    %c10 = arith.constant 10 : index
    %c0_162 = arith.constant 0 : index
    %c0_163 = arith.constant 0 : index
    %172 = vector.load %arg7[%c10, %c0_162, %c0_163] : memref<16x32x128xbf16, #tpu.memory_space<vmem>>, vector<1x32x128xbf16>
    %173 = vector.shape_cast %172 : vector<1x32x128xbf16> to vector<32x128xbf16>
    %cst_164 = arith.constant dense<0.000000e+00> : vector<1x128xf32>
    %174 = tpu.matmul %171, %173, %cst_164 {dimension_numbers = #tpu.dot_dimension_numbers<[1], [0], [0], [1], [0, 0, 1, 1], [], []>} : vector<1x32xbf16>, vector<32x128xbf16>, vector<1x128xf32> -> vector<1x128xf32>
    %175 = arith.addf %170, %174 : vector<1x128xf32>
    %176 = vector.extract_strided_slice %119 {offsets = [11, 0], sizes = [1, 32], strides = [1, 1]} : vector<16x32xbf16> to vector<1x32xbf16>
    %c11 = arith.constant 11 : index
    %c0_165 = arith.constant 0 : index
    %c0_166 = arith.constant 0 : index
    %177 = vector.load %arg7[%c11, %c0_165, %c0_166] : memref<16x32x128xbf16, #tpu.memory_space<vmem>>, vector<1x32x128xbf16>
    %178 = vector.shape_cast %177 : vector<1x32x128xbf16> to vector<32x128xbf16>
    %cst_167 = arith.constant dense<0.000000e+00> : vector<1x128xf32>
    %179 = tpu.matmul %176, %178, %cst_167 {dimension_numbers = #tpu.dot_dimension_numbers<[1], [0], [0], [1], [0, 0, 1, 1], [], []>} : vector<1x32xbf16>, vector<32x128xbf16>, vector<1x128xf32> -> vector<1x128xf32>
    %180 = arith.addf %175, %179 : vector<1x128xf32>
    %181 = vector.extract_strided_slice %119 {offsets = [12, 0], sizes = [1, 32], strides = [1, 1]} : vector<16x32xbf16> to vector<1x32xbf16>
    %c12 = arith.constant 12 : index
    %c0_168 = arith.constant 0 : index
    %c0_169 = arith.constant 0 : index
    %182 = vector.load %arg7[%c12, %c0_168, %c0_169] : memref<16x32x128xbf16, #tpu.memory_space<vmem>>, vector<1x32x128xbf16>
    %183 = vector.shape_cast %182 : vector<1x32x128xbf16> to vector<32x128xbf16>
    %cst_170 = arith.constant dense<0.000000e+00> : vector<1x128xf32>
    %184 = tpu.matmul %181, %183, %cst_170 {dimension_numbers = #tpu.dot_dimension_numbers<[1], [0], [0], [1], [0, 0, 1, 1], [], []>} : vector<1x32xbf16>, vector<32x128xbf16>, vector<1x128xf32> -> vector<1x128xf32>
    %185 = arith.addf %180, %184 : vector<1x128xf32>
    %186 = vector.extract_strided_slice %119 {offsets = [13, 0], sizes = [1, 32], strides = [1, 1]} : vector<16x32xbf16> to vector<1x32xbf16>
    %c13 = arith.constant 13 : index
    %c0_171 = arith.constant 0 : index
    %c0_172 = arith.constant 0 : index
    %187 = vector.load %arg7[%c13, %c0_171, %c0_172] : memref<16x32x128xbf16, #tpu.memory_space<vmem>>, vector<1x32x128xbf16>
    %188 = vector.shape_cast %187 : vector<1x32x128xbf16> to vector<32x128xbf16>
    %cst_173 = arith.constant dense<0.000000e+00> : vector<1x128xf32>
    %189 = tpu.matmul %186, %188, %cst_173 {dimension_numbers = #tpu.dot_dimension_numbers<[1], [0], [0], [1], [0, 0, 1, 1], [], []>} : vector<1x32xbf16>, vector<32x128xbf16>, vector<1x128xf32> -> vector<1x128xf32>
    %190 = arith.addf %185, %189 : vector<1x128xf32>
    %191 = vector.extract_strided_slice %119 {offsets = [14, 0], sizes = [1, 32], strides = [1, 1]} : vector<16x32xbf16> to vector<1x32xbf16>
    %c14 = arith.constant 14 : index
    %c0_174 = arith.constant 0 : index
    %c0_175 = arith.constant 0 : index
    %192 = vector.load %arg7[%c14, %c0_174, %c0_175] : memref<16x32x128xbf16, #tpu.memory_space<vmem>>, vector<1x32x128xbf16>
    %193 = vector.shape_cast %192 : vector<1x32x128xbf16> to vector<32x128xbf16>
    %cst_176 = arith.constant dense<0.000000e+00> : vector<1x128xf32>
    %194 = tpu.matmul %191, %193, %cst_176 {dimension_numbers = #tpu.dot_dimension_numbers<[1], [0], [0], [1], [0, 0, 1, 1], [], []>} : vector<1x32xbf16>, vector<32x128xbf16>, vector<1x128xf32> -> vector<1x128xf32>
    %195 = arith.addf %190, %194 : vector<1x128xf32>
    %196 = vector.extract_strided_slice %119 {offsets = [15, 0], sizes = [1, 32], strides = [1, 1]} : vector<16x32xbf16> to vector<1x32xbf16>
    %c15 = arith.constant 15 : index
    %c0_177 = arith.constant 0 : index
    %c0_178 = arith.constant 0 : index
    %197 = vector.load %arg7[%c15, %c0_177, %c0_178] : memref<16x32x128xbf16, #tpu.memory_space<vmem>>, vector<1x32x128xbf16>
    %198 = vector.shape_cast %197 : vector<1x32x128xbf16> to vector<32x128xbf16>
    %cst_179 = arith.constant dense<0.000000e+00> : vector<1x128xf32>
    %199 = tpu.matmul %196, %198, %cst_179 {dimension_numbers = #tpu.dot_dimension_numbers<[1], [0], [0], [1], [0, 0, 1, 1], [], []>} : vector<1x32xbf16>, vector<32x128xbf16>, vector<1x128xf32> -> vector<1x128xf32>
    %200 = arith.addf %195, %199 : vector<1x128xf32>
    %c0_180 = arith.constant 0 : index
    %c0_181 = arith.constant 0 : index
    %201 = vector.load %arg8[%c0_180, %c0_181] : memref<1x128xf32, #tpu.memory_space<vmem>>, vector<1x128xf32>
    %202 = arith.addf %200, %201 : vector<1x128xf32>
    %cst_182 = arith.constant 0.000000e+00 : f32
    %203 = vector.broadcast %cst_182 : f32 to vector<1x128xf32>
    %204 = arith.maximumf %202, %203 : vector<1x128xf32>
    %205 = arith.truncf %204 : vector<1x128xf32> to vector<1x128xbf16>
    %c0_183 = arith.constant 0 : index
    %c0_184 = arith.constant 0 : index
    %206 = vector.load %arg9[%c0_183, %c0_184] : memref<128x128xbf16, #tpu.memory_space<vmem>>, vector<128x128xbf16>
    %cst_185 = arith.constant dense<0.000000e+00> : vector<1x128xf32>
    %207 = tpu.matmul %205, %206, %cst_185 {dimension_numbers = #tpu.dot_dimension_numbers<[1], [0], [0], [1], [0, 0, 1, 1], [], []>} : vector<1x128xbf16>, vector<128x128xbf16>, vector<1x128xf32> -> vector<1x128xf32>
    %c0_186 = arith.constant 0 : index
    %c0_187 = arith.constant 0 : index
    %208 = vector.load %arg10[%c0_186, %c0_187] : memref<1x128xf32, #tpu.memory_space<vmem>>, vector<1x128xf32>
    %209 = arith.addf %207, %208 : vector<1x128xf32>
    %cst_188 = arith.constant 0.000000e+00 : f32
    %210 = vector.broadcast %cst_188 : f32 to vector<1x128xf32>
    %211 = arith.maximumf %209, %210 : vector<1x128xf32>
    %c0_189 = arith.constant 0 : index
    %c0_190 = arith.constant 0 : index
    %c0_191 = arith.constant 0 : index
    %212 = vector.load %arg13[%c0_189, %c0_190, %c0_191] : memref<1x1x128xf32, #tpu.memory_space<vmem>>, vector<1x1x128xf32>
    %213 = vector.shape_cast %212 : vector<1x1x128xf32> to vector<1x128xf32>
    %214 = vector.shape_cast %211 : vector<1x128xf32> to vector<1x1x128xf32>
    tpu.vector_store %arg13[%c0_189, %c0_190, %c0_191], %214 {strides = array<i32>} : memref<1x1x128xf32, #tpu.memory_space<vmem>>, vector<1x1x128xf32>,
    %215 = arith.truncf %211 : vector<1x128xf32> to vector<1x128xbf16>
    %c0_192 = arith.constant 0 : index
    %c0_193 = arith.constant 0 : index
    %216 = vector.load %arg11[%c0_192, %c0_193] : memref<128x128xbf16, #tpu.memory_space<vmem>>, vector<128x128xbf16>
    %cst_194 = arith.constant dense<0.000000e+00> : vector<1x128xf32>
    %217 = tpu.matmul %215, %216, %cst_194 {dimension_numbers = #tpu.dot_dimension_numbers<[1], [0], [0], [1], [0, 0, 1, 1], [], []>} : vector<1x128xbf16>, vector<128x128xbf16>, vector<1x128xf32> -> vector<1x128xf32>
    %c0_195 = arith.constant 0 : index
    %c0_196 = arith.constant 0 : index
    %218 = vector.load %arg12[%c0_195, %c0_196] : memref<1x128xf32, #tpu.memory_space<vmem>>, vector<1x128xf32>
    %219 = arith.addf %217, %218 : vector<1x128xf32>
    %c0_197 = arith.constant 0 : index
    %c0_198 = arith.constant 0 : index
    %c0_199 = arith.constant 0 : index
    %220 = vector.load %arg14[%c0_197, %c0_198, %c0_199] : memref<1x1x128xf32, #tpu.memory_space<vmem>>, vector<1x1x128xf32>
    %221 = vector.shape_cast %220 : vector<1x1x128xf32> to vector<1x128xf32>
    %222 = vector.shape_cast %219 : vector<1x128xf32> to vector<1x1x128xf32>
    tpu.vector_store %arg14[%c0_197, %c0_198, %c0_199], %222 {strides = array<i32>} : memref<1x1x128xf32, #tpu.memory_space<vmem>>, vector<1x1x128xf32>,
    return
  }
  func.func @transform_0(%arg0: i32) -> (i32, i32, i32) {
    %c0_i32 = arith.constant 0 : i32
    %c0_i32_0 = arith.constant 0 : i32
    %c0_i32_1 = arith.constant 0 : i32
    return %arg0, %c0_i32, %c0_i32_0 : i32, i32, i32
  }
  func.func @transform_1(%arg0: i32) -> (i32, i32) {
    %c0_i32 = arith.constant 0 : i32
    %c0_i32_0 = arith.constant 0 : i32
    %c0_i32_1 = arith.constant 0 : i32
    return %c0_i32, %c0_i32_0 : i32, i32
  }
  func.func @transform_2(%arg0: i32) -> (i32, i32) {
    %c0_i32 = arith.constant 0 : i32
    %c0_i32_0 = arith.constant 0 : i32
    %c0_i32_1 = arith.constant 0 : i32
    return %c0_i32, %c0_i32_0 : i32, i32
  }
  func.func @transform_3(%arg0: i32) -> (i32, i32) {
    %c0_i32 = arith.constant 0 : i32
    %c0_i32_0 = arith.constant 0 : i32
    %c0_i32_1 = arith.constant 0 : i32
    return %c0_i32, %c0_i32_0 : i32, i32
  }
  func.func @transform_4(%arg0: i32) -> (i32, i32) {
    %c0_i32 = arith.constant 0 : i32
    %c0_i32_0 = arith.constant 0 : i32
    %c0_i32_1 = arith.constant 0 : i32
    return %c0_i32, %c0_i32_0 : i32, i32
  }
  func.func @transform_5(%arg0: i32) -> (i32, i32) {
    %c0_i32 = arith.constant 0 : i32
    %c0_i32_0 = arith.constant 0 : i32
    %c0_i32_1 = arith.constant 0 : i32
    return %c0_i32, %c0_i32_0 : i32, i32
  }
  func.func @transform_6(%arg0: i32) -> (i32, i32, i32) {
    %c0_i32 = arith.constant 0 : i32
    %c0_i32_0 = arith.constant 0 : i32
    %c0_i32_1 = arith.constant 0 : i32
    %c0_i32_2 = arith.constant 0 : i32
    return %c0_i32, %c0_i32_0, %c0_i32_1 : i32, i32, i32
  }
  func.func @transform_7(%arg0: i32) -> (i32, i32) {
    %c0_i32 = arith.constant 0 : i32
    %c0_i32_0 = arith.constant 0 : i32
    %c0_i32_1 = arith.constant 0 : i32
    return %c0_i32, %c0_i32_0 : i32, i32
  }
  func.func @transform_8(%arg0: i32) -> (i32, i32) {
    %c0_i32 = arith.constant 0 : i32
    %c0_i32_0 = arith.constant 0 : i32
    %c0_i32_1 = arith.constant 0 : i32
    return %c0_i32, %c0_i32_0 : i32, i32
  }
  func.func @transform_9(%arg0: i32) -> (i32, i32) {
    %c0_i32 = arith.constant 0 : i32
    %c0_i32_0 = arith.constant 0 : i32
    %c0_i32_1 = arith.constant 0 : i32
    return %c0_i32, %c0_i32_0 : i32, i32
  }
  func.func @transform_10(%arg0: i32) -> (i32, i32) {
    %c0_i32 = arith.constant 0 : i32
    %c0_i32_0 = arith.constant 0 : i32
    %c0_i32_1 = arith.constant 0 : i32
    return %c0_i32, %c0_i32_0 : i32, i32
  }
  func.func @transform_11(%arg0: i32) -> (i32, i32) {
    %c0_i32 = arith.constant 0 : i32
    %c0_i32_0 = arith.constant 0 : i32
    %c0_i32_1 = arith.constant 0 : i32
    return %c0_i32, %c0_i32_0 : i32, i32
  }
  func.func @transform_12(%arg0: i32) -> (i32, i32, i32) {
    %c0_i32 = arith.constant 0 : i32
    %c0_i32_0 = arith.constant 0 : i32
    %c0_i32_1 = arith.constant 0 : i32
    return %arg0, %c0_i32, %c0_i32_0 : i32, i32, i32
  }
  func.func @transform_13(%arg0: i32) -> (i32, i32, i32) {
    %c0_i32 = arith.constant 0 : i32
    %c0_i32_0 = arith.constant 0 : i32
    %c0_i32_1 = arith.constant 0 : i32
    return %arg0, %c0_i32, %c0_i32_0 : i32, i32, i32
  }
}

</mosaic_0001>

<llo_original>
// kernel: model_cifar_forward.1
$region0: #{model_cifar_forward.1}
  #allocation0 [shape = 'u32[]', space=smem, size = 0x4, offset = 0x4, fixed_abs, tag = 'smem constant byte address 0x4 - core index']
  #allocation1 [shape = 'u32[144,128]{1,0:T(1,128)}', space=vmem, size = 0x12000, scoped, tag = 'internal scratch']
  #allocation2 [shape = 'f32[6,1280]{1,0:T(8,128)}', space=vmem, size = 0xa000, scoped, tag = 'scratch operand']
  #allocation3 [shape = 'f32[6,1152]{1,0:T(8,128)}', space=vmem, size = 0x9000, scoped, tag = 'scratch operand']
  #allocation4 [shape = 'f32[16,768]{1,0:T(8,128)}', space=vmem, size = 0xc000, scoped, tag = 'scratch operand']
  #allocation5 [shape = 'f32[16,640]{1,0:T(8,128)}', space=vmem, size = 0xa000, scoped, tag = 'scratch operand']
  %s0 = inlined_call_operand.vmem [shape: f32[2,3,1536], index: 0, kind: input, shape index: {}]
  %s1 = inlined_call_operand.vmem [shape: bf16[640,32], index: 1, kind: input, shape index: {}]
  %s2 = inlined_call_operand.vmem [shape: bf16[6,75], index: 2, kind: input, shape index: {}]
  %s3 = inlined_call_operand.vmem [shape: f32[6,1], index: 3, kind: input, shape index: {}]
  %s4 = inlined_call_operand.vmem [shape: bf16[16,150], index: 4, kind: input, shape index: {}]
  %s5 = inlined_call_operand.vmem [shape: f32[16,1], index: 5, kind: input, shape index: {}]
  %s6 = inlined_call_operand.vmem [shape: bf16[16,32,128], index: 6, kind: input, shape index: {}]
  %s7 = inlined_call_operand.vmem [shape: f32[1,128], index: 7, kind: input, shape index: {}]
  %s8 = inlined_call_operand.vmem [shape: bf16[128,128], index: 8, kind: input, shape index: {}]
  %s9 = inlined_call_operand.vmem [shape: f32[1,128], index: 9, kind: input, shape index: {}]
  %s10 = inlined_call_operand.vmem [shape: bf16[128,128], index: 10, kind: input, shape index: {}]
  %s11 = inlined_call_operand.vmem [shape: f32[1,128], index: 11, kind: input, shape index: {}]
  %s12 = inlined_call_operand.vmem [shape: f32[2,1,128], index: 12, kind: output, shape index: {0}]
  %s13 = inlined_call_operand.hbm [shape: f32[2,1,128], index: 13, kind: output, shape index: {1}]
  %14 = xla_tuple %s12, %s13
  %s15 = sld [smem:[#allocation0]]
  $region89: #{model_cifar_forward.1} parent=0
    _
  %s17 = ssub.s32 1, %s15
  %s18 = scalar_select 0, %s17, %s15
  $region1: #{model_cifar_forward.1} parent=0
    #allocation6 [shape = 'u8[1024]{0}', space=vmem, size = 0x400, scoped, tag = 'output window, operand 1']
    #allocation7 [shape = 's32[2]{0}', space=sflag, size = 0x8, scoped, tag = 'scoped memory for model_cifar_forward.1']
    %19 = vsyncpa [#allocation7], 0
    %s20 = scalar_lea.sflag [#allocation7], 1
    %21 = vsyncpa %s20, 0
    loop: start=0, step=1, limit=4
    $region2: #{model_cifar_forward.1} parent=1 // loop_pre_header
      _
    $region3: #{model_cifar_forward.1} parent=1 // loop_header
      %s23 = sphi 0, %s27
      %p24 = scmp.ge.s32.totalorder %s23, 4
      %s33 = sphi 0, %s35
      %s36 = sphi 0, %s33
      %s37 = sphi 0, %s36
      %s53 = sphi 0, %s37
      %s57 = sphi 0, %s57
      %s59 = sphi 0, %s57
      %s60 = sphi 0, %s59
      %s74 = sphi 0, %s60
      %s78 = sphi 0, %s78
      %s80 = sphi 0, %s78
      %s81 = sphi 0, %s80
      %s95 = sphi 0, %s81
      %s99 = sphi 0, %s99
      %s101 = sphi 0, %s99
      %s102 = sphi 0, %s101
      %s116 = sphi 0, %s102
      %s120 = sphi 0, %s120
      %s122 = sphi 0, %s120
      %s123 = sphi 0, %s122
      %s137 = sphi 0, %s123
      %s141 = sphi 0, %s141
      %s143 = sphi 0, %s141
      %s144 = sphi 0, %s143
      %s158 = sphi 0, %s144
      %s162 = sphi 0, %s162
      %s164 = sphi 0, %s162
      %s165 = sphi 0, %s164
      %s179 = sphi 0, %s165
      %s183 = sphi 0, %s183
      %s185 = sphi 0, %s183
      %s186 = sphi 0, %s185
      %s200 = sphi 0, %s186
      %s204 = sphi 0, %s204
      %s206 = sphi 0, %s204
      %s207 = sphi 0, %s206
      %s221 = sphi 0, %s207
      %s225 = sphi 0, %s225
      %s227 = sphi 0, %s225
      %s228 = sphi 0, %s227
      %s242 = sphi 0, %s228
      %s246 = sphi 0, %s246
      %s248 = sphi 0, %s246
      %s249 = sphi 0, %s248
      %s263 = sphi 0, %s249
      %s267 = sphi 0, %s267
      %s269 = sphi 0, %s267
      %s270 = sphi 0, %s269
      %s284 = sphi 0, %s270
      %s290 = sphi 0, %s292
      %s293 = sphi 0, %s290
      %s294 = sphi 0, %s293
      %s310 = sphi 0, %s294
      %s316 = sphi 0, %s318
      %s319 = sphi 0, %s316
      %s320 = sphi 0, %s319
      %s336 = sphi 0, %s320
    $region4: #{model_cifar_forward.1} parent=1 // loop_header_branch
      %26 = sbr.rel (%p24) target = $region8
    $region5: #{model_cifar_forward.1} parent=1 // loop_body
      %s28 = ssub.s32 %s23, 1
      %s29 = ssub.s32 %s23, 2
      %s30 = sadd.s32 %s23, 1
      %s31 = ssub.s32 %s23, %s30
      %p32 = scmp.eq.s32.totalorder %s31, 0
      %s34 = sadd.s32 %s33, 1
      %s35 = scalar_select %p32, %s33, %s34
      %p38 = pneg %p32
      %p39 = scmp.eq.s32.totalorder %s23, 1
      %p40 = por %p38, %p39
      %p41 = scmp.ne.s32.totalorder %s33, %s36
      %p42 = scmp.eq.s32.totalorder %s23, 0
      %p43 = por %p41, %p42
      %p44 = scmp.ne.s32.totalorder %s33, %s36
      %p45 = scmp.eq.s32.totalorder %s28, 1
      %p46 = por %p44, %p45
      %p47 = scmp.ne.s32.totalorder %s36, %s37
      %p48 = scmp.eq.s32.totalorder %s28, 0
      %p49 = por %p47, %p48
      %p50 = scmp.ne.s32.totalorder %s36, %s37
      %p51 = scmp.eq.s32.totalorder %s29, 1
      %p52 = por %p50, %p51
      %p54 = scmp.ne.s32.totalorder %s37, %s53
      %p55 = scmp.eq.s32.totalorder %s29, 0
      %p56 = por %p54, %p55
      %s58 = sadd.s32 %s57, 1
      %p61 = scmp.eq.s32.totalorder %s23, 1
      %p62 = scmp.ne.s32.totalorder %s57, %s59
      %p63 = scmp.eq.s32.totalorder %s23, 0
      %p64 = por %p62, %p63
      %p65 = scmp.ne.s32.totalorder %s57, %s59
      %p66 = scmp.eq.s32.totalorder %s28, 1
      %p67 = por %p65, %p66
      %p68 = scmp.ne.s32.totalorder %s59, %s60
      %p69 = scmp.eq.s32.totalorder %s28, 0
      %p70 = por %p68, %p69
      %p71 = scmp.ne.s32.totalorder %s59, %s60
      %p72 = scmp.eq.s32.totalorder %s29, 1
      %p73 = por %p71, %p72
      %p75 = scmp.ne.s32.totalorder %s60, %s74
      %p76 = scmp.eq.s32.totalorder %s29, 0
      %p77 = por %p75, %p76
      %s79 = sadd.s32 %s78, 1
      %p82 = scmp.eq.s32.totalorder %s23, 1
      %p83 = scmp.ne.s32.totalorder %s78, %s80
      %p84 = scmp.eq.s32.totalorder %s23, 0
      %p85 = por %p83, %p84
      %p86 = scmp.ne.s32.totalorder %s78, %s80
      %p87 = scmp.eq.s32.totalorder %s28, 1
      %p88 = por %p86, %p87
      %p89 = scmp.ne.s32.totalorder %s80, %s81
      %p90 = scmp.eq.s32.totalorder %s28, 0
      %p91 = por %p89, %p90
      %p92 = scmp.ne.s32.totalorder %s80, %s81
      %p93 = scmp.eq.s32.totalorder %s29, 1
      %p94 = por %p92, %p93
      %p96 = scmp.ne.s32.totalorder %s81, %s95
      %p97 = scmp.eq.s32.totalorder %s29, 0
      %p98 = por %p96, %p97
      %s100 = sadd.s32 %s99, 1
      %p103 = scmp.eq.s32.totalorder %s23, 1
      %p104 = scmp.ne.s32.totalorder %s99, %s101
      %p105 = scmp.eq.s32.totalorder %s23, 0
      %p106 = por %p104, %p105
      %p107 = scmp.ne.s32.totalorder %s99, %s101
      %p108 = scmp.eq.s32.totalorder %s28, 1
      %p109 = por %p107, %p108
      %p110 = scmp.ne.s32.totalorder %s101, %s102
      %p111 = scmp.eq.s32.totalorder %s28, 0
      %p112 = por %p110, %p111
      %p113 = scmp.ne.s32.totalorder %s101, %s102
      %p114 = scmp.eq.s32.totalorder %s29, 1
      %p115 = por %p113, %p114
      %p117 = scmp.ne.s32.totalorder %s102, %s116
      %p118 = scmp.eq.s32.totalorder %s29, 0
      %p119 = por %p117, %p118
      %s121 = sadd.s32 %s120, 1
      %p124 = scmp.eq.s32.totalorder %s23, 1
      %p125 = scmp.ne.s32.totalorder %s120, %s122
      %p126 = scmp.eq.s32.totalorder %s23, 0
      %p127 = por %p125, %p126
      %p128 = scmp.ne.s32.totalorder %s120, %s122
      %p129 = scmp.eq.s32.totalorder %s28, 1
      %p130 = por %p128, %p129
      %p131 = scmp.ne.s32.totalorder %s122, %s123
      %p132 = scmp.eq.s32.totalorder %s28, 0
      %p133 = por %p131, %p132
      %p134 = scmp.ne.s32.totalorder %s122, %s123
      %p135 = scmp.eq.s32.totalorder %s29, 1
      %p136 = por %p134, %p135
      %p138 = scmp.ne.s32.totalorder %s123, %s137
      %p139 = scmp.eq.s32.totalorder %s29, 0
      %p140 = por %p138, %p139
      %s142 = sadd.s32 %s141, 1
      %p145 = scmp.eq.s32.totalorder %s23, 1
      %p146 = scmp.ne.s32.totalorder %s141, %s143
      %p147 = scmp.eq.s32.totalorder %s23, 0
      %p148 = por %p146, %p147
      %p149 = scmp.ne.s32.totalorder %s141, %s143
      %p150 = scmp.eq.s32.totalorder %s28, 1
      %p151 = por %p149, %p150
      %p152 = scmp.ne.s32.totalorder %s143, %s144
      %p153 = scmp.eq.s32.totalorder %s28, 0
      %p154 = por %p152, %p153
      %p155 = scmp.ne.s32.totalorder %s143, %s144
      %p156 = scmp.eq.s32.totalorder %s29, 1
      %p157 = por %p155, %p156
      %p159 = scmp.ne.s32.totalorder %s144, %s158
      %p160 = scmp.eq.s32.totalorder %s29, 0
      %p161 = por %p159, %p160
      %s163 = sadd.s32 %s162, 1
      %p166 = scmp.eq.s32.totalorder %s23, 1
      %p167 = scmp.ne.s32.totalorder %s162, %s164
      %p168 = scmp.eq.s32.totalorder %s23, 0
      %p169 = por %p167, %p168
      %p170 = scmp.ne.s32.totalorder %s162, %s164
      %p171 = scmp.eq.s32.totalorder %s28, 1
      %p172 = por %p170, %p171
      %p173 = scmp.ne.s32.totalorder %s164, %s165
      %p174 = scmp.eq.s32.totalorder %s28, 0
      %p175 = por %p173, %p174
      %p176 = scmp.ne.s32.totalorder %s164, %s165
      %p177 = scmp.eq.s32.totalorder %s29, 1
      %p178 = por %p176, %p177
      %p180 = scmp.ne.s32.totalorder %s165, %s179
      %p181 = scmp.eq.s32.totalorder %s29, 0
      %p182 = por %p180, %p181
      %s184 = sadd.s32 %s183, 1
      %p187 = scmp.eq.s32.totalorder %s23, 1
      %p188 = scmp.ne.s32.totalorder %s183, %s185
      %p189 = scmp.eq.s32.totalorder %s23, 0
      %p190 = por %p188, %p189
      %p191 = scmp.ne.s32.totalorder %s183, %s185
      %p192 = scmp.eq.s32.totalorder %s28, 1
      %p193 = por %p191, %p192
      %p194 = scmp.ne.s32.totalorder %s185, %s186
      %p195 = scmp.eq.s32.totalorder %s28, 0
      %p196 = por %p194, %p195
      %p197 = scmp.ne.s32.totalorder %s185, %s186
      %p198 = scmp.eq.s32.totalorder %s29, 1
      %p199 = por %p197, %p198
      %p201 = scmp.ne.s32.totalorder %s186, %s200
      %p202 = scmp.eq.s32.totalorder %s29, 0
      %p203 = por %p201, %p202
      %s205 = sadd.s32 %s204, 1
      %p208 = scmp.eq.s32.totalorder %s23, 1
      %p209 = scmp.ne.s32.totalorder %s204, %s206
      %p210 = scmp.eq.s32.totalorder %s23, 0
      %p211 = por %p209, %p210
      %p212 = scmp.ne.s32.totalorder %s204, %s206
      %p213 = scmp.eq.s32.totalorder %s28, 1
      %p214 = por %p212, %p213
      %p215 = scmp.ne.s32.totalorder %s206, %s207
      %p216 = scmp.eq.s32.totalorder %s28, 0
      %p217 = por %p215, %p216
      %p218 = scmp.ne.s32.totalorder %s206, %s207
      %p219 = scmp.eq.s32.totalorder %s29, 1
      %p220 = por %p218, %p219
      %p222 = scmp.ne.s32.totalorder %s207, %s221
      %p223 = scmp.eq.s32.totalorder %s29, 0
      %p224 = por %p222, %p223
      %s226 = sadd.s32 %s225, 1
      %p229 = scmp.eq.s32.totalorder %s23, 1
      %p230 = scmp.ne.s32.totalorder %s225, %s227
      %p231 = scmp.eq.s32.totalorder %s23, 0
      %p232 = por %p230, %p231
      %p233 = scmp.ne.s32.totalorder %s225, %s227
      %p234 = scmp.eq.s32.totalorder %s28, 1
      %p235 = por %p233, %p234
      %p236 = scmp.ne.s32.totalorder %s227, %s228
      %p237 = scmp.eq.s32.totalorder %s28, 0
      %p238 = por %p236, %p237
      %p239 = scmp.ne.s32.totalorder %s227, %s228
      %p240 = scmp.eq.s32.totalorder %s29, 1
      %p241 = por %p239, %p240
      %p243 = scmp.ne.s32.totalorder %s228, %s242
      %p244 = scmp.eq.s32.totalorder %s29, 0
      %p245 = por %p243, %p244
      %s247 = sadd.s32 %s246, 1
      %p250 = scmp.eq.s32.totalorder %s23, 1
      %p251 = scmp.ne.s32.totalorder %s246, %s248
      %p252 = scmp.eq.s32.totalorder %s23, 0
      %p253 = por %p251, %p252
      %p254 = scmp.ne.s32.totalorder %s246, %s248
      %p255 = scmp.eq.s32.totalorder %s28, 1
      %p256 = por %p254, %p255
      %p257 = scmp.ne.s32.totalorder %s248, %s249
      %p258 = scmp.eq.s32.totalorder %s28, 0
      %p259 = por %p257, %p258
      %p260 = scmp.ne.s32.totalorder %s248, %s249
      %p261 = scmp.eq.s32.totalorder %s29, 1
      %p262 = por %p260, %p261
      %p264 = scmp.ne.s32.totalorder %s249, %s263
      %p265 = scmp.eq.s32.totalorder %s29, 0
      %p266 = por %p264, %p265
      %s268 = sadd.s32 %s267, 1
      %p271 = scmp.eq.s32.totalorder %s23, 1
      %p272 = scmp.ne.s32.totalorder %s267, %s269
      %p273 = scmp.eq.s32.totalorder %s23, 0
      %p274 = por %p272, %p273
      %p275 = scmp.ne.s32.totalorder %s267, %s269
      %p276 = scmp.eq.s32.totalorder %s28, 1
      %p277 = por %p275, %p276
      %p278 = scmp.ne.s32.totalorder %s269, %s270
      %p279 = scmp.eq.s32.totalorder %s28, 0
      %p280 = por %p278, %p279
      %p281 = scmp.ne.s32.totalorder %s269, %s270
      %p282 = scmp.eq.s32.totalorder %s29, 1
      %p283 = por %p281, %p282
      %p285 = scmp.ne.s32.totalorder %s270, %s284
      %p286 = scmp.eq.s32.totalorder %s29, 0
      %p287 = por %p285, %p286
      %s288 = ssub.s32 %s23, %s30
      %p289 = scmp.eq.s32.totalorder %s288, 0
      %s291 = sadd.s32 %s290, 1
      %s292 = scalar_select %p289, %s290, %s291
      %p295 = pneg %p289
      %p296 = scmp.eq.s32.totalorder %s23, 1
      %p297 = por %p295, %p296
      %p298 = scmp.ne.s32.totalorder %s290, %s293
      %p299 = scmp.eq.s32.totalorder %s23, 0
      %p300 = por %p298, %p299
      %p301 = scmp.ne.s32.totalorder %s290, %s293
      %p302 = scmp.eq.s32.totalorder %s28, 1
      %p303 = por %p301, %p302
      %p304 = scmp.ne.s32.totalorder %s293, %s294
      %p305 = scmp.eq.s32.totalorder %s28, 0
      %p306 = por %p304, %p305
      %p307 = scmp.ne.s32.totalorder %s293, %s294
      %p308 = scmp.eq.s32.totalorder %s29, 1
      %p309 = por %p307, %p308
      %p311 = scmp.ne.s32.totalorder %s294, %s310
      %p312 = scmp.eq.s32.totalorder %s29, 0
      %p313 = por %p311, %p312
      %s314 = ssub.s32 %s23, %s30
      %p315 = scmp.eq.s32.totalorder %s314, 0
      %s317 = sadd.s32 %s316, 1
      %s318 = scalar_select %p315, %s316, %s317
      %p321 = pneg %p315
      %p322 = scmp.eq.s32.totalorder %s23, 1
      %p323 = por %p321, %p322
      %p324 = scmp.ne.s32.totalorder %s316, %s319
      %p325 = scmp.eq.s32.totalorder %s23, 0
      %p326 = por %p324, %p325
      %p327 = scmp.ne.s32.totalorder %s316, %s319
      %p328 = scmp.eq.s32.totalorder %s28, 1
      %p329 = por %p327, %p328
      %p330 = scmp.ne.s32.totalorder %s319, %s320
      %p331 = scmp.eq.s32.totalorder %s28, 0
      %p332 = por %p330, %p331
      %p333 = scmp.ne.s32.totalorder %s319, %s320
      %p334 = scmp.eq.s32.totalorder %s29, 1
      %p335 = por %p333, %p334
      %p337 = scmp.ne.s32.totalorder %s320, %s336
      %p338 = scmp.eq.s32.totalorder %s29, 0
      %p339 = por %p337, %p338
      %p340 = scmp.le.s32.totalorder 1, %s23
      %p341 = scmp.lt.s32.totalorder %s23, 3
      %p342 = pnand %p340, %p341
      %p343 = pneg %p342
      // Predicated region
      $region9: #{model_cifar_forward.1} parent=5 // pred_check
        _
      $region10: #{model_cifar_forward.1} parent=5 // pred_check_branch
        %345 = sbr.rel (%p342) target = $region12
      $region11: #{model_cifar_forward.1} parent=5 // pred_region
        %s346 = ssub.s32 %s23, 1
        // Predicated region
        $region13: #{model_cifar_forward.1} parent=11 // pred_check
          %p347 = pneg %p70
        $region14: #{model_cifar_forward.1} parent=11 // pred_check_branch
          %349 = sbr.rel (%p347) target = $region16
        $region15: #{model_cifar_forward.1} parent=11 // pred_region
          _
        $region16: #{model_cifar_forward.1} parent=11 // pred_fallthru
          _
        // Predicated region
        $region17: #{model_cifar_forward.1} parent=11 // pred_check
          %p350 = pneg %p91
        $region18: #{model_cifar_forward.1} parent=11 // pred_check_branch
          %352 = sbr.rel (%p350) target = $region20
        $region19: #{model_cifar_forward.1} parent=11 // pred_region
          _
        $region20: #{model_cifar_forward.1} parent=11 // pred_fallthru
          _
        // Predicated region
        $region21: #{model_cifar_forward.1} parent=11 // pred_check
          %p353 = pneg %p112
        $region22: #{model_cifar_forward.1} parent=11 // pred_check_branch
          %355 = sbr.rel (%p353) target = $region24
        $region23: #{model_cifar_forward.1} parent=11 // pred_region
          _
        $region24: #{model_cifar_forward.1} parent=11 // pred_fallthru
          _
        // Predicated region
        $region25: #{model_cifar_forward.1} parent=11 // pred_check
          %p356 = pneg %p133
        $region26: #{model_cifar_forward.1} parent=11 // pred_check_branch
          %358 = sbr.rel (%p356) target = $region28
        $region27: #{model_cifar_forward.1} parent=11 // pred_region
          _
        $region28: #{model_cifar_forward.1} parent=11 // pred_fallthru
          _
        // Predicated region
        $region29: #{model_cifar_forward.1} parent=11 // pred_check
          %p359 = pneg %p154
        $region30: #{model_cifar_forward.1} parent=11 // pred_check_branch
          %361 = sbr.rel (%p359) target = $region32
        $region31: #{model_cifar_forward.1} parent=11 // pred_region
          _
        $region32: #{model_cifar_forward.1} parent=11 // pred_fallthru
          _
        // Predicated region
        $region33: #{model_cifar_forward.1} parent=11 // pred_check
          %p362 = pneg %p175
        $region34: #{model_cifar_forward.1} parent=11 // pred_check_branch
          %364 = sbr.rel (%p362) target = $region36
        $region35: #{model_cifar_forward.1} parent=11 // pred_region
          _
        $region36: #{model_cifar_forward.1} parent=11 // pred_fallthru
          _
        // Predicated region
        $region37: #{model_cifar_forward.1} parent=11 // pred_check
          %p365 = pneg %p196
        $region38: #{model_cifar_forward.1} parent=11 // pred_check_branch
          %367 = sbr.rel (%p365) target = $region40
        $region39: #{model_cifar_forward.1} parent=11 // pred_region
          _
        $region40: #{model_cifar_forward.1} parent=11 // pred_fallthru
          _
        // Predicated region
        $region41: #{model_cifar_forward.1} parent=11 // pred_check
          %p368 = pneg %p217
        $region42: #{model_cifar_forward.1} parent=11 // pred_check_branch
          %370 = sbr.rel (%p368) target = $region44
        $region43: #{model_cifar_forward.1} parent=11 // pred_region
          _
        $region44: #{model_cifar_forward.1} parent=11 // pred_fallthru
          _
        // Predicated region
        $region45: #{model_cifar_forward.1} parent=11 // pred_check
          %p371 = pneg %p238
        $region46: #{model_cifar_forward.1} parent=11 // pred_check_branch
          %373 = sbr.rel (%p371) target = $region48
        $region47: #{model_cifar_forward.1} parent=11 // pred_region
          _
        $region48: #{model_cifar_forward.1} parent=11 // pred_fallthru
          _
        // Predicated region
        $region49: #{model_cifar_forward.1} parent=11 // pred_check
          %p374 = pneg %p259
        $region50: #{model_cifar_forward.1} parent=11 // pred_check_branch
          %376 = sbr.rel (%p374) target = $region52
        $region51: #{model_cifar_forward.1} parent=11 // pred_region
          _
        $region52: #{model_cifar_forward.1} parent=11 // pred_fallthru
          _
        // Predicated region
        $region53: #{model_cifar_forward.1} parent=11 // pred_check
          %p377 = pneg %p280
        $region54: #{model_cifar_forward.1} parent=11 // pred_check_branch
          %379 = sbr.rel (%p377) target = $region56
        $region55: #{model_cifar_forward.1} parent=11 // pred_region
          _
        $region56: #{model_cifar_forward.1} parent=11 // pred_fallthru
          _
      $region12: #{model_cifar_forward.1} parent=5 // pred_fallthru
        _
      %p380 = scmp.lt.s32.totalorder %s23, 2
      // Predicated region
      $region57: #{model_cifar_forward.1} parent=5 // pred_check
        %p381 = pneg %p380
      $region58: #{model_cifar_forward.1} parent=5 // pred_check_branch
        %383 = sbr.rel (%p381) target = $region60
      $region59: #{model_cifar_forward.1} parent=5 // pred_region
        // Predicated region
        $region61: #{model_cifar_forward.1} parent=59 // pred_check
          %p384 = pneg %p43
        $region62: #{model_cifar_forward.1} parent=59 // pred_check_branch
          %386 = sbr.rel (%p384) target = $region64
        $region63: #{model_cifar_forward.1} parent=59 // pred_region
          %p387 = scmp.lt.s32.totalorder %s23, 1
          %s388 = scalar_select %p387, %s23, 1
          %s389 = smul.addr %s388, 12
          %s390 = smul.addr %s389, 4
          %s391 = scalar_lea.vmem %s0, %s390
        $region64: #{model_cifar_forward.1} parent=59 // pred_fallthru
          _
      $region60: #{model_cifar_forward.1} parent=5 // pred_fallthru
        _
      %p392 = scmp.le.s32.totalorder 1, %s23
      %p393 = scmp.lt.s32.totalorder %s23, 3
      %p394 = pnand %p392, %p393
      %p395 = pneg %p394
      // Predicated region
      $region65: #{model_cifar_forward.1} parent=5 // pred_check
        _
      $region66: #{model_cifar_forward.1} parent=5 // pred_check_branch
        %397 = sbr.rel (%p394) target = $region68
      $region67: #{model_cifar_forward.1} parent=5 // pred_region
        %s398 = ssub.s32 %s23, 1
        %p399 = scmp.lt.s32.totalorder %s28, 1
        %s400 = scalar_select %p399, %s28, 1
        %s401 = smul.addr %s400, 12
        %s402 = smul.addr %s401, 4
        %s403 = scalar_lea.vmem %s0, %s402
        %p404 = pneg %p49
        %p405 = pneg %p46
        %p406 = pneg %p70
        %p407 = pneg %p67
        %p408 = pneg %p91
        %p409 = pneg %p88
        %p410 = pneg %p112
        %p411 = pneg %p109
        %p412 = pneg %p133
        %p413 = pneg %p130
        %p414 = pneg %p154
        %p415 = pneg %p151
        %p416 = pneg %p175
        %p417 = pneg %p172
        %p418 = pneg %p196
        %p419 = pneg %p193
        %p420 = pneg %p217
        %p421 = pneg %p214
        %p422 = pneg %p238
        %p423 = pneg %p235
        %p424 = pneg %p259
        %p425 = pneg %p256
        %p426 = pneg %p280
        %p427 = pneg %p277
        %p428 = pneg %p306
        %p429 = pneg %p303
        %p430 = scmp.lt.s32.totalorder %s28, 1
        %s431 = scalar_select %p430, %s28, 1
        %s432 = scalar_lea.vmem %s12, %s431
        %p433 = pneg %p332
        %p434 = pneg %p329
        %s435 = sand.u32 %s319, 1
        %s436 = scalar_lea.sflag [#allocation7], %s435
        %s437 = sand.u32 %s319, 1
        %s438 = scalar_lea.vmem [#allocation6], %s437
        %p439 = scmp.lt.s32.totalorder %s28, 1
        %s440 = scalar_select %p439, %s28, 1
        %s441 = smul.addr %s440, 12
        %s442 = smul.addr %s441, 4
        %s443 = scalar_lea.vmem %s0, %s442
        %p444 = scmp.lt.s32.totalorder %s28, 1
        %s445 = scalar_select %p444, %s28, 1
        %s446 = scalar_lea.vmem %s12, %s445
        %v448 = vld [vmem:[%s443] sm:$0x77]
        %v449 = vld [vmem:[%s443 + $0x8] sm:$0x77]
        %v450 = vld [vmem:[%s443 + $0x10] sm:$0x77]
        %v451 = vld [vmem:[%s443 + $0x18] sm:$0x77]
        %v452 = vld [vmem:[%s443 + $0x20] sm:$0x77]
        %v453 = vld [vmem:[%s443 + $0x28] sm:$0x7]
        %v454 = vld [vmem:[%s443 + $0x4] sm:$0x77]
        %v455 = vld [vmem:[%s443 + $0xc] sm:$0x77]
        %v456 = vld [vmem:[%s443 + $0x14] sm:$0x77]
        %v457 = vld [vmem:[%s443 + $0x1c] sm:$0x77]
        %v458 = vld [vmem:[%s443 + $0x24] sm:$0x77]
        %v459 = vld [vmem:[%s443 + $0x2c] sm:$0x7]
        %v465 = vcombine.high %v448, %v448
        %v466 = vcombine.high %v449, %v449
        %v467 = vcombine.high %v450, %v450
        %v468 = vcombine.high %v451, %v451
        %v469 = vcombine.high %v452, %v452
        %v476 = vrot.slane %v448, 5
        %v477 = vrot.slane %v465, 5
        %v478 = vrot.slane %v449, 5
        %v479 = vrot.slane %v466, 5
        %v480 = vrot.slane %v450, 5
        %v481 = vrot.slane %v467, 5
        %v482 = vrot.slane %v451, 5
        %v483 = vrot.slane %v468, 5
        %v484 = vrot.slane %v452, 5
        %v485 = vrot.slane %v469, 5
        %v486 = vrot.slane %v453, 5
        %487 = vrot.lane.b32.xlu0 %v476, 127
        %v488 = vpop.permute.xlu0 %487
        %489 = vrot.lane.b32.xlu0 %v477, 127
        %v490 = vpop.permute.xlu0 %489
        %491 = vrot.lane.b32.xlu0 %v478, 127
        %v492 = vpop.permute.xlu0 %491
        %493 = vrot.lane.b32.xlu0 %v479, 127
        %v494 = vpop.permute.xlu0 %493
        %495 = vrot.lane.b32.xlu0 %v480, 127
        %v496 = vpop.permute.xlu0 %495
        %497 = vrot.lane.b32.xlu0 %v481, 127
        %v498 = vpop.permute.xlu0 %497
        %499 = vrot.lane.b32.xlu0 %v482, 127
        %v500 = vpop.permute.xlu0 %499
        %501 = vrot.lane.b32.xlu0 %v483, 127
        %v502 = vpop.permute.xlu0 %501
        %503 = vrot.lane.b32.xlu0 %v484, 127
        %v504 = vpop.permute.xlu0 %503
        %505 = vrot.lane.b32.xlu0 %v485, 127
        %v506 = vpop.permute.xlu0 %505
        %507 = vrot.lane.b32.xlu0 %v486, 127
        %v508 = vpop.permute.xlu0 %507
        %vm509 = vcmask 1039360
        %v510 = vsel %vm509, %v488, %v490
        %v511 = vsel %vm509, %v490, %v492
        %v512 = vsel %vm509, %v492, %v494
        %v513 = vsel %vm509, %v494, %v496
        %v514 = vsel %vm509, %v496, %v498
        %v515 = vsel %vm509, %v498, %v500
        %v516 = vsel %vm509, %v500, %v502
        %v517 = vsel %vm509, %v502, %v504
        %v518 = vsel %vm509, %v504, %v506
        %v519 = vsel %vm509, %v506, %v508
        %v530 = vrot.slane %v448, 2
        %v531 = vrot.slane %v465, 2
        %v532 = vrot.slane %v449, 2
        %v533 = vrot.slane %v466, 2
        %v534 = vrot.slane %v450, 2
        %v535 = vrot.slane %v467, 2
        %v536 = vrot.slane %v451, 2
        %v537 = vrot.slane %v468, 2
        %v538 = vrot.slane %v452, 2
        %v539 = vrot.slane %v469, 2
        %v540 = vrot.slane %v453, 2
        %541 = vrot.lane.b32.xlu0 %v530, 126
        %v542 = vpop.permute.xlu0 %541
        %543 = vrot.lane.b32.xlu0 %v531, 126
        %v544 = vpop.permute.xlu0 %543
        %545 = vrot.lane.b32.xlu0 %v532, 126
        %v546 = vpop.permute.xlu0 %545
        %547 = vrot.lane.b32.xlu0 %v533, 126
        %v548 = vpop.permute.xlu0 %547
        %549 = vrot.lane.b32.xlu0 %v534, 126
        %v550 = vpop.permute.xlu0 %549
        %551 = vrot.lane.b32.xlu0 %v535, 126
        %v552 = vpop.permute.xlu0 %551
        %553 = vrot.lane.b32.xlu0 %v536, 126
        %v554 = vpop.permute.xlu0 %553
        %555 = vrot.lane.b32.xlu0 %v537, 126
        %v556 = vpop.permute.xlu0 %555
        %557 = vrot.lane.b32.xlu0 %v538, 126
        %v558 = vpop.permute.xlu0 %557
        %559 = vrot.lane.b32.xlu0 %v539, 126
        %v560 = vpop.permute.xlu0 %559
        %561 = vrot.lane.b32.xlu0 %v540, 126
        %v562 = vpop.permute.xlu0 %561
        %vm563 = vcmask 1031168
        %v564 = vsel %vm563, %v542, %v544
        %v565 = vsel %vm563, %v544, %v546
        %v566 = vsel %vm563, %v546, %v548
        %v567 = vsel %vm563, %v548, %v550
        %v568 = vsel %vm563, %v550, %v552
        %v569 = vsel %vm563, %v552, %v554
        %v570 = vsel %vm563, %v554, %v556
        %v571 = vsel %vm563, %v556, %v558
        %v572 = vsel %vm563, %v558, %v560
        %v573 = vsel %vm563, %v560, %v562
        %v584 = vrot.slane %v448, 7
        %v585 = vrot.slane %v465, 7
        %v586 = vrot.slane %v449, 7
        %v587 = vrot.slane %v466, 7
        %v588 = vrot.slane %v450, 7
        %v589 = vrot.slane %v467, 7
        %v590 = vrot.slane %v451, 7
        %v591 = vrot.slane %v468, 7
        %v592 = vrot.slane %v452, 7
        %v593 = vrot.slane %v469, 7
        %v594 = vrot.slane %v453, 7
        %595 = vrot.lane.b32.xlu0 %v584, 125
        %v596 = vpop.permute.xlu0 %595
        %597 = vrot.lane.b32.xlu0 %v585, 125
        %v598 = vpop.permute.xlu0 %597
        %599 = vrot.lane.b32.xlu0 %v586, 125
        %v600 = vpop.permute.xlu0 %599
        %601 = vrot.lane.b32.xlu0 %v587, 125
        %v602 = vpop.permute.xlu0 %601
        %603 = vrot.lane.b32.xlu0 %v588, 125
        %v604 = vpop.permute.xlu0 %603
        %605 = vrot.lane.b32.xlu0 %v589, 125
        %v606 = vpop.permute.xlu0 %605
        %607 = vrot.lane.b32.xlu0 %v590, 125
        %v608 = vpop.permute.xlu0 %607
        %609 = vrot.lane.b32.xlu0 %v591, 125
        %v610 = vpop.permute.xlu0 %609
        %611 = vrot.lane.b32.xlu0 %v592, 125
        %v612 = vpop.permute.xlu0 %611
        %613 = vrot.lane.b32.xlu0 %v593, 125
        %v614 = vpop.permute.xlu0 %613
        %615 = vrot.lane.b32.xlu0 %v594, 125
        %v616 = vpop.permute.xlu0 %615
        %vm617 = vcmask 1022976
        %v618 = vsel %vm617, %v596, %v598
        %v619 = vsel %vm617, %v598, %v600
        %v620 = vsel %vm617, %v600, %v602
        %v621 = vsel %vm617, %v602, %v604
        %v622 = vsel %vm617, %v604, %v606
        %v623 = vsel %vm617, %v606, %v608
        %v624 = vsel %vm617, %v608, %v610
        %v625 = vsel %vm617, %v610, %v612
        %v626 = vsel %vm617, %v612, %v614
        %v627 = vsel %vm617, %v614, %v616
        %v638 = vcombine.low %v448, %v448
        %v639 = vcombine.low %v449, %v449
        %v640 = vcombine.low %v450, %v450
        %v641 = vcombine.low %v451, %v451
        %v642 = vcombine.low %v452, %v452
        %v643 = vcombine.low %v453, %v453
        %644 = vrot.lane.b32.xlu0 %v638, 124
        %v645 = vpop.permute.xlu0 %644
        %646 = vrot.lane.b32.xlu0 %v448, 124
        %v647 = vpop.permute.xlu0 %646
        %648 = vrot.lane.b32.xlu0 %v639, 124
        %v649 = vpop.permute.xlu0 %648
        %650 = vrot.lane.b32.xlu0 %v449, 124
        %v651 = vpop.permute.xlu0 %650
        %652 = vrot.lane.b32.xlu0 %v640, 124
        %v653 = vpop.permute.xlu0 %652
        %654 = vrot.lane.b32.xlu0 %v450, 124
        %v655 = vpop.permute.xlu0 %654
        %656 = vrot.lane.b32.xlu0 %v641, 124
        %v657 = vpop.permute.xlu0 %656
        %658 = vrot.lane.b32.xlu0 %v451, 124
        %v659 = vpop.permute.xlu0 %658
        %660 = vrot.lane.b32.xlu0 %v642, 124
        %v661 = vpop.permute.xlu0 %660
        %662 = vrot.lane.b32.xlu0 %v452, 124
        %v663 = vpop.permute.xlu0 %662
        %664 = vrot.lane.b32.xlu0 %v643, 124
        %v665 = vpop.permute.xlu0 %664
        %vm666 = vcmask 1014784
        %v667 = vsel %vm666, %v645, %v647
        %v668 = vsel %vm666, %v647, %v649
        %v669 = vsel %vm666, %v649, %v651
        %v670 = vsel %vm666, %v651, %v653
        %v671 = vsel %vm666, %v653, %v655
        %v672 = vsel %vm666, %v655, %v657
        %v673 = vsel %vm666, %v657, %v659
        %v674 = vsel %vm666, %v659, %v661
        %v675 = vsel %vm666, %v661, %v663
        %v676 = vsel %vm666, %v663, %v665
        %v687 = vrot.slane %v448, 1
        %v688 = vrot.slane %v465, 1
        %v689 = vrot.slane %v449, 1
        %v690 = vrot.slane %v466, 1
        %v691 = vrot.slane %v450, 1
        %v692 = vrot.slane %v467, 1
        %v693 = vrot.slane %v451, 1
        %v694 = vrot.slane %v468, 1
        %v695 = vrot.slane %v452, 1
        %v696 = vrot.slane %v469, 1
        %v697 = vrot.slane %v453, 1
        %698 = vrot.lane.b32.xlu0 %v687, 96
        %v699 = vpop.permute.xlu0 %698
        %700 = vrot.lane.b32.xlu0 %v688, 96
        %v701 = vpop.permute.xlu0 %700
        %702 = vrot.lane.b32.xlu0 %v689, 96
        %v703 = vpop.permute.xlu0 %702
        %704 = vrot.lane.b32.xlu0 %v690, 96
        %v705 = vpop.permute.xlu0 %704
        %706 = vrot.lane.b32.xlu0 %v691, 96
        %v707 = vpop.permute.xlu0 %706
        %708 = vrot.lane.b32.xlu0 %v692, 96
        %v709 = vpop.permute.xlu0 %708
        %710 = vrot.lane.b32.xlu0 %v693, 96
        %v711 = vpop.permute.xlu0 %710
        %712 = vrot.lane.b32.xlu0 %v694, 96
        %v713 = vpop.permute.xlu0 %712
        %714 = vrot.lane.b32.xlu0 %v695, 96
        %v715 = vpop.permute.xlu0 %714
        %716 = vrot.lane.b32.xlu0 %v696, 96
        %v717 = vpop.permute.xlu0 %716
        %718 = vrot.lane.b32.xlu0 %v697, 96
        %v719 = vpop.permute.xlu0 %718
        %vm720 = vcmask 785408
        %v721 = vsel %vm720, %v699, %v701
        %v722 = vsel %vm720, %v701, %v703
        %v723 = vsel %vm720, %v703, %v705
        %v724 = vsel %vm720, %v705, %v707
        %v725 = vsel %vm720, %v707, %v709
        %v726 = vsel %vm720, %v709, %v711
        %v727 = vsel %vm720, %v711, %v713
        %v728 = vsel %vm720, %v713, %v715
        %v729 = vsel %vm720, %v715, %v717
        %v730 = vsel %vm720, %v717, %v719
        %v741 = vrot.slane %v448, 6
        %v742 = vrot.slane %v465, 6
        %v743 = vrot.slane %v449, 6
        %v744 = vrot.slane %v466, 6
        %v745 = vrot.slane %v450, 6
        %v746 = vrot.slane %v467, 6
        %v747 = vrot.slane %v451, 6
        %v748 = vrot.slane %v468, 6
        %v749 = vrot.slane %v452, 6
        %v750 = vrot.slane %v469, 6
        %v751 = vrot.slane %v453, 6
        %752 = vrot.lane.b32.xlu0 %v741, 95
        %v753 = vpop.permute.xlu0 %752
        %754 = vrot.lane.b32.xlu0 %v742, 95
        %v755 = vpop.permute.xlu0 %754
        %756 = vrot.lane.b32.xlu0 %v743, 95
        %v757 = vpop.permute.xlu0 %756
        %758 = vrot.lane.b32.xlu0 %v744, 95
        %v759 = vpop.permute.xlu0 %758
        %760 = vrot.lane.b32.xlu0 %v745, 95
        %v761 = vpop.permute.xlu0 %760
        %762 = vrot.lane.b32.xlu0 %v746, 95
        %v763 = vpop.permute.xlu0 %762
        %764 = vrot.lane.b32.xlu0 %v747, 95
        %v765 = vpop.permute.xlu0 %764
        %766 = vrot.lane.b32.xlu0 %v748, 95
        %v767 = vpop.permute.xlu0 %766
        %768 = vrot.lane.b32.xlu0 %v749, 95
        %v769 = vpop.permute.xlu0 %768
        %770 = vrot.lane.b32.xlu0 %v750, 95
        %v771 = vpop.permute.xlu0 %770
        %772 = vrot.lane.b32.xlu0 %v751, 95
        %v773 = vpop.permute.xlu0 %772
        %vm774 = vcmask 777216
        %v775 = vsel %vm774, %v753, %v755
        %v776 = vsel %vm774, %v755, %v757
        %v777 = vsel %vm774, %v757, %v759
        %v778 = vsel %vm774, %v759, %v761
        %v779 = vsel %vm774, %v761, %v763
        %v780 = vsel %vm774, %v763, %v765
        %v781 = vsel %vm774, %v765, %v767
        %v782 = vsel %vm774, %v767, %v769
        %v783 = vsel %vm774, %v769, %v771
        %v784 = vsel %vm774, %v771, %v773
        %v795 = vrot.slane %v448, 3
        %v796 = vrot.slane %v465, 3
        %v797 = vrot.slane %v449, 3
        %v798 = vrot.slane %v466, 3
        %v799 = vrot.slane %v450, 3
        %v800 = vrot.slane %v467, 3
        %v801 = vrot.slane %v451, 3
        %v802 = vrot.slane %v468, 3
        %v803 = vrot.slane %v452, 3
        %v804 = vrot.slane %v469, 3
        %v805 = vrot.slane %v453, 3
        %806 = vrot.lane.b32.xlu0 %v795, 94
        %v807 = vpop.permute.xlu0 %806
        %808 = vrot.lane.b32.xlu0 %v796, 94
        %v809 = vpop.permute.xlu0 %808
        %810 = vrot.lane.b32.xlu0 %v797, 94
        %v811 = vpop.permute.xlu0 %810
        %812 = vrot.lane.b32.xlu0 %v798, 94
        %v813 = vpop.permute.xlu0 %812
        %814 = vrot.lane.b32.xlu0 %v799, 94
        %v815 = vpop.permute.xlu0 %814
        %816 = vrot.lane.b32.xlu0 %v800, 94
        %v817 = vpop.permute.xlu0 %816
        %818 = vrot.lane.b32.xlu0 %v801, 94
        %v819 = vpop.permute.xlu0 %818
        %820 = vrot.lane.b32.xlu0 %v802, 94
        %v821 = vpop.permute.xlu0 %820
        %822 = vrot.lane.b32.xlu0 %v803, 94
        %v823 = vpop.permute.xlu0 %822
        %824 = vrot.lane.b32.xlu0 %v804, 94
        %v825 = vpop.permute.xlu0 %824
        %826 = vrot.lane.b32.xlu0 %v805, 94
        %v827 = vpop.permute.xlu0 %826
        %vm828 = vcmask 769024
        %v829 = vsel %vm828, %v807, %v809
        %v830 = vsel %vm828, %v809, %v811
        %v831 = vsel %vm828, %v811, %v813
        %v832 = vsel %vm828, %v813, %v815
        %v833 = vsel %vm828, %v815, %v817
        %v834 = vsel %vm828, %v817, %v819
        %v835 = vsel %vm828, %v819, %v821
        %v836 = vsel %vm828, %v821, %v823
        %v837 = vsel %vm828, %v823, %v825
        %v838 = vsel %vm828, %v825, %v827
        %849 = vrot.lane.b32.xlu0 %v448, 93
        %v850 = vpop.permute.xlu0 %849
        %851 = vrot.lane.b32.xlu0 %v465, 93
        %v852 = vpop.permute.xlu0 %851
        %853 = vrot.lane.b32.xlu0 %v449, 93
        %v854 = vpop.permute.xlu0 %853
        %855 = vrot.lane.b32.xlu0 %v466, 93
        %v856 = vpop.permute.xlu0 %855
        %857 = vrot.lane.b32.xlu0 %v450, 93
        %v858 = vpop.permute.xlu0 %857
        %859 = vrot.lane.b32.xlu0 %v467, 93
        %v860 = vpop.permute.xlu0 %859
        %861 = vrot.lane.b32.xlu0 %v451, 93
        %v862 = vpop.permute.xlu0 %861
        %863 = vrot.lane.b32.xlu0 %v468, 93
        %v864 = vpop.permute.xlu0 %863
        %865 = vrot.lane.b32.xlu0 %v452, 93
        %v866 = vpop.permute.xlu0 %865
        %867 = vrot.lane.b32.xlu0 %v469, 93
        %v868 = vpop.permute.xlu0 %867
        %869 = vrot.lane.b32.xlu0 %v453, 93
        %v870 = vpop.permute.xlu0 %869
        %vm871 = vcmask 760832
        %v872 = vsel %vm871, %v850, %v852
        %v873 = vsel %vm871, %v852, %v854
        %v874 = vsel %vm871, %v854, %v856
        %v875 = vsel %vm871, %v856, %v858
        %v876 = vsel %vm871, %v858, %v860
        %v877 = vsel %vm871, %v860, %v862
        %v878 = vsel %vm871, %v862, %v864
        %v879 = vsel %vm871, %v864, %v866
        %v880 = vsel %vm871, %v866, %v868
        %v881 = vsel %vm871, %v868, %v870
        %892 = vrot.lane.b32.xlu0 %v476, 92
        %v893 = vpop.permute.xlu0 %892
        %894 = vrot.lane.b32.xlu0 %v477, 92
        %v895 = vpop.permute.xlu0 %894
        %896 = vrot.lane.b32.xlu0 %v478, 92
        %v897 = vpop.permute.xlu0 %896
        %898 = vrot.lane.b32.xlu0 %v479, 92
        %v899 = vpop.permute.xlu0 %898
        %900 = vrot.lane.b32.xlu0 %v480, 92
        %v901 = vpop.permute.xlu0 %900
        %902 = vrot.lane.b32.xlu0 %v481, 92
        %v903 = vpop.permute.xlu0 %902
        %904 = vrot.lane.b32.xlu0 %v482, 92
        %v905 = vpop.permute.xlu0 %904
        %906 = vrot.lane.b32.xlu0 %v483, 92
        %v907 = vpop.permute.xlu0 %906
        %908 = vrot.lane.b32.xlu0 %v484, 92
        %v909 = vpop.permute.xlu0 %908
        %910 = vrot.lane.b32.xlu0 %v485, 92
        %v911 = vpop.permute.xlu0 %910
        %912 = vrot.lane.b32.xlu0 %v486, 92
        %v913 = vpop.permute.xlu0 %912
        %vm914 = vcmask 752640
        %v915 = vsel %vm914, %v893, %v895
        %v916 = vsel %vm914, %v895, %v897
        %v917 = vsel %vm914, %v897, %v899
        %v918 = vsel %vm914, %v899, %v901
        %v919 = vsel %vm914, %v901, %v903
        %v920 = vsel %vm914, %v903, %v905
        %v921 = vsel %vm914, %v905, %v907
        %v922 = vsel %vm914, %v907, %v909
        %v923 = vsel %vm914, %v909, %v911
        %v924 = vsel %vm914, %v911, %v913
        %935 = vrot.lane.b32.xlu0 %v530, 64
        %v936 = vpop.permute.xlu0 %935
        %937 = vrot.lane.b32.xlu0 %v531, 64
        %v938 = vpop.permute.xlu0 %937
        %939 = vrot.lane.b32.xlu0 %v532, 64
        %v940 = vpop.permute.xlu0 %939
        %941 = vrot.lane.b32.xlu0 %v533, 64
        %v942 = vpop.permute.xlu0 %941
        %943 = vrot.lane.b32.xlu0 %v534, 64
        %v944 = vpop.permute.xlu0 %943
        %945 = vrot.lane.b32.xlu0 %v535, 64
        %v946 = vpop.permute.xlu0 %945
        %947 = vrot.lane.b32.xlu0 %v536, 64
        %v948 = vpop.permute.xlu0 %947
        %949 = vrot.lane.b32.xlu0 %v537, 64
        %v950 = vpop.permute.xlu0 %949
        %951 = vrot.lane.b32.xlu0 %v538, 64
        %v952 = vpop.permute.xlu0 %951
        %953 = vrot.lane.b32.xlu0 %v539, 64
        %v954 = vpop.permute.xlu0 %953
        %955 = vrot.lane.b32.xlu0 %v540, 64
        %v956 = vpop.permute.xlu0 %955
        %vm957 = vcmask 523264
        %v958 = vsel %vm957, %v936, %v938
        %v959 = vsel %vm957, %v938, %v940
        %v960 = vsel %vm957, %v940, %v942
        %v961 = vsel %vm957, %v942, %v944
        %v962 = vsel %vm957, %v944, %v946
        %v963 = vsel %vm957, %v946, %v948
        %v964 = vsel %vm957, %v948, %v950
        %v965 = vsel %vm957, %v950, %v952
        %v966 = vsel %vm957, %v952, %v954
        %v967 = vsel %vm957, %v954, %v956
        %978 = vrot.lane.b32.xlu0 %v584, 63
        %v979 = vpop.permute.xlu0 %978
        %980 = vrot.lane.b32.xlu0 %v585, 63
        %v981 = vpop.permute.xlu0 %980
        %982 = vrot.lane.b32.xlu0 %v586, 63
        %v983 = vpop.permute.xlu0 %982
        %984 = vrot.lane.b32.xlu0 %v587, 63
        %v985 = vpop.permute.xlu0 %984
        %986 = vrot.lane.b32.xlu0 %v588, 63
        %v987 = vpop.permute.xlu0 %986
        %988 = vrot.lane.b32.xlu0 %v589, 63
        %v989 = vpop.permute.xlu0 %988
        %990 = vrot.lane.b32.xlu0 %v590, 63
        %v991 = vpop.permute.xlu0 %990
        %992 = vrot.lane.b32.xlu0 %v591, 63
        %v993 = vpop.permute.xlu0 %992
        %994 = vrot.lane.b32.xlu0 %v592, 63
        %v995 = vpop.permute.xlu0 %994
        %996 = vrot.lane.b32.xlu0 %v593, 63
        %v997 = vpop.permute.xlu0 %996
        %998 = vrot.lane.b32.xlu0 %v594, 63
        %v999 = vpop.permute.xlu0 %998
        %vm1000 = vcmask 515072
        %v1001 = vsel %vm1000, %v979, %v981
        %v1002 = vsel %vm1000, %v981, %v983
        %v1003 = vsel %vm1000, %v983, %v985
        %v1004 = vsel %vm1000, %v985, %v987
        %v1005 = vsel %vm1000, %v987, %v989
        %v1006 = vsel %vm1000, %v989, %v991
        %v1007 = vsel %vm1000, %v991, %v993
        %v1008 = vsel %vm1000, %v993, %v995
        %v1009 = vsel %vm1000, %v995, %v997
        %v1010 = vsel %vm1000, %v997, %v999
        %1021 = vrot.lane.b32.xlu0 %v638, 62
        %v1022 = vpop.permute.xlu0 %1021
        %1023 = vrot.lane.b32.xlu0 %v448, 62
        %v1024 = vpop.permute.xlu0 %1023
        %1025 = vrot.lane.b32.xlu0 %v639, 62
        %v1026 = vpop.permute.xlu0 %1025
        %1027 = vrot.lane.b32.xlu0 %v449, 62
        %v1028 = vpop.permute.xlu0 %1027
        %1029 = vrot.lane.b32.xlu0 %v640, 62
        %v1030 = vpop.permute.xlu0 %1029
        %1031 = vrot.lane.b32.xlu0 %v450, 62
        %v1032 = vpop.permute.xlu0 %1031
        %1033 = vrot.lane.b32.xlu0 %v641, 62
        %v1034 = vpop.permute.xlu0 %1033
        %1035 = vrot.lane.b32.xlu0 %v451, 62
        %v1036 = vpop.permute.xlu0 %1035
        %1037 = vrot.lane.b32.xlu0 %v642, 62
        %v1038 = vpop.permute.xlu0 %1037
        %1039 = vrot.lane.b32.xlu0 %v452, 62
        %v1040 = vpop.permute.xlu0 %1039
        %1041 = vrot.lane.b32.xlu0 %v643, 62
        %v1042 = vpop.permute.xlu0 %1041
        %vm1043 = vcmask 506880
        %v1044 = vsel %vm1043, %v1022, %v1024
        %v1045 = vsel %vm1043, %v1024, %v1026
        %v1046 = vsel %vm1043, %v1026, %v1028
        %v1047 = vsel %vm1043, %v1028, %v1030
        %v1048 = vsel %vm1043, %v1030, %v1032
        %v1049 = vsel %vm1043, %v1032, %v1034
        %v1050 = vsel %vm1043, %v1034, %v1036
        %v1051 = vsel %vm1043, %v1036, %v1038
        %v1052 = vsel %vm1043, %v1038, %v1040
        %v1053 = vsel %vm1043, %v1040, %v1042
        %1064 = vrot.lane.b32.xlu0 %v687, 61
        %v1065 = vpop.permute.xlu0 %1064
        %1066 = vrot.lane.b32.xlu0 %v688, 61
        %v1067 = vpop.permute.xlu0 %1066
        %1068 = vrot.lane.b32.xlu0 %v689, 61
        %v1069 = vpop.permute.xlu0 %1068
        %1070 = vrot.lane.b32.xlu0 %v690, 61
        %v1071 = vpop.permute.xlu0 %1070
        %1072 = vrot.lane.b32.xlu0 %v691, 61
        %v1073 = vpop.permute.xlu0 %1072
        %1074 = vrot.lane.b32.xlu0 %v692, 61
        %v1075 = vpop.permute.xlu0 %1074
        %1076 = vrot.lane.b32.xlu0 %v693, 61
        %v1077 = vpop.permute.xlu0 %1076
        %1078 = vrot.lane.b32.xlu0 %v694, 61
        %v1079 = vpop.permute.xlu0 %1078
        %1080 = vrot.lane.b32.xlu0 %v695, 61
        %v1081 = vpop.permute.xlu0 %1080
        %1082 = vrot.lane.b32.xlu0 %v696, 61
        %v1083 = vpop.permute.xlu0 %1082
        %1084 = vrot.lane.b32.xlu0 %v697, 61
        %v1085 = vpop.permute.xlu0 %1084
        %vm1086 = vcmask 498688
        %v1087 = vsel %vm1086, %v1065, %v1067
        %v1088 = vsel %vm1086, %v1067, %v1069
        %v1089 = vsel %vm1086, %v1069, %v1071
        %v1090 = vsel %vm1086, %v1071, %v1073
        %v1091 = vsel %vm1086, %v1073, %v1075
        %v1092 = vsel %vm1086, %v1075, %v1077
        %v1093 = vsel %vm1086, %v1077, %v1079
        %v1094 = vsel %vm1086, %v1079, %v1081
        %v1095 = vsel %vm1086, %v1081, %v1083
        %v1096 = vsel %vm1086, %v1083, %v1085
        %1107 = vrot.lane.b32.xlu0 %v741, 60
        %v1108 = vpop.permute.xlu0 %1107
        %1109 = vrot.lane.b32.xlu0 %v742, 60
        %v1110 = vpop.permute.xlu0 %1109
        %1111 = vrot.lane.b32.xlu0 %v743, 60
        %v1112 = vpop.permute.xlu0 %1111
        %1113 = vrot.lane.b32.xlu0 %v744, 60
        %v1114 = vpop.permute.xlu0 %1113
        %1115 = vrot.lane.b32.xlu0 %v745, 60
        %v1116 = vpop.permute.xlu0 %1115
        %1117 = vrot.lane.b32.xlu0 %v746, 60
        %v1118 = vpop.permute.xlu0 %1117
        %1119 = vrot.lane.b32.xlu0 %v747, 60
        %v1120 = vpop.permute.xlu0 %1119
        %1121 = vrot.lane.b32.xlu0 %v748, 60
        %v1122 = vpop.permute.xlu0 %1121
        %1123 = vrot.lane.b32.xlu0 %v749, 60
        %v1124 = vpop.permute.xlu0 %1123
        %1125 = vrot.lane.b32.xlu0 %v750, 60
        %v1126 = vpop.permute.xlu0 %1125
        %1127 = vrot.lane.b32.xlu0 %v751, 60
        %v1128 = vpop.permute.xlu0 %1127
        %vm1129 = vcmask 490496
        %v1130 = vsel %vm1129, %v1108, %v1110
        %v1131 = vsel %vm1129, %v1110, %v1112
        %v1132 = vsel %vm1129, %v1112, %v1114
        %v1133 = vsel %vm1129, %v1114, %v1116
        %v1134 = vsel %vm1129, %v1116, %v1118
        %v1135 = vsel %vm1129, %v1118, %v1120
        %v1136 = vsel %vm1129, %v1120, %v1122
        %v1137 = vsel %vm1129, %v1122, %v1124
        %v1138 = vsel %vm1129, %v1124, %v1126
        %v1139 = vsel %vm1129, %v1126, %v1128
        %1150 = vrot.lane.b32.xlu0 %v795, 32
        %v1151 = vpop.permute.xlu0 %1150
        %1152 = vrot.lane.b32.xlu0 %v796, 32
        %v1153 = vpop.permute.xlu0 %1152
        %1154 = vrot.lane.b32.xlu0 %v797, 32
        %v1155 = vpop.permute.xlu0 %1154
        %1156 = vrot.lane.b32.xlu0 %v798, 32
        %v1157 = vpop.permute.xlu0 %1156
        %1158 = vrot.lane.b32.xlu0 %v799, 32
        %v1159 = vpop.permute.xlu0 %1158
        %1160 = vrot.lane.b32.xlu0 %v800, 32
        %v1161 = vpop.permute.xlu0 %1160
        %1162 = vrot.lane.b32.xlu0 %v801, 32
        %v1163 = vpop.permute.xlu0 %1162
        %1164 = vrot.lane.b32.xlu0 %v802, 32
        %v1165 = vpop.permute.xlu0 %1164
        %1166 = vrot.lane.b32.xlu0 %v803, 32
        %v1167 = vpop.permute.xlu0 %1166
        %1168 = vrot.lane.b32.xlu0 %v804, 32
        %v1169 = vpop.permute.xlu0 %1168
        %1170 = vrot.lane.b32.xlu0 %v805, 32
        %v1171 = vpop.permute.xlu0 %1170
        %vm1172 = vcmask 261120
        %v1173 = vsel %vm1172, %v1151, %v1153
        %v1174 = vsel %vm1172, %v1153, %v1155
        %v1175 = vsel %vm1172, %v1155, %v1157
        %v1176 = vsel %vm1172, %v1157, %v1159
        %v1177 = vsel %vm1172, %v1159, %v1161
        %v1178 = vsel %vm1172, %v1161, %v1163
        %v1179 = vsel %vm1172, %v1163, %v1165
        %v1180 = vsel %vm1172, %v1165, %v1167
        %v1181 = vsel %vm1172, %v1167, %v1169
        %v1182 = vsel %vm1172, %v1169, %v1171
        %vm1193 = vcmask 1042432
        %v1194 = vsel %vm1193, %v448, %v510
        %v1195 = vsel %vm1193, %v465, %v511
        %v1196 = vsel %vm1193, %v449, %v512
        %v1197 = vsel %vm1193, %v466, %v513
        %v1198 = vsel %vm1193, %v450, %v514
        %v1199 = vsel %vm1193, %v467, %v515
        %v1200 = vsel %vm1193, %v451, %v516
        %v1201 = vsel %vm1193, %v468, %v517
        %v1202 = vsel %vm1193, %v452, %v518
        %v1203 = vsel %vm1193, %v469, %v519
        %vm1204 = vcmask 1045504
        %v1205 = vsel %vm1204, %v1194, %v564
        %v1206 = vsel %vm1204, %v1195, %v565
        %v1207 = vsel %vm1204, %v1196, %v566
        %v1208 = vsel %vm1204, %v1197, %v567
        %v1209 = vsel %vm1204, %v1198, %v568
        %v1210 = vsel %vm1204, %v1199, %v569
        %v1211 = vsel %vm1204, %v1200, %v570
        %v1212 = vsel %vm1204, %v1201, %v571
        %v1213 = vsel %vm1204, %v1202, %v572
        %v1214 = vsel %vm1204, %v1203, %v573
        %vm1215 = vcmask 1040384
        %v1216 = vsel %vm1215, %v564, %v618
        %v1217 = vsel %vm1215, %v565, %v619
        %v1218 = vsel %vm1215, %v566, %v620
        %v1219 = vsel %vm1215, %v567, %v621
        %v1220 = vsel %vm1215, %v568, %v622
        %v1221 = vsel %vm1215, %v569, %v623
        %v1222 = vsel %vm1215, %v570, %v624
        %v1223 = vsel %vm1215, %v571, %v625
        %v1224 = vsel %vm1215, %v572, %v626
        %v1225 = vsel %vm1215, %v573, %v627
        %vm1226 = vcmask 1043456
        %v1227 = vsel %vm1226, %v1216, %v667
        %v1228 = vsel %vm1226, %v1217, %v668
        %v1229 = vsel %vm1226, %v1218, %v669
        %v1230 = vsel %vm1226, %v1219, %v670
        %v1231 = vsel %vm1226, %v1220, %v671
        %v1232 = vsel %vm1226, %v1221, %v672
        %v1233 = vsel %vm1226, %v1222, %v673
        %v1234 = vsel %vm1226, %v1223, %v674
        %v1235 = vsel %vm1226, %v1224, %v675
        %v1236 = vsel %vm1226, %v1225, %v676
        %vm1237 = vcmask 1046528
        %v1238 = vsel %vm1237, %v1227, %v721
        %v1239 = vsel %vm1237, %v1228, %v722
        %v1240 = vsel %vm1237, %v1229, %v723
        %v1241 = vsel %vm1237, %v1230, %v724
        %v1242 = vsel %vm1237, %v1231, %v725
        %v1243 = vsel %vm1237, %v1232, %v726
        %v1244 = vsel %vm1237, %v1233, %v727
        %v1245 = vsel %vm1237, %v1234, %v728
        %v1246 = vsel %vm1237, %v1235, %v729
        %v1247 = vsel %vm1237, %v1236, %v730
        %vm1248 = vcmask 1041408
        %v1249 = vsel %vm1248, %v721, %v775
        %v1250 = vsel %vm1248, %v722, %v776
        %v1251 = vsel %vm1248, %v723, %v777
        %v1252 = vsel %vm1248, %v724, %v778
        %v1253 = vsel %vm1248, %v725, %v779
        %v1254 = vsel %vm1248, %v726, %v780
        %v1255 = vsel %vm1248, %v727, %v781
        %v1256 = vsel %vm1248, %v728, %v782
        %v1257 = vsel %vm1248, %v729, %v783
        %v1258 = vsel %vm1248, %v730, %v784
        %vm1259 = vcmask 1044480
        %v1260 = vsel %vm1259, %v1249, %v829
        %v1261 = vsel %vm1259, %v1250, %v830
        %v1262 = vsel %vm1259, %v1251, %v831
        %v1263 = vsel %vm1259, %v1252, %v832
        %v1264 = vsel %vm1259, %v1253, %v833
        %v1265 = vsel %vm1259, %v1254, %v834
        %v1266 = vsel %vm1259, %v1255, %v835
        %v1267 = vsel %vm1259, %v1256, %v836
        %v1268 = vsel %vm1259, %v1257, %v837
        %v1269 = vsel %vm1259, %v1258, %v838
        %v1270 = vsel %vm1193, %v872, %v915
        %v1271 = vsel %vm1193, %v873, %v916
        %v1272 = vsel %vm1193, %v874, %v917
        %v1273 = vsel %vm1193, %v875, %v918
        %v1274 = vsel %vm1193, %v876, %v919
        %v1275 = vsel %vm1193, %v877, %v920
        %v1276 = vsel %vm1193, %v878, %v921
        %v1277 = vsel %vm1193, %v879, %v922
        %v1278 = vsel %vm1193, %v880, %v923
        %v1279 = vsel %vm1193, %v881, %v924
        %v1280 = vsel %vm1204, %v1270, %v958
        %v1281 = vsel %vm1204, %v1271, %v959
        %v1282 = vsel %vm1204, %v1272, %v960
        %v1283 = vsel %vm1204, %v1273, %v961
        %v1284 = vsel %vm1204, %v1274, %v962
        %v1285 = vsel %vm1204, %v1275, %v963
        %v1286 = vsel %vm1204, %v1276, %v964
        %v1287 = vsel %vm1204, %v1277, %v965
        %v1288 = vsel %vm1204, %v1278, %v966
        %v1289 = vsel %vm1204, %v1279, %v967
        %v1290 = vsel %vm1215, %v958, %v1001
        %v1291 = vsel %vm1215, %v959, %v1002
        %v1292 = vsel %vm1215, %v960, %v1003
        %v1293 = vsel %vm1215, %v961, %v1004
        %v1294 = vsel %vm1215, %v962, %v1005
        %v1295 = vsel %vm1215, %v963, %v1006
        %v1296 = vsel %vm1215, %v964, %v1007
        %v1297 = vsel %vm1215, %v965, %v1008
        %v1298 = vsel %vm1215, %v966, %v1009
        %v1299 = vsel %vm1215, %v967, %v1010
        %v1300 = vsel %vm1226, %v1290, %v1044
        %v1301 = vsel %vm1226, %v1291, %v1045
        %v1302 = vsel %vm1226, %v1292, %v1046
        %v1303 = vsel %vm1226, %v1293, %v1047
        %v1304 = vsel %vm1226, %v1294, %v1048
        %v1305 = vsel %vm1226, %v1295, %v1049
        %v1306 = vsel %vm1226, %v1296, %v1050
        %v1307 = vsel %vm1226, %v1297, %v1051
        %v1308 = vsel %vm1226, %v1298, %v1052
        %v1309 = vsel %vm1226, %v1299, %v1053
        %v1310 = vsel %vm1237, %v1300, %v1087
        %v1311 = vsel %vm1237, %v1301, %v1088
        %v1312 = vsel %vm1237, %v1302, %v1089
        %v1313 = vsel %vm1237, %v1303, %v1090
        %v1314 = vsel %vm1237, %v1304, %v1091
        %v1315 = vsel %vm1237, %v1305, %v1092
        %v1316 = vsel %vm1237, %v1306, %v1093
        %v1317 = vsel %vm1237, %v1307, %v1094
        %v1318 = vsel %vm1237, %v1308, %v1095
        %v1319 = vsel %vm1237, %v1309, %v1096
        %v1320 = vsel %vm1248, %v1087, %v1130
        %v1321 = vsel %vm1248, %v1088, %v1131
        %v1322 = vsel %vm1248, %v1089, %v1132
        %v1323 = vsel %vm1248, %v1090, %v1133
        %v1324 = vsel %vm1248, %v1091, %v1134
        %v1325 = vsel %vm1248, %v1092, %v1135
        %v1326 = vsel %vm1248, %v1093, %v1136
        %v1327 = vsel %vm1248, %v1094, %v1137
        %v1328 = vsel %vm1248, %v1095, %v1138
        %v1329 = vsel %vm1248, %v1096, %v1139
        %v1330 = vsel %vm1259, %v1320, %v1173
        %v1331 = vsel %vm1259, %v1321, %v1174
        %v1332 = vsel %vm1259, %v1322, %v1175
        %v1333 = vsel %vm1259, %v1323, %v1176
        %v1334 = vsel %vm1259, %v1324, %v1177
        %v1335 = vsel %vm1259, %v1325, %v1178
        %v1336 = vsel %vm1259, %v1326, %v1179
        %v1337 = vsel %vm1259, %v1327, %v1180
        %v1338 = vsel %vm1259, %v1328, %v1181
        %v1339 = vsel %vm1259, %v1329, %v1182
        %v1348 = vcombine.low %v454, %v454
        %v1349 = vcombine.low %v455, %v455
        %v1350 = vcombine.low %v456, %v456
        %v1351 = vcombine.low %v457, %v457
        %v1352 = vcombine.low %v458, %v458
        %1353 = vrot.lane.b32.xlu0 %v1348, 97
        %v1354 = vpop.permute.xlu0 %1353
        %1355 = vrot.lane.b32.xlu0 %v454, 97
        %v1356 = vpop.permute.xlu0 %1355
        %1357 = vrot.lane.b32.xlu0 %v1349, 97
        %v1358 = vpop.permute.xlu0 %1357
        %1359 = vrot.lane.b32.xlu0 %v455, 97
        %v1360 = vpop.permute.xlu0 %1359
        %1361 = vrot.lane.b32.xlu0 %v1350, 97
        %v1362 = vpop.permute.xlu0 %1361
        %1363 = vrot.lane.b32.xlu0 %v456, 97
        %v1364 = vpop.permute.xlu0 %1363
        %1365 = vrot.lane.b32.xlu0 %v1351, 97
        %v1366 = vpop.permute.xlu0 %1365
        %1367 = vrot.lane.b32.xlu0 %v457, 97
        %v1368 = vpop.permute.xlu0 %1367
        %1369 = vrot.lane.b32.xlu0 %v1352, 97
        %v1370 = vpop.permute.xlu0 %1369
        %1371 = vrot.lane.b32.xlu0 %v458, 97
        %v1372 = vpop.permute.xlu0 %1371
        %vm1373 = vcmask 793600
        %v1374 = vsel %vm1373, %v1354, %v1356
        %v1375 = vsel %vm1373, %v1356, %v1358
        %v1376 = vsel %vm1373, %v1358, %v1360
        %v1377 = vsel %vm1373, %v1360, %v1362
        %v1378 = vsel %vm1373, %v1362, %v1364
        %v1379 = vsel %vm1373, %v1364, %v1366
        %v1380 = vsel %vm1373, %v1366, %v1368
        %v1381 = vsel %vm1373, %v1368, %v1370
        %v1382 = vsel %vm1373, %v1370, %v1372
        %v1395 = vcombine.high %v454, %v454
        %v1396 = vcombine.high %v455, %v455
        %v1397 = vcombine.high %v456, %v456
        %v1398 = vcombine.high %v457, %v457
        %v1399 = vcombine.high %v458, %v458
        %v1400 = vrot.slane %v454, 1
        %v1401 = vrot.slane %v1395, 1
        %v1402 = vrot.slane %v455, 1
        %v1403 = vrot.slane %v1396, 1
        %v1404 = vrot.slane %v456, 1
        %v1405 = vrot.slane %v1397, 1
        %v1406 = vrot.slane %v457, 1
        %v1407 = vrot.slane %v1398, 1
        %v1408 = vrot.slane %v458, 1
        %v1409 = vrot.slane %v1399, 1
        %v1410 = vrot.slane %v459, 1
        %1411 = vrot.lane.b32.xlu0 %v1400, 96
        %v1412 = vpop.permute.xlu0 %1411
        %1413 = vrot.lane.b32.xlu0 %v1401, 96
        %v1414 = vpop.permute.xlu0 %1413
        %1415 = vrot.lane.b32.xlu0 %v1402, 96
        %v1416 = vpop.permute.xlu0 %1415
        %1417 = vrot.lane.b32.xlu0 %v1403, 96
        %v1418 = vpop.permute.xlu0 %1417
        %1419 = vrot.lane.b32.xlu0 %v1404, 96
        %v1420 = vpop.permute.xlu0 %1419
        %1421 = vrot.lane.b32.xlu0 %v1405, 96
        %v1422 = vpop.permute.xlu0 %1421
        %1423 = vrot.lane.b32.xlu0 %v1406, 96
        %v1424 = vpop.permute.xlu0 %1423
        %1425 = vrot.lane.b32.xlu0 %v1407, 96
        %v1426 = vpop.permute.xlu0 %1425
        %1427 = vrot.lane.b32.xlu0 %v1408, 96
        %v1428 = vpop.permute.xlu0 %1427
        %1429 = vrot.lane.b32.xlu0 %v1409, 96
        %v1430 = vpop.permute.xlu0 %1429
        %1431 = vrot.lane.b32.xlu0 %v1410, 96
        %v1432 = vpop.permute.xlu0 %1431
        %v1433 = vsel %vm720, %v1412, %v1414
        %v1434 = vsel %vm720, %v1414, %v1416
        %v1435 = vsel %vm720, %v1416, %v1418
        %v1436 = vsel %vm720, %v1418, %v1420
        %v1437 = vsel %vm720, %v1420, %v1422
        %v1438 = vsel %vm720, %v1422, %v1424
        %v1439 = vsel %vm720, %v1424, %v1426
        %v1440 = vsel %vm720, %v1426, %v1428
        %v1441 = vsel %vm720, %v1428, %v1430
        %v1442 = vsel %vm720, %v1430, %v1432
        %v1454 = vrot.slane %v454, 6
        %v1455 = vrot.slane %v1395, 6
        %v1456 = vrot.slane %v455, 6
        %v1457 = vrot.slane %v1396, 6
        %v1458 = vrot.slane %v456, 6
        %v1459 = vrot.slane %v1397, 6
        %v1460 = vrot.slane %v457, 6
        %v1461 = vrot.slane %v1398, 6
        %v1462 = vrot.slane %v458, 6
        %v1463 = vrot.slane %v1399, 6
        %v1464 = vrot.slane %v459, 6
        %1465 = vrot.lane.b32.xlu0 %v1454, 95
        %v1466 = vpop.permute.xlu0 %1465
        %1467 = vrot.lane.b32.xlu0 %v1455, 95
        %v1468 = vpop.permute.xlu0 %1467
        %1469 = vrot.lane.b32.xlu0 %v1456, 95
        %v1470 = vpop.permute.xlu0 %1469
        %1471 = vrot.lane.b32.xlu0 %v1457, 95
        %v1472 = vpop.permute.xlu0 %1471
        %1473 = vrot.lane.b32.xlu0 %v1458, 95
        %v1474 = vpop.permute.xlu0 %1473
        %1475 = vrot.lane.b32.xlu0 %v1459, 95
        %v1476 = vpop.permute.xlu0 %1475
        %1477 = vrot.lane.b32.xlu0 %v1460, 95
        %v1478 = vpop.permute.xlu0 %1477
        %1479 = vrot.lane.b32.xlu0 %v1461, 95
        %v1480 = vpop.permute.xlu0 %1479
        %1481 = vrot.lane.b32.xlu0 %v1462, 95
        %v1482 = vpop.permute.xlu0 %1481
        %1483 = vrot.lane.b32.xlu0 %v1463, 95
        %v1484 = vpop.permute.xlu0 %1483
        %1485 = vrot.lane.b32.xlu0 %v1464, 95
        %v1486 = vpop.permute.xlu0 %1485
        %v1487 = vsel %vm774, %v1466, %v1468
        %v1488 = vsel %vm774, %v1468, %v1470
        %v1489 = vsel %vm774, %v1470, %v1472
        %v1490 = vsel %vm774, %v1472, %v1474
        %v1491 = vsel %vm774, %v1474, %v1476
        %v1492 = vsel %vm774, %v1476, %v1478
        %v1493 = vsel %vm774, %v1478, %v1480
        %v1494 = vsel %vm774, %v1480, %v1482
        %v1495 = vsel %vm774, %v1482, %v1484
        %v1496 = vsel %vm774, %v1484, %v1486
        %v1508 = vrot.slane %v454, 3
        %v1509 = vrot.slane %v1395, 3
        %v1510 = vrot.slane %v455, 3
        %v1511 = vrot.slane %v1396, 3
        %v1512 = vrot.slane %v456, 3
        %v1513 = vrot.slane %v1397, 3
        %v1514 = vrot.slane %v457, 3
        %v1515 = vrot.slane %v1398, 3
        %v1516 = vrot.slane %v458, 3
        %v1517 = vrot.slane %v1399, 3
        %v1518 = vrot.slane %v459, 3
        %1519 = vrot.lane.b32.xlu0 %v1508, 94
        %v1520 = vpop.permute.xlu0 %1519
        %1521 = vrot.lane.b32.xlu0 %v1509, 94
        %v1522 = vpop.permute.xlu0 %1521
        %1523 = vrot.lane.b32.xlu0 %v1510, 94
        %v1524 = vpop.permute.xlu0 %1523
        %1525 = vrot.lane.b32.xlu0 %v1511, 94
        %v1526 = vpop.permute.xlu0 %1525
        %1527 = vrot.lane.b32.xlu0 %v1512, 94
        %v1528 = vpop.permute.xlu0 %1527
        %1529 = vrot.lane.b32.xlu0 %v1513, 94
        %v1530 = vpop.permute.xlu0 %1529
        %1531 = vrot.lane.b32.xlu0 %v1514, 94
        %v1532 = vpop.permute.xlu0 %1531
        %1533 = vrot.lane.b32.xlu0 %v1515, 94
        %v1534 = vpop.permute.xlu0 %1533
        %1535 = vrot.lane.b32.xlu0 %v1516, 94
        %v1536 = vpop.permute.xlu0 %1535
        %1537 = vrot.lane.b32.xlu0 %v1517, 94
        %v1538 = vpop.permute.xlu0 %1537
        %1539 = vrot.lane.b32.xlu0 %v1518, 94
        %v1540 = vpop.permute.xlu0 %1539
        %v1541 = vsel %vm828, %v1520, %v1522
        %v1542 = vsel %vm828, %v1522, %v1524
        %v1543 = vsel %vm828, %v1524, %v1526
        %v1544 = vsel %vm828, %v1526, %v1528
        %v1545 = vsel %vm828, %v1528, %v1530
        %v1546 = vsel %vm828, %v1530, %v1532
        %v1547 = vsel %vm828, %v1532, %v1534
        %v1548 = vsel %vm828, %v1534, %v1536
        %v1549 = vsel %vm828, %v1536, %v1538
        %v1550 = vsel %vm828, %v1538, %v1540
        %1562 = vrot.lane.b32.xlu0 %v454, 93
        %v1563 = vpop.permute.xlu0 %1562
        %1564 = vrot.lane.b32.xlu0 %v1395, 93
        %v1565 = vpop.permute.xlu0 %1564
        %1566 = vrot.lane.b32.xlu0 %v455, 93
        %v1567 = vpop.permute.xlu0 %1566
        %1568 = vrot.lane.b32.xlu0 %v1396, 93
        %v1569 = vpop.permute.xlu0 %1568
        %1570 = vrot.lane.b32.xlu0 %v456, 93
        %v1571 = vpop.permute.xlu0 %1570
        %1572 = vrot.lane.b32.xlu0 %v1397, 93
        %v1573 = vpop.permute.xlu0 %1572
        %1574 = vrot.lane.b32.xlu0 %v457, 93
        %v1575 = vpop.permute.xlu0 %1574
        %1576 = vrot.lane.b32.xlu0 %v1398, 93
        %v1577 = vpop.permute.xlu0 %1576
        %1578 = vrot.lane.b32.xlu0 %v458, 93
        %v1579 = vpop.permute.xlu0 %1578
        %1580 = vrot.lane.b32.xlu0 %v1399, 93
        %v1581 = vpop.permute.xlu0 %1580
        %1582 = vrot.lane.b32.xlu0 %v459, 93
        %v1583 = vpop.permute.xlu0 %1582
        %v1584 = vsel %vm871, %v1563, %v1565
        %v1585 = vsel %vm871, %v1565, %v1567
        %v1586 = vsel %vm871, %v1567, %v1569
        %v1587 = vsel %vm871, %v1569, %v1571
        %v1588 = vsel %vm871, %v1571, %v1573
        %v1589 = vsel %vm871, %v1573, %v1575
        %v1590 = vsel %vm871, %v1575, %v1577
        %v1591 = vsel %vm871, %v1577, %v1579
        %v1592 = vsel %vm871, %v1579, %v1581
        %v1593 = vsel %vm871, %v1581, %v1583
        %v1594 = vsel %vm1193, %v453, %v508
        %v1595 = vsel %vm1204, %v1594, %v562
        %v1596 = vsel %vm1215, %v562, %v616
        %v1597 = vsel %vm1226, %v1216, %v1354
        %v1598 = vsel %vm1226, %v1217, %v1374
        %v1599 = vsel %vm1226, %v1218, %v1375
        %v1600 = vsel %vm1226, %v1219, %v1376
        %v1601 = vsel %vm1226, %v1220, %v1377
        %v1602 = vsel %vm1226, %v1221, %v1378
        %v1603 = vsel %vm1226, %v1222, %v1379
        %v1604 = vsel %vm1226, %v1223, %v1380
        %v1605 = vsel %vm1226, %v1224, %v1381
        %v1606 = vsel %vm1226, %v1225, %v1382
        %v1607 = vsel %vm1226, %v1596, %v1372
        %v1608 = vsel %vm1237, %v1597, %v1412
        %v1609 = vsel %vm1237, %v1598, %v1433
        %v1610 = vsel %vm1237, %v1599, %v1434
        %v1611 = vsel %vm1237, %v1600, %v1435
        %v1612 = vsel %vm1237, %v1601, %v1436
        %v1613 = vsel %vm1237, %v1602, %v1437
        %v1614 = vsel %vm1237, %v1603, %v1438
        %v1615 = vsel %vm1237, %v1604, %v1439
        %v1616 = vsel %vm1237, %v1605, %v1440
        %v1617 = vsel %vm1237, %v1606, %v1441
        %v1618 = vsel %vm1237, %v1607, %v1442
        %v1619 = vsel %vm1248, %v1412, %v1466
        %v1620 = vsel %vm1248, %v1433, %v1487
        %v1621 = vsel %vm1248, %v1434, %v1488
        %v1622 = vsel %vm1248, %v1435, %v1489
        %v1623 = vsel %vm1248, %v1436, %v1490
        %v1624 = vsel %vm1248, %v1437, %v1491
        %v1625 = vsel %vm1248, %v1438, %v1492
        %v1626 = vsel %vm1248, %v1439, %v1493
        %v1627 = vsel %vm1248, %v1440, %v1494
        %v1628 = vsel %vm1248, %v1441, %v1495
        %v1629 = vsel %vm1248, %v1442, %v1496
        %v1630 = vsel %vm1259, %v1619, %v1520
        %v1631 = vsel %vm1259, %v1620, %v1541
        %v1632 = vsel %vm1259, %v1621, %v1542
        %v1633 = vsel %vm1259, %v1622, %v1543
        %v1634 = vsel %vm1259, %v1623, %v1544
        %v1635 = vsel %vm1259, %v1624, %v1545
        %v1636 = vsel %vm1259, %v1625, %v1546
        %v1637 = vsel %vm1259, %v1626, %v1547
        %v1638 = vsel %vm1259, %v1627, %v1548
        %v1639 = vsel %vm1259, %v1628, %v1549
        %v1640 = vsel %vm1259, %v1629, %v1550
        %1674 = vrot.lane.b32.xlu0 %v1205, 31
        %v1675 = vpop.permute.xlu0 %1674
        %1676 = vrot.lane.b32.xlu0 %v1206, 31
        %v1677 = vpop.permute.xlu0 %1676
        %1678 = vrot.lane.b32.xlu0 %v1207, 31
        %v1679 = vpop.permute.xlu0 %1678
        %1680 = vrot.lane.b32.xlu0 %v1208, 31
        %v1681 = vpop.permute.xlu0 %1680
        %1682 = vrot.lane.b32.xlu0 %v1209, 31
        %v1683 = vpop.permute.xlu0 %1682
        %1684 = vrot.lane.b32.xlu0 %v1210, 31
        %v1685 = vpop.permute.xlu0 %1684
        %1686 = vrot.lane.b32.xlu0 %v1211, 31
        %v1687 = vpop.permute.xlu0 %1686
        %1688 = vrot.lane.b32.xlu0 %v1212, 31
        %v1689 = vpop.permute.xlu0 %1688
        %1690 = vrot.lane.b32.xlu0 %v1213, 31
        %v1691 = vpop.permute.xlu0 %1690
        %1692 = vrot.lane.b32.xlu0 %v1214, 31
        %v1693 = vpop.permute.xlu0 %1692
        %1694 = vrot.lane.b32.xlu0 %v1595, 31
        %v1695 = vpop.permute.xlu0 %1694
        %1696 = vrot.lane.b32.xlu0 %v1608, 31
        %v1697 = vpop.permute.xlu0 %1696
        %1698 = vrot.lane.b32.xlu0 %v1609, 31
        %v1699 = vpop.permute.xlu0 %1698
        %1700 = vrot.lane.b32.xlu0 %v1610, 31
        %v1701 = vpop.permute.xlu0 %1700
        %1702 = vrot.lane.b32.xlu0 %v1611, 31
        %v1703 = vpop.permute.xlu0 %1702
        %1704 = vrot.lane.b32.xlu0 %v1612, 31
        %v1705 = vpop.permute.xlu0 %1704
        %1706 = vrot.lane.b32.xlu0 %v1613, 31
        %v1707 = vpop.permute.xlu0 %1706
        %1708 = vrot.lane.b32.xlu0 %v1614, 31
        %v1709 = vpop.permute.xlu0 %1708
        %1710 = vrot.lane.b32.xlu0 %v1615, 31
        %v1711 = vpop.permute.xlu0 %1710
        %1712 = vrot.lane.b32.xlu0 %v1616, 31
        %v1713 = vpop.permute.xlu0 %1712
        %1714 = vrot.lane.b32.xlu0 %v1617, 31
        %v1715 = vpop.permute.xlu0 %1714
        %1716 = vrot.lane.b32.xlu0 %v1618, 31
        %v1717 = vpop.permute.xlu0 %1716
        %1718 = vrot.lane.b32.xlu0 %v1630, 31
        %v1719 = vpop.permute.xlu0 %1718
        %1720 = vrot.lane.b32.xlu0 %v1631, 31
        %v1721 = vpop.permute.xlu0 %1720
        %1722 = vrot.lane.b32.xlu0 %v1632, 31
        %v1723 = vpop.permute.xlu0 %1722
        %1724 = vrot.lane.b32.xlu0 %v1633, 31
        %v1725 = vpop.permute.xlu0 %1724
        %1726 = vrot.lane.b32.xlu0 %v1634, 31
        %v1727 = vpop.permute.xlu0 %1726
        %1728 = vrot.lane.b32.xlu0 %v1635, 31
        %v1729 = vpop.permute.xlu0 %1728
        %1730 = vrot.lane.b32.xlu0 %v1636, 31
        %v1731 = vpop.permute.xlu0 %1730
        %1732 = vrot.lane.b32.xlu0 %v1637, 31
        %v1733 = vpop.permute.xlu0 %1732
        %1734 = vrot.lane.b32.xlu0 %v1638, 31
        %v1735 = vpop.permute.xlu0 %1734
        %1736 = vrot.lane.b32.xlu0 %v1639, 31
        %v1737 = vpop.permute.xlu0 %1736
        %1738 = vrot.lane.b32.xlu0 %v1640, 31
        %v1739 = vpop.permute.xlu0 %1738
        %1740 = vrot.lane.b32.xlu0 %v1563, 31
        %v1741 = vpop.permute.xlu0 %1740
        %1742 = vrot.lane.b32.xlu0 %v1584, 31
        %v1743 = vpop.permute.xlu0 %1742
        %1744 = vrot.lane.b32.xlu0 %v1585, 31
        %v1745 = vpop.permute.xlu0 %1744
        %1746 = vrot.lane.b32.xlu0 %v1586, 31
        %v1747 = vpop.permute.xlu0 %1746
        %1748 = vrot.lane.b32.xlu0 %v1587, 31
        %v1749 = vpop.permute.xlu0 %1748
        %1750 = vrot.lane.b32.xlu0 %v1588, 31
        %v1751 = vpop.permute.xlu0 %1750
        %1752 = vrot.lane.b32.xlu0 %v1589, 31
        %v1753 = vpop.permute.xlu0 %1752
        %1754 = vrot.lane.b32.xlu0 %v1590, 31
        %v1755 = vpop.permute.xlu0 %1754
        %1756 = vrot.lane.b32.xlu0 %v1591, 31
        %v1757 = vpop.permute.xlu0 %1756
        %1758 = vrot.lane.b32.xlu0 %v1592, 31
        %v1759 = vpop.permute.xlu0 %1758
        %1760 = vrot.lane.b32.xlu0 %v1593, 31
        %v1761 = vpop.permute.xlu0 %1760
        %vm1762 = vcmask 252928
        %v1763 = vsel %vm1762, %v1675, %v1677
        %v1764 = vsel %vm1762, %v1677, %v1679
        %v1765 = vsel %vm1762, %v1679, %v1681
        %v1766 = vsel %vm1762, %v1681, %v1683
        %v1767 = vsel %vm1762, %v1683, %v1685
        %v1768 = vsel %vm1762, %v1685, %v1687
        %v1769 = vsel %vm1762, %v1687, %v1689
        %v1770 = vsel %vm1762, %v1689, %v1691
        %v1771 = vsel %vm1762, %v1691, %v1693
        %v1772 = vsel %vm1762, %v1693, %v1695
        %v1773 = vsel %vm1762, %v1697, %v1699
        %v1774 = vsel %vm1762, %v1699, %v1701
        %v1775 = vsel %vm1762, %v1701, %v1703
        %v1776 = vsel %vm1762, %v1703, %v1705
        %v1777 = vsel %vm1762, %v1705, %v1707
        %v1778 = vsel %vm1762, %v1707, %v1709
        %v1779 = vsel %vm1762, %v1709, %v1711
        %v1780 = vsel %vm1762, %v1711, %v1713
        %v1781 = vsel %vm1762, %v1713, %v1715
        %v1782 = vsel %vm1762, %v1715, %v1717
        %v1783 = vsel %vm1762, %v1719, %v1721
        %v1784 = vsel %vm1762, %v1721, %v1723
        %v1785 = vsel %vm1762, %v1723, %v1725
        %v1786 = vsel %vm1762, %v1725, %v1727
        %v1787 = vsel %vm1762, %v1727, %v1729
        %v1788 = vsel %vm1762, %v1729, %v1731
        %v1789 = vsel %vm1762, %v1731, %v1733
        %v1790 = vsel %vm1762, %v1733, %v1735
        %v1791 = vsel %vm1762, %v1735, %v1737
        %v1792 = vsel %vm1762, %v1737, %v1739
        %v1793 = vsel %vm1762, %v1741, %v1743
        %v1794 = vsel %vm1762, %v1743, %v1745
        %v1795 = vsel %vm1762, %v1745, %v1747
        %v1796 = vsel %vm1762, %v1747, %v1749
        %v1797 = vsel %vm1762, %v1749, %v1751
        %v1798 = vsel %vm1762, %v1751, %v1753
        %v1799 = vsel %vm1762, %v1753, %v1755
        %v1800 = vsel %vm1762, %v1755, %v1757
        %v1801 = vsel %vm1762, %v1757, %v1759
        %v1802 = vsel %vm1762, %v1759, %v1761
        %v1843 = vpack.c.bf16 %v1238, %v1205
        %v1844 = vpack.c.bf16 %v1239, %v1206
        %v1845 = vpack.c.bf16 %v1240, %v1207
        %v1846 = vpack.c.bf16 %v1241, %v1208
        %v1847 = vpack.c.bf16 %v1242, %v1209
        %v1848 = vpack.c.bf16 %v1243, %v1210
        %v1849 = vpack.c.bf16 %v1244, %v1211
        %v1850 = vpack.c.bf16 %v1245, %v1212
        %v1851 = vpack.c.bf16 %v1246, %v1213
        %v1852 = vpack.c.bf16 %v1247, %v1214
        %v1853 = vpack.c.bf16 %v1280, %v1260
        %v1854 = vpack.c.bf16 %v1281, %v1261
        %v1855 = vpack.c.bf16 %v1282, %v1262
        %v1856 = vpack.c.bf16 %v1283, %v1263
        %v1857 = vpack.c.bf16 %v1284, %v1264
        %v1858 = vpack.c.bf16 %v1285, %v1265
        %v1859 = vpack.c.bf16 %v1286, %v1266
        %v1860 = vpack.c.bf16 %v1287, %v1267
        %v1861 = vpack.c.bf16 %v1288, %v1268
        %v1862 = vpack.c.bf16 %v1289, %v1269
        %v1863 = vpack.c.bf16 %v1330, %v1310
        %v1864 = vpack.c.bf16 %v1331, %v1311
        %v1865 = vpack.c.bf16 %v1332, %v1312
        %v1866 = vpack.c.bf16 %v1333, %v1313
        %v1867 = vpack.c.bf16 %v1334, %v1314
        %v1868 = vpack.c.bf16 %v1335, %v1315
        %v1869 = vpack.c.bf16 %v1336, %v1316
        %v1870 = vpack.c.bf16 %v1337, %v1317
        %v1871 = vpack.c.bf16 %v1338, %v1318
        %v1872 = vpack.c.bf16 %v1339, %v1319
        %v1873 = vpack.c.bf16 %v1773, %v1763
        %v1874 = vpack.c.bf16 %v1774, %v1764
        %v1875 = vpack.c.bf16 %v1775, %v1765
        %v1876 = vpack.c.bf16 %v1776, %v1766
        %v1877 = vpack.c.bf16 %v1777, %v1767
        %v1878 = vpack.c.bf16 %v1778, %v1768
        %v1879 = vpack.c.bf16 %v1779, %v1769
        %v1880 = vpack.c.bf16 %v1780, %v1770
        %v1881 = vpack.c.bf16 %v1781, %v1771
        %v1882 = vpack.c.bf16 %v1782, %v1772
        %v1883 = vpack.c.bf16 %v1793, %v1783
        %v1884 = vpack.c.bf16 %v1794, %v1784
        %v1885 = vpack.c.bf16 %v1795, %v1785
        %v1886 = vpack.c.bf16 %v1796, %v1786
        %v1887 = vpack.c.bf16 %v1797, %v1787
        %v1888 = vpack.c.bf16 %v1798, %v1788
        %v1889 = vpack.c.bf16 %v1799, %v1789
        %v1890 = vpack.c.bf16 %v1800, %v1790
        %v1891 = vpack.c.bf16 %v1801, %v1791
        %v1892 = vpack.c.bf16 %v1802, %v1792
        %v1893 = vld [vmem:[%s2] sm:$0x7]
        %v1894 = vld [vmem:[%s3] sm:$0x3f]
        %1896 = vset.pattern.permute.xlu0 0
        %1897 = vperm.xlu0 %1896, %v1894
        %v1898 = vpop.permute.xlu0 %1897
        %vm1900 = vcmask 613376
        %v1902 = vsel %vm1900, %v1893, 0
        %v1904 = vsel %vm1259, 4294967295, 65535
        %v1905 = vsel %vm1204, %v1904, 0
        %v1907 = vand.u32 %v1883, %v1905
        %v1910 = vand.u32 %v1884, %v1905
        %v1913 = vand.u32 %v1885, %v1905
        %v1916 = vand.u32 %v1886, %v1905
        %v1919 = vand.u32 %v1887, %v1905
        %v1922 = vand.u32 %v1888, %v1905
        %v1925 = vand.u32 %v1889, %v1905
        %v1928 = vand.u32 %v1890, %v1905
        %v1931 = vand.u32 %v1891, %v1905
        %v1934 = vand.u32 %v1892, %v1905
        %1936 = vmatprep.subr.bf16.mxu0 %v1844
        %1937 = vmatpush1.bf16.msra.mxu0 %v1843
        %1938 = vmatprep.subr.bf16.mxu0 %v1854
        %1939 = vmatpush1.bf16.msra.mxu0 %v1853
        %1940 = vmatprep.subr.bf16.mxu0 %v1864
        %1941 = vmatpush1.bf16.msra.mxu0 %v1863
        %1942 = vmatprep.subr.bf16.mxu0 %v1874
        %1943 = vmatpush1.bf16.msra.mxu0 %v1873
        %1944 = vmatprep.subr.bf16.mxu0 %v1910
        %1945 = vmatpush1.bf16.msra.mxu0 %v1907
        %1946 = vmatprep.subr.bf16.mxu0 0
        %1947 = vmatpush1.bf16.msra.mxu0 0
        %1948 = vmatprep.subr.bf16.mxu0 0
        %1949 = vmatpush1.bf16.msra.mxu0 0
        %1950 = vmatprep.subr.bf16.mxu0 0
        %1951 = vmatpush1.bf16.msra.mxu0 0
        %1952 = vmatprep.subr.bf16.mxu0 0
        %1953 = vmatpush1.bf16.msra.mxu0 0
        %1954 = vmatprep.subr.bf16.mxu0 0
        %1955 = vmatpush1.bf16.msra.mxu0 0
        %1956 = vmatprep.subr.bf16.mxu0 0
        %1957 = vmatpush1.bf16.msra.mxu0 0
        %1958 = vmatprep.subr.bf16.mxu0 0
        %1959 = vmatpush1.bf16.msra.mxu0 0
        %1960 = vmatprep.subr.bf16.mxu0 0
        %1961 = vmatpush1.bf16.msra.mxu0 0
        %1962 = vmatprep.subr.bf16.mxu0 0
        %1963 = vmatpush1.bf16.msra.mxu0 0
        %1964 = vmatprep.subr.bf16.mxu0 0
        %1965 = vmatpush1.bf16.msra.mxu0 0
        %1966 = vmatprep.subr.bf16.mxu0 0
        %1967 = vmatpush1.bf16.msra.mxu0 0
        %1968 = vmatprep.mubr.bf16.mxu0 0
        %1969 = vmatmul.mubr.bf16.gmra.mrb[0].mxu0 %v1902
        %v1970 = vpop.f32.mrb[0].mxu0
        %v1971 = vadd.f32 %v1898, %v1970
        %v1972 = vpop.f32.mrb[0].mxu0
        %v1973 = vadd.f32 %v1898, %v1972
        %v1974 = vpop.f32.mrb[0].mxu0
        %v1975 = vpop.f32.mrb[0].mxu0
        %1976 = vdwg.mxu0
        %1977 = vmatprep.subr.bf16.mxu0 %v1846
        %1978 = vmatpush1.bf16.msra.mxu0 %v1845
        %1979 = vmatprep.subr.bf16.mxu0 %v1856
        %1980 = vmatpush1.bf16.msra.mxu0 %v1855
        %1981 = vmatprep.subr.bf16.mxu0 %v1866
        %1982 = vmatpush1.bf16.msra.mxu0 %v1865
        %1983 = vmatprep.subr.bf16.mxu0 %v1876
        %1984 = vmatpush1.bf16.msra.mxu0 %v1875
        %1985 = vmatprep.subr.bf16.mxu0 %v1916
        %1986 = vmatpush1.bf16.msra.mxu0 %v1913
        %1987 = vmatprep.subr.bf16.mxu0 0
        %1988 = vmatpush1.bf16.msra.mxu0 0
        %1989 = vmatprep.subr.bf16.mxu0 0
        %1990 = vmatpush1.bf16.msra.mxu0 0
        %1991 = vmatprep.subr.bf16.mxu0 0
        %1992 = vmatpush1.bf16.msra.mxu0 0
        %1993 = vmatprep.subr.bf16.mxu0 0
        %1994 = vmatpush1.bf16.msra.mxu0 0
        %1995 = vmatprep.subr.bf16.mxu0 0
        %1996 = vmatpush1.bf16.msra.mxu0 0
        %1997 = vmatprep.subr.bf16.mxu0 0
        %1998 = vmatpush1.bf16.msra.mxu0 0
        %1999 = vmatprep.subr.bf16.mxu0 0
        %2000 = vmatpush1.bf16.msra.mxu0 0
        %2001 = vmatprep.subr.bf16.mxu0 0
        %2002 = vmatpush1.bf16.msra.mxu0 0
        %2003 = vmatprep.subr.bf16.mxu0 0
        %2004 = vmatpush1.bf16.msra.mxu0 0
        %2005 = vmatprep.subr.bf16.mxu0 0
        %2006 = vmatpush1.bf16.msra.mxu0 0
        %2007 = vmatprep.subr.bf16.mxu0 0
        %2008 = vmatpush1.bf16.msra.mxu0 0
        %2009 = vmatprep.mubr.bf16.mxu0 0
        %2010 = vmatmul.mubr.bf16.gmra.mrb[0].mxu0 %v1902
        %v2011 = vpop.f32.mrb[0].mxu0
        %v2012 = vadd.f32 %v1898, %v2011
        %v2013 = vpop.f32.mrb[0].mxu0
        %v2014 = vadd.f32 %v1898, %v2013
        %v2015 = vpop.f32.mrb[0].mxu0
        %v2016 = vpop.f32.mrb[0].mxu0
        %2017 = vdwg.mxu0
        %2018 = vmatprep.subr.bf16.mxu0 %v1848
        %2019 = vmatpush1.bf16.msra.mxu0 %v1847
        %2020 = vmatprep.subr.bf16.mxu0 %v1858
        %2021 = vmatpush1.bf16.msra.mxu0 %v1857
        %2022 = vmatprep.subr.bf16.mxu0 %v1868
        %2023 = vmatpush1.bf16.msra.mxu0 %v1867
        %2024 = vmatprep.subr.bf16.mxu0 %v1878
        %2025 = vmatpush1.bf16.msra.mxu0 %v1877
        %2026 = vmatprep.subr.bf16.mxu0 %v1922
        %2027 = vmatpush1.bf16.msra.mxu0 %v1919
        %2028 = vmatprep.subr.bf16.mxu0 0
        %2029 = vmatpush1.bf16.msra.mxu0 0
        %2030 = vmatprep.subr.bf16.mxu0 0
        %2031 = vmatpush1.bf16.msra.mxu0 0
        %2032 = vmatprep.subr.bf16.mxu0 0
        %2033 = vmatpush1.bf16.msra.mxu0 0
        %2034 = vmatprep.subr.bf16.mxu0 0
        %2035 = vmatpush1.bf16.msra.mxu0 0
        %2036 = vmatprep.subr.bf16.mxu0 0
        %2037 = vmatpush1.bf16.msra.mxu0 0
        %2038 = vmatprep.subr.bf16.mxu0 0
        %2039 = vmatpush1.bf16.msra.mxu0 0
        %2040 = vmatprep.subr.bf16.mxu0 0
        %2041 = vmatpush1.bf16.msra.mxu0 0
        %2042 = vmatprep.subr.bf16.mxu0 0
        %2043 = vmatpush1.bf16.msra.mxu0 0
        %2044 = vmatprep.subr.bf16.mxu0 0
        %2045 = vmatpush1.bf16.msra.mxu0 0
        %2046 = vmatprep.subr.bf16.mxu0 0
        %2047 = vmatpush1.bf16.msra.mxu0 0
        %2048 = vmatprep.subr.bf16.mxu0 0
        %2049 = vmatpush1.bf16.msra.mxu0 0
        %2050 = vmatprep.mubr.bf16.mxu0 0
        %2051 = vmatmul.mubr.bf16.gmra.mrb[0].mxu0 %v1902
        %v2052 = vpop.f32.mrb[0].mxu0
        %v2053 = vadd.f32 %v1898, %v2052
        %v2054 = vpop.f32.mrb[0].mxu0
        %v2055 = vadd.f32 %v1898, %v2054
        %v2056 = vpop.f32.mrb[0].mxu0
        %v2057 = vpop.f32.mrb[0].mxu0
        %2058 = vdwg.mxu0
        %2059 = vmatprep.subr.bf16.mxu0 %v1850
        %2060 = vmatpush1.bf16.msra.mxu0 %v1849
        %2061 = vmatprep.subr.bf16.mxu0 %v1860
        %2062 = vmatpush1.bf16.msra.mxu0 %v1859
        %2063 = vmatprep.subr.bf16.mxu0 %v1870
        %2064 = vmatpush1.bf16.msra.mxu0 %v1869
        %2065 = vmatprep.subr.bf16.mxu0 %v1880
        %2066 = vmatpush1.bf16.msra.mxu0 %v1879
        %2067 = vmatprep.subr.bf16.mxu0 %v1928
        %2068 = vmatpush1.bf16.msra.mxu0 %v1925
        %2069 = vmatprep.subr.bf16.mxu0 0
        %2070 = vmatpush1.bf16.msra.mxu0 0
        %2071 = vmatprep.subr.bf16.mxu0 0
        %2072 = vmatpush1.bf16.msra.mxu0 0
        %2073 = vmatprep.subr.bf16.mxu0 0
        %2074 = vmatpush1.bf16.msra.mxu0 0
        %2075 = vmatprep.subr.bf16.mxu0 0
        %2076 = vmatpush1.bf16.msra.mxu0 0
        %2077 = vmatprep.subr.bf16.mxu0 0
        %2078 = vmatpush1.bf16.msra.mxu0 0
        %2079 = vmatprep.subr.bf16.mxu0 0
        %2080 = vmatpush1.bf16.msra.mxu0 0
        %2081 = vmatprep.subr.bf16.mxu0 0
        %2082 = vmatpush1.bf16.msra.mxu0 0
        %2083 = vmatprep.subr.bf16.mxu0 0
        %2084 = vmatpush1.bf16.msra.mxu0 0
        %2085 = vmatprep.subr.bf16.mxu0 0
        %2086 = vmatpush1.bf16.msra.mxu0 0
        %2087 = vmatprep.subr.bf16.mxu0 0
        %2088 = vmatpush1.bf16.msra.mxu0 0
        %2089 = vmatprep.subr.bf16.mxu0 0
        %2090 = vmatpush1.bf16.msra.mxu0 0
        %2091 = vmatprep.mubr.bf16.mxu0 0
        %2092 = vmatmul.mubr.bf16.gmra.mrb[0].mxu0 %v1902
        %v2093 = vpop.f32.mrb[0].mxu0
        %v2094 = vadd.f32 %v1898, %v2093
        %v2095 = vpop.f32.mrb[0].mxu0
        %v2096 = vadd.f32 %v1898, %v2095
        %v2097 = vpop.f32.mrb[0].mxu0
        %v2098 = vpop.f32.mrb[0].mxu0
        %2099 = vdwg.mxu0
        %2100 = vmatprep.subr.bf16.mxu0 %v1852
        %2101 = vmatpush1.bf16.msra.mxu0 %v1851
        %2102 = vmatprep.subr.bf16.mxu0 %v1862
        %2103 = vmatpush1.bf16.msra.mxu0 %v1861
        %2104 = vmatprep.subr.bf16.mxu0 %v1872
        %2105 = vmatpush1.bf16.msra.mxu0 %v1871
        %2106 = vmatprep.subr.bf16.mxu0 %v1882
        %2107 = vmatpush1.bf16.msra.mxu0 %v1881
        %2108 = vmatprep.subr.bf16.mxu0 %v1934
        %2109 = vmatpush1.bf16.msra.mxu0 %v1931
        %2110 = vmatprep.subr.bf16.mxu0 0
        %2111 = vmatpush1.bf16.msra.mxu0 0
        %2112 = vmatprep.subr.bf16.mxu0 0
        %2113 = vmatpush1.bf16.msra.mxu0 0
        %2114 = vmatprep.subr.bf16.mxu0 0
        %2115 = vmatpush1.bf16.msra.mxu0 0
        %2116 = vmatprep.subr.bf16.mxu0 0
        %2117 = vmatpush1.bf16.msra.mxu0 0
        %2118 = vmatprep.subr.bf16.mxu0 0
        %2119 = vmatpush1.bf16.msra.mxu0 0
        %2120 = vmatprep.subr.bf16.mxu0 0
        %2121 = vmatpush1.bf16.msra.mxu0 0
        %2122 = vmatprep.subr.bf16.mxu0 0
        %2123 = vmatpush1.bf16.msra.mxu0 0
        %2124 = vmatprep.subr.bf16.mxu0 0
        %2125 = vmatpush1.bf16.msra.mxu0 0
        %2126 = vmatprep.subr.bf16.mxu0 0
        %2127 = vmatpush1.bf16.msra.mxu0 0
        %2128 = vmatprep.subr.bf16.mxu0 0
        %2129 = vmatpush1.bf16.msra.mxu0 0
        %2130 = vmatprep.subr.bf16.mxu0 0
        %2131 = vmatpush1.bf16.msra.mxu0 0
        %2132 = vmatprep.mubr.bf16.mxu0 0
        %2133 = vmatmul.mubr.bf16.gmra.mrb[0].mxu0 %v1902
        %v2134 = vpop.f32.mrb[0].mxu0
        %v2135 = vadd.f32 %v1898, %v2134
        %v2136 = vpop.f32.mrb[0].mxu0
        %v2137 = vadd.f32 %v1898, %v2136
        %v2138 = vpop.f32.mrb[0].mxu0
        %v2139 = vpop.f32.mrb[0].mxu0
        %2140 = vdwg.mxu0
        %v2141 = vmax.f32 %v1971, 0.0
        %v2142 = vmax.f32 %v1973, 0.0
        %v2143 = vmax.f32 %v2012, 0.0
        %v2144 = vmax.f32 %v2014, 0.0
        %v2145 = vmax.f32 %v2053, 0.0
        %v2146 = vmax.f32 %v2055, 0.0
        %v2147 = vmax.f32 %v2094, 0.0
        %v2148 = vmax.f32 %v2096, 0.0
        %v2149 = vmax.f32 %v2135, 0.0
        %v2150 = vmax.f32 %v2137, 0.0
        %2151 = vst [vmem:[#allocation2] sm:$0x3f] %v2141
        %2152 = vst [vmem:[#allocation2 + $0x8] sm:$0x3f] %v2142
        %2153 = vst [vmem:[#allocation2 + $0x10] sm:$0x3f] %v2143
        %2154 = vst [vmem:[#allocation2 + $0x18] sm:$0x3f] %v2144
        %2155 = vst [vmem:[#allocation2 + $0x20] sm:$0x3f] %v2145
        %2156 = vst [vmem:[#allocation2 + $0x28] sm:$0x3f] %v2146
        %2157 = vst [vmem:[#allocation2 + $0x30] sm:$0x3f] %v2147
        %2158 = vst [vmem:[#allocation2 + $0x38] sm:$0x3f] %v2148
        %2159 = vst [vmem:[#allocation2 + $0x40] sm:$0x3f] %v2149
        %2160 = vst [vmem:[#allocation2 + $0x48] sm:$0x3f] %v2150
        %v2161 = vld [vmem:[#allocation2] sm:$0x3f]
        %v2162 = vld [vmem:[#allocation2 + $0x8] sm:$0x3f]
        %v2163 = vld [vmem:[#allocation2 + $0x10] sm:$0x3f]
        %v2164 = vld [vmem:[#allocation2 + $0x18] sm:$0x3f]
        %v2165 = vld [vmem:[#allocation2 + $0x20] sm:$0x3f]
        %v2166 = vld [vmem:[#allocation2 + $0x28] sm:$0x3f]
        %v2167 = vld [vmem:[#allocation2 + $0x30] sm:$0x3f]
        %v2168 = vld [vmem:[#allocation2 + $0x38] sm:$0x3f]
        %v2169 = vld [vmem:[#allocation2 + $0x40] sm:$0x3f]
        %v2170 = vld [vmem:[#allocation2 + $0x48] sm:$0x3f]
        %2181 = vrot.lane.b32.xlu0 %v2161, 127
        %v2182 = vpop.permute.xlu0 %2181
        %2183 = vrot.lane.b32.xlu0 %v2162, 127
        %v2184 = vpop.permute.xlu0 %2183
        %2185 = vrot.lane.b32.xlu0 %v2163, 127
        %v2186 = vpop.permute.xlu0 %2185
        %2187 = vrot.lane.b32.xlu0 %v2164, 127
        %v2188 = vpop.permute.xlu0 %2187
        %2189 = vrot.lane.b32.xlu0 %v2165, 127
        %v2190 = vpop.permute.xlu0 %2189
        %2191 = vrot.lane.b32.xlu0 %v2166, 127
        %v2192 = vpop.permute.xlu0 %2191
        %2193 = vrot.lane.b32.xlu0 %v2167, 127
        %v2194 = vpop.permute.xlu0 %2193
        %2195 = vrot.lane.b32.xlu0 %v2168, 127
        %v2196 = vpop.permute.xlu0 %2195
        %2197 = vrot.lane.b32.xlu0 %v2169, 127
        %v2198 = vpop.permute.xlu0 %2197
        %2199 = vrot.lane.b32.xlu0 %v2170, 127
        %v2200 = vpop.permute.xlu0 %2199
        %v2201 = vsel %vm509, %v2182, %v2184
        %v2202 = vsel %vm509, %v2184, %v2186
        %v2203 = vsel %vm509, %v2186, %v2188
        %v2204 = vsel %vm509, %v2188, %v2190
        %v2205 = vsel %vm509, %v2190, %v2192
        %v2206 = vsel %vm509, %v2192, %v2194
        %v2207 = vsel %vm509, %v2194, %v2196
        %v2208 = vsel %vm509, %v2196, %v2198
        %v2209 = vsel %vm509, %v2198, %v2200
        %v2219 = vmax.f32 %v2161, %v2201
        %v2220 = vmax.f32 %v2162, %v2202
        %v2221 = vmax.f32 %v2163, %v2203
        %v2222 = vmax.f32 %v2164, %v2204
        %v2223 = vmax.f32 %v2165, %v2205
        %v2224 = vmax.f32 %v2166, %v2206
        %v2225 = vmax.f32 %v2167, %v2207
        %v2226 = vmax.f32 %v2168, %v2208
        %v2227 = vmax.f32 %v2169, %v2209
        %v2229 = vmax.f32 %v2170, %v2200
        %2240 = vrot.lane.b32.xlu0 %v2219, 96
        %v2241 = vpop.permute.xlu0 %2240
        %2242 = vrot.lane.b32.xlu0 %v2220, 96
        %v2243 = vpop.permute.xlu0 %2242
        %2244 = vrot.lane.b32.xlu0 %v2221, 96
        %v2245 = vpop.permute.xlu0 %2244
        %2246 = vrot.lane.b32.xlu0 %v2222, 96
        %v2247 = vpop.permute.xlu0 %2246
        %2248 = vrot.lane.b32.xlu0 %v2223, 96
        %v2249 = vpop.permute.xlu0 %2248
        %2250 = vrot.lane.b32.xlu0 %v2224, 96
        %v2251 = vpop.permute.xlu0 %2250
        %2252 = vrot.lane.b32.xlu0 %v2225, 96
        %v2253 = vpop.permute.xlu0 %2252
        %2254 = vrot.lane.b32.xlu0 %v2226, 96
        %v2255 = vpop.permute.xlu0 %2254
        %2256 = vrot.lane.b32.xlu0 %v2227, 96
        %v2257 = vpop.permute.xlu0 %2256
        %2258 = vrot.lane.b32.xlu0 %v2229, 96
        %v2259 = vpop.permute.xlu0 %2258
        %v2260 = vsel %vm720, %v2241, %v2243
        %v2261 = vsel %vm720, %v2243, %v2245
        %v2262 = vsel %vm720, %v2245, %v2247
        %v2263 = vsel %vm720, %v2247, %v2249
        %v2264 = vsel %vm720, %v2249, %v2251
        %v2265 = vsel %vm720, %v2251, %v2253
        %v2266 = vsel %vm720, %v2253, %v2255
        %v2267 = vsel %vm720, %v2255, %v2257
        %v2268 = vsel %vm720, %v2257, %v2259
        %v2278 = vmax.f32 %v2219, %v2260
        %v2279 = vmax.f32 %v2220, %v2261
        %v2280 = vmax.f32 %v2221, %v2262
        %v2281 = vmax.f32 %v2222, %v2263
        %v2282 = vmax.f32 %v2223, %v2264
        %v2283 = vmax.f32 %v2224, %v2265
        %v2284 = vmax.f32 %v2225, %v2266
        %v2285 = vmax.f32 %v2226, %v2267
        %v2286 = vmax.f32 %v2227, %v2268
        %2287 = vst [vmem:[#allocation3] sm:$0x3f] %v2278
        %2288 = vst [vmem:[#allocation3 + $0x8] sm:$0x3f] %v2279
        %2289 = vst [vmem:[#allocation3 + $0x10] sm:$0x3f] %v2280
        %2290 = vst [vmem:[#allocation3 + $0x18] sm:$0x3f] %v2281
        %2291 = vst [vmem:[#allocation3 + $0x20] sm:$0x3f] %v2282
        %2292 = vst [vmem:[#allocation3 + $0x28] sm:$0x3f] %v2283
        %2293 = vst [vmem:[#allocation3 + $0x30] sm:$0x3f] %v2284
        %2294 = vst [vmem:[#allocation3 + $0x38] sm:$0x3f] %v2285
        %2295 = vst [vmem:[#allocation3 + $0x40] sm:$0x3f] %v2286
        %v2296 = vld [vmem:[#allocation3] sm:$0x3f]
        %v2297 = vld [vmem:[#allocation3 + $0x8] sm:$0x3f]
        %v2298 = vld [vmem:[#allocation3 + $0x10] sm:$0x3f]
        %v2299 = vld [vmem:[#allocation3 + $0x18] sm:$0x3f]
        %v2300 = vld [vmem:[#allocation3 + $0x20] sm:$0x3f]
        %v2301 = vld [vmem:[#allocation3 + $0x28] sm:$0x3f]
        %v2302 = vld [vmem:[#allocation3 + $0x30] sm:$0x3f]
        %v2303 = vld [vmem:[#allocation3 + $0x38] sm:$0x3f]
        %v2304 = vld [vmem:[#allocation3 + $0x40] sm:$0x3f]
        %v2312 = vrot.slane %v2296, 2
        %v2313 = vrot.slane %v2297, 2
        %v2314 = vrot.slane %v2298, 2
        %v2315 = vrot.slane %v2299, 2
        %v2316 = vrot.slane %v2300, 2
        %v2317 = vrot.slane %v2301, 2
        %v2318 = vrot.slane %v2302, 2
        %2319 = vrot.lane.b32.xlu0 %v2312, 126
        %v2320 = vpop.permute.xlu0 %2319
        %2321 = vrot.lane.b32.xlu0 %v2313, 126
        %v2322 = vpop.permute.xlu0 %2321
        %2323 = vrot.lane.b32.xlu0 %v2314, 126
        %v2324 = vpop.permute.xlu0 %2323
        %2325 = vrot.lane.b32.xlu0 %v2315, 126
        %v2326 = vpop.permute.xlu0 %2325
        %2327 = vrot.lane.b32.xlu0 %v2316, 126
        %v2328 = vpop.permute.xlu0 %2327
        %2329 = vrot.lane.b32.xlu0 %v2317, 126
        %v2330 = vpop.permute.xlu0 %2329
        %2331 = vrot.lane.b32.xlu0 %v2318, 126
        %v2332 = vpop.permute.xlu0 %2331
        %v2333 = vsel %vm563, %v2320, %v2322
        %v2334 = vsel %vm563, %v2322, %v2324
        %v2335 = vsel %vm563, %v2324, %v2326
        %v2336 = vsel %vm563, %v2326, %v2328
        %v2337 = vsel %vm563, %v2328, %v2330
        %v2338 = vsel %vm563, %v2330, %v2332
        %v2345 = vrot.slane %v2296, 4
        %v2346 = vrot.slane %v2297, 4
        %v2347 = vrot.slane %v2298, 4
        %v2348 = vrot.slane %v2299, 4
        %v2349 = vrot.slane %v2300, 4
        %v2350 = vrot.slane %v2301, 4
        %v2351 = vrot.slane %v2302, 4
        %2352 = vrot.lane.b32.xlu0 %v2345, 124
        %v2353 = vpop.permute.xlu0 %2352
        %2354 = vrot.lane.b32.xlu0 %v2346, 124
        %v2355 = vpop.permute.xlu0 %2354
        %2356 = vrot.lane.b32.xlu0 %v2347, 124
        %v2357 = vpop.permute.xlu0 %2356
        %2358 = vrot.lane.b32.xlu0 %v2348, 124
        %v2359 = vpop.permute.xlu0 %2358
        %2360 = vrot.lane.b32.xlu0 %v2349, 124
        %v2361 = vpop.permute.xlu0 %2360
        %2362 = vrot.lane.b32.xlu0 %v2350, 124
        %v2363 = vpop.permute.xlu0 %2362
        %2364 = vrot.lane.b32.xlu0 %v2351, 124
        %v2365 = vpop.permute.xlu0 %2364
        %v2366 = vsel %vm666, %v2353, %v2355
        %v2367 = vsel %vm666, %v2355, %v2357
        %v2368 = vsel %vm666, %v2357, %v2359
        %v2369 = vsel %vm666, %v2359, %v2361
        %v2370 = vsel %vm666, %v2361, %v2363
        %v2371 = vsel %vm666, %v2363, %v2365
        %v2378 = vrot.slane %v2296, 6
        %v2379 = vrot.slane %v2297, 6
        %v2380 = vrot.slane %v2298, 6
        %v2381 = vrot.slane %v2299, 6
        %v2382 = vrot.slane %v2300, 6
        %v2383 = vrot.slane %v2301, 6
        %v2384 = vrot.slane %v2302, 6
        %2385 = vrot.lane.b32.xlu0 %v2378, 122
        %v2386 = vpop.permute.xlu0 %2385
        %2387 = vrot.lane.b32.xlu0 %v2379, 122
        %v2388 = vpop.permute.xlu0 %2387
        %2389 = vrot.lane.b32.xlu0 %v2380, 122
        %v2390 = vpop.permute.xlu0 %2389
        %2391 = vrot.lane.b32.xlu0 %v2381, 122
        %v2392 = vpop.permute.xlu0 %2391
        %2393 = vrot.lane.b32.xlu0 %v2382, 122
        %v2394 = vpop.permute.xlu0 %2393
        %2395 = vrot.lane.b32.xlu0 %v2383, 122
        %v2396 = vpop.permute.xlu0 %2395
        %2397 = vrot.lane.b32.xlu0 %v2384, 122
        %v2398 = vpop.permute.xlu0 %2397
        %vm2399 = vcmask 998400
        %v2400 = vsel %vm2399, %v2386, %v2388
        %v2401 = vsel %vm2399, %v2388, %v2390
        %v2402 = vsel %vm2399, %v2390, %v2392
        %v2403 = vsel %vm2399, %v2392, %v2394
        %v2404 = vsel %vm2399, %v2394, %v2396
        %v2405 = vsel %vm2399, %v2396, %v2398
        %2412 = vrot.lane.b32.xlu0 %v2296, 120
        %v2413 = vpop.permute.xlu0 %2412
        %2414 = vrot.lane.b32.xlu0 %v2297, 120
        %v2415 = vpop.permute.xlu0 %2414
        %2416 = vrot.lane.b32.xlu0 %v2298, 120
        %v2417 = vpop.permute.xlu0 %2416
        %2418 = vrot.lane.b32.xlu0 %v2299, 120
        %v2419 = vpop.permute.xlu0 %2418
        %2420 = vrot.lane.b32.xlu0 %v2300, 120
        %v2421 = vpop.permute.xlu0 %2420
        %2422 = vrot.lane.b32.xlu0 %v2301, 120
        %v2423 = vpop.permute.xlu0 %2422
        %2424 = vrot.lane.b32.xlu0 %v2302, 120
        %v2425 = vpop.permute.xlu0 %2424
        %vm2426 = vcmask 982016
        %v2427 = vsel %vm2426, %v2413, %v2415
        %v2428 = vsel %vm2426, %v2415, %v2417
        %v2429 = vsel %vm2426, %v2417, %v2419
        %v2430 = vsel %vm2426, %v2419, %v2421
        %v2431 = vsel %vm2426, %v2421, %v2423
        %v2432 = vsel %vm2426, %v2423, %v2425
        %2439 = vrot.lane.b32.xlu0 %v2312, 64
        %v2440 = vpop.permute.xlu0 %2439
        %2441 = vrot.lane.b32.xlu0 %v2313, 64
        %v2442 = vpop.permute.xlu0 %2441
        %2443 = vrot.lane.b32.xlu0 %v2314, 64
        %v2444 = vpop.permute.xlu0 %2443
        %2445 = vrot.lane.b32.xlu0 %v2315, 64
        %v2446 = vpop.permute.xlu0 %2445
        %2447 = vrot.lane.b32.xlu0 %v2316, 64
        %v2448 = vpop.permute.xlu0 %2447
        %2449 = vrot.lane.b32.xlu0 %v2317, 64
        %v2450 = vpop.permute.xlu0 %2449
        %2451 = vrot.lane.b32.xlu0 %v2318, 64
        %v2452 = vpop.permute.xlu0 %2451
        %v2453 = vsel %vm957, %v2440, %v2442
        %v2454 = vsel %vm957, %v2442, %v2444
        %v2455 = vsel %vm957, %v2444, %v2446
        %v2456 = vsel %vm957, %v2446, %v2448
        %v2457 = vsel %vm957, %v2448, %v2450
        %v2458 = vsel %vm957, %v2450, %v2452
        %2465 = vrot.lane.b32.xlu0 %v2345, 62
        %v2466 = vpop.permute.xlu0 %2465
        %2467 = vrot.lane.b32.xlu0 %v2346, 62
        %v2468 = vpop.permute.xlu0 %2467
        %2469 = vrot.lane.b32.xlu0 %v2347, 62
        %v2470 = vpop.permute.xlu0 %2469
        %2471 = vrot.lane.b32.xlu0 %v2348, 62
        %v2472 = vpop.permute.xlu0 %2471
        %2473 = vrot.lane.b32.xlu0 %v2349, 62
        %v2474 = vpop.permute.xlu0 %2473
        %2475 = vrot.lane.b32.xlu0 %v2350, 62
        %v2476 = vpop.permute.xlu0 %2475
        %2477 = vrot.lane.b32.xlu0 %v2351, 62
        %v2478 = vpop.permute.xlu0 %2477
        %v2479 = vsel %vm1043, %v2466, %v2468
        %v2480 = vsel %vm1043, %v2468, %v2470
        %v2481 = vsel %vm1043, %v2470, %v2472
        %v2482 = vsel %vm1043, %v2472, %v2474
        %v2483 = vsel %vm1043, %v2474, %v2476
        %v2484 = vsel %vm1043, %v2476, %v2478
        %2491 = vrot.lane.b32.xlu0 %v2378, 60
        %v2492 = vpop.permute.xlu0 %2491
        %2493 = vrot.lane.b32.xlu0 %v2379, 60
        %v2494 = vpop.permute.xlu0 %2493
        %2495 = vrot.lane.b32.xlu0 %v2380, 60
        %v2496 = vpop.permute.xlu0 %2495
        %2497 = vrot.lane.b32.xlu0 %v2381, 60
        %v2498 = vpop.permute.xlu0 %2497
        %2499 = vrot.lane.b32.xlu0 %v2382, 60
        %v2500 = vpop.permute.xlu0 %2499
        %2501 = vrot.lane.b32.xlu0 %v2383, 60
        %v2502 = vpop.permute.xlu0 %2501
        %2503 = vrot.lane.b32.xlu0 %v2384, 60
        %v2504 = vpop.permute.xlu0 %2503
        %v2505 = vsel %vm1129, %v2492, %v2494
        %v2506 = vsel %vm1129, %v2494, %v2496
        %v2507 = vsel %vm1129, %v2496, %v2498
        %v2508 = vsel %vm1129, %v2498, %v2500
        %v2509 = vsel %vm1129, %v2500, %v2502
        %v2510 = vsel %vm1129, %v2502, %v2504
        %2517 = vrot.lane.b32.xlu0 %v2296, 58
        %v2518 = vpop.permute.xlu0 %2517
        %2519 = vrot.lane.b32.xlu0 %v2297, 58
        %v2520 = vpop.permute.xlu0 %2519
        %2521 = vrot.lane.b32.xlu0 %v2298, 58
        %v2522 = vpop.permute.xlu0 %2521
        %2523 = vrot.lane.b32.xlu0 %v2299, 58
        %v2524 = vpop.permute.xlu0 %2523
        %2525 = vrot.lane.b32.xlu0 %v2300, 58
        %v2526 = vpop.permute.xlu0 %2525
        %2527 = vrot.lane.b32.xlu0 %v2301, 58
        %v2528 = vpop.permute.xlu0 %2527
        %2529 = vrot.lane.b32.xlu0 %v2302, 58
        %v2530 = vpop.permute.xlu0 %2529
        %vm2531 = vcmask 474112
        %v2532 = vsel %vm2531, %v2518, %v2520
        %v2533 = vsel %vm2531, %v2520, %v2522
        %v2534 = vsel %vm2531, %v2522, %v2524
        %v2535 = vsel %vm2531, %v2524, %v2526
        %v2536 = vsel %vm2531, %v2526, %v2528
        %v2537 = vsel %vm2531, %v2528, %v2530
        %2544 = vrot.lane.b32.xlu0 %v2312, 56
        %v2545 = vpop.permute.xlu0 %2544
        %2546 = vrot.lane.b32.xlu0 %v2313, 56
        %v2547 = vpop.permute.xlu0 %2546
        %2548 = vrot.lane.b32.xlu0 %v2314, 56
        %v2549 = vpop.permute.xlu0 %2548
        %2550 = vrot.lane.b32.xlu0 %v2315, 56
        %v2551 = vpop.permute.xlu0 %2550
        %2552 = vrot.lane.b32.xlu0 %v2316, 56
        %v2553 = vpop.permute.xlu0 %2552
        %2554 = vrot.lane.b32.xlu0 %v2317, 56
        %v2555 = vpop.permute.xlu0 %2554
        %2556 = vrot.lane.b32.xlu0 %v2318, 56
        %v2557 = vpop.permute.xlu0 %2556
        %vm2558 = vcmask 457728
        %v2559 = vsel %vm2558, %v2545, %v2547
        %v2560 = vsel %vm2558, %v2547, %v2549
        %v2561 = vsel %vm2558, %v2549, %v2551
        %v2562 = vsel %vm2558, %v2551, %v2553
        %v2563 = vsel %vm2558, %v2553, %v2555
        %v2564 = vsel %vm2558, %v2555, %v2557
        %v2578 = vrot.slane %v2303, 6
        %2579 = vrot.lane.b32.xlu0 %v2379, 126
        %v2580 = vpop.permute.xlu0 %2579
        %2581 = vrot.lane.b32.xlu0 %v2380, 126
        %v2582 = vpop.permute.xlu0 %2581
        %2583 = vrot.lane.b32.xlu0 %v2381, 126
        %v2584 = vpop.permute.xlu0 %2583
        %2585 = vrot.lane.b32.xlu0 %v2382, 126
        %v2586 = vpop.permute.xlu0 %2585
        %2587 = vrot.lane.b32.xlu0 %v2383, 126
        %v2588 = vpop.permute.xlu0 %2587
        %2589 = vrot.lane.b32.xlu0 %v2384, 126
        %v2590 = vpop.permute.xlu0 %2589
        %2591 = vrot.lane.b32.xlu0 %v2578, 126
        %v2592 = vpop.permute.xlu0 %2591
        %v2593 = vsel %vm563, %v2580, %v2582
        %v2594 = vsel %vm563, %v2582, %v2584
        %v2595 = vsel %vm563, %v2584, %v2586
        %v2596 = vsel %vm563, %v2586, %v2588
        %v2597 = vsel %vm563, %v2588, %v2590
        %v2598 = vsel %vm563, %v2590, %v2592
        %2605 = vrot.lane.b32.xlu0 %v2297, 124
        %v2606 = vpop.permute.xlu0 %2605
        %2607 = vrot.lane.b32.xlu0 %v2298, 124
        %v2608 = vpop.permute.xlu0 %2607
        %2609 = vrot.lane.b32.xlu0 %v2299, 124
        %v2610 = vpop.permute.xlu0 %2609
        %2611 = vrot.lane.b32.xlu0 %v2300, 124
        %v2612 = vpop.permute.xlu0 %2611
        %2613 = vrot.lane.b32.xlu0 %v2301, 124
        %v2614 = vpop.permute.xlu0 %2613
        %2615 = vrot.lane.b32.xlu0 %v2302, 124
        %v2616 = vpop.permute.xlu0 %2615
        %2617 = vrot.lane.b32.xlu0 %v2303, 124
        %v2618 = vpop.permute.xlu0 %2617
        %v2619 = vsel %vm666, %v2606, %v2608
        %v2620 = vsel %vm666, %v2608, %v2610
        %v2621 = vsel %vm666, %v2610, %v2612
        %v2622 = vsel %vm666, %v2612, %v2614
        %v2623 = vsel %vm666, %v2614, %v2616
        %v2624 = vsel %vm666, %v2616, %v2618
        %v2631 = vrot.slane %v2303, 2
        %2632 = vrot.lane.b32.xlu0 %v2313, 122
        %v2633 = vpop.permute.xlu0 %2632
        %2634 = vrot.lane.b32.xlu0 %v2314, 122
        %v2635 = vpop.permute.xlu0 %2634
        %2636 = vrot.lane.b32.xlu0 %v2315, 122
        %v2637 = vpop.permute.xlu0 %2636
        %2638 = vrot.lane.b32.xlu0 %v2316, 122
        %v2639 = vpop.permute.xlu0 %2638
        %2640 = vrot.lane.b32.xlu0 %v2317, 122
        %v2641 = vpop.permute.xlu0 %2640
        %2642 = vrot.lane.b32.xlu0 %v2318, 122
        %v2643 = vpop.permute.xlu0 %2642
        %2644 = vrot.lane.b32.xlu0 %v2631, 122
        %v2645 = vpop.permute.xlu0 %2644
        %v2646 = vsel %vm2399, %v2633, %v2635
        %v2647 = vsel %vm2399, %v2635, %v2637
        %v2648 = vsel %vm2399, %v2637, %v2639
        %v2649 = vsel %vm2399, %v2639, %v2641
        %v2650 = vsel %vm2399, %v2641, %v2643
        %v2651 = vsel %vm2399, %v2643, %v2645
        %v2658 = vrot.slane %v2303, 4
        %2659 = vrot.lane.b32.xlu0 %v2346, 120
        %v2660 = vpop.permute.xlu0 %2659
        %2661 = vrot.lane.b32.xlu0 %v2347, 120
        %v2662 = vpop.permute.xlu0 %2661
        %2663 = vrot.lane.b32.xlu0 %v2348, 120
        %v2664 = vpop.permute.xlu0 %2663
        %2665 = vrot.lane.b32.xlu0 %v2349, 120
        %v2666 = vpop.permute.xlu0 %2665
        %2667 = vrot.lane.b32.xlu0 %v2350, 120
        %v2668 = vpop.permute.xlu0 %2667
        %2669 = vrot.lane.b32.xlu0 %v2351, 120
        %v2670 = vpop.permute.xlu0 %2669
        %2671 = vrot.lane.b32.xlu0 %v2658, 120
        %v2672 = vpop.permute.xlu0 %2671
        %v2673 = vsel %vm2426, %v2660, %v2662
        %v2674 = vsel %vm2426, %v2662, %v2664
        %v2675 = vsel %vm2426, %v2664, %v2666
        %v2676 = vsel %vm2426, %v2666, %v2668
        %v2677 = vsel %vm2426, %v2668, %v2670
        %v2678 = vsel %vm2426, %v2670, %v2672
        %2685 = vrot.lane.b32.xlu0 %v2379, 64
        %v2686 = vpop.permute.xlu0 %2685
        %2687 = vrot.lane.b32.xlu0 %v2380, 64
        %v2688 = vpop.permute.xlu0 %2687
        %2689 = vrot.lane.b32.xlu0 %v2381, 64
        %v2690 = vpop.permute.xlu0 %2689
        %2691 = vrot.lane.b32.xlu0 %v2382, 64
        %v2692 = vpop.permute.xlu0 %2691
        %2693 = vrot.lane.b32.xlu0 %v2383, 64
        %v2694 = vpop.permute.xlu0 %2693
        %2695 = vrot.lane.b32.xlu0 %v2384, 64
        %v2696 = vpop.permute.xlu0 %2695
        %2697 = vrot.lane.b32.xlu0 %v2578, 64
        %v2698 = vpop.permute.xlu0 %2697
        %v2699 = vsel %vm957, %v2686, %v2688
        %v2700 = vsel %vm957, %v2688, %v2690
        %v2701 = vsel %vm957, %v2690, %v2692
        %v2702 = vsel %vm957, %v2692, %v2694
        %v2703 = vsel %vm957, %v2694, %v2696
        %v2704 = vsel %vm957, %v2696, %v2698
        %v2711 = vsel %vm1204, %v2296, %v2333
        %v2712 = vsel %vm1204, %v2297, %v2334
        %v2713 = vsel %vm1204, %v2298, %v2335
        %v2714 = vsel %vm1204, %v2299, %v2336
        %v2715 = vsel %vm1204, %v2300, %v2337
        %v2716 = vsel %vm1204, %v2301, %v2338
        %v2717 = vsel %vm1226, %v2333, %v2366
        %v2718 = vsel %vm1226, %v2334, %v2367
        %v2719 = vsel %vm1226, %v2335, %v2368
        %v2720 = vsel %vm1226, %v2336, %v2369
        %v2721 = vsel %vm1226, %v2337, %v2370
        %v2722 = vsel %vm1226, %v2338, %v2371
        %v2723 = vsel %vm1248, %v2366, %v2400
        %v2724 = vsel %vm1248, %v2367, %v2401
        %v2725 = vsel %vm1248, %v2368, %v2402
        %v2726 = vsel %vm1248, %v2369, %v2403
        %v2727 = vsel %vm1248, %v2370, %v2404
        %v2728 = vsel %vm1248, %v2371, %v2405
        %v2729 = vsel %vm1204, %v2427, %v2453
        %v2730 = vsel %vm1204, %v2428, %v2454
        %v2731 = vsel %vm1204, %v2429, %v2455
        %v2732 = vsel %vm1204, %v2430, %v2456
        %v2733 = vsel %vm1204, %v2431, %v2457
        %v2734 = vsel %vm1204, %v2432, %v2458
        %v2735 = vsel %vm1226, %v2453, %v2479
        %v2736 = vsel %vm1226, %v2454, %v2480
        %v2737 = vsel %vm1226, %v2455, %v2481
        %v2738 = vsel %vm1226, %v2456, %v2482
        %v2739 = vsel %vm1226, %v2457, %v2483
        %v2740 = vsel %vm1226, %v2458, %v2484
        %v2741 = vsel %vm1248, %v2479, %v2505
        %v2742 = vsel %vm1248, %v2480, %v2506
        %v2743 = vsel %vm1248, %v2481, %v2507
        %v2744 = vsel %vm1248, %v2482, %v2508
        %v2745 = vsel %vm1248, %v2483, %v2509
        %v2746 = vsel %vm1248, %v2484, %v2510
        %v2747 = vsel %vm1204, %v2532, %v2559
        %v2748 = vsel %vm1204, %v2533, %v2560
        %v2749 = vsel %vm1204, %v2534, %v2561
        %v2750 = vsel %vm1204, %v2535, %v2562
        %v2751 = vsel %vm1204, %v2536, %v2563
        %v2752 = vsel %vm1204, %v2537, %v2564
        %v2753 = vsel %vm1226, %v2559, %v2346
        %v2754 = vsel %vm1226, %v2560, %v2347
        %v2755 = vsel %vm1226, %v2561, %v2348
        %v2756 = vsel %vm1226, %v2562, %v2349
        %v2757 = vsel %vm1226, %v2563, %v2350
        %v2758 = vsel %vm1226, %v2564, %v2351
        %v2759 = vsel %vm1248, %v2346, %v2593
        %v2760 = vsel %vm1248, %v2347, %v2594
        %v2761 = vsel %vm1248, %v2348, %v2595
        %v2762 = vsel %vm1248, %v2349, %v2596
        %v2763 = vsel %vm1248, %v2350, %v2597
        %v2764 = vsel %vm1248, %v2351, %v2598
        %v2765 = vsel %vm1204, %v2619, %v2646
        %v2766 = vsel %vm1204, %v2620, %v2647
        %v2767 = vsel %vm1204, %v2621, %v2648
        %v2768 = vsel %vm1204, %v2622, %v2649
        %v2769 = vsel %vm1204, %v2623, %v2650
        %v2770 = vsel %vm1204, %v2624, %v2651
        %v2771 = vsel %vm1226, %v2646, %v2673
        %v2772 = vsel %vm1226, %v2647, %v2674
        %v2773 = vsel %vm1226, %v2648, %v2675
        %v2774 = vsel %vm1226, %v2649, %v2676
        %v2775 = vsel %vm1226, %v2650, %v2677
        %v2776 = vsel %vm1226, %v2651, %v2678
        %v2777 = vsel %vm1248, %v2673, %v2699
        %v2778 = vsel %vm1248, %v2674, %v2700
        %v2779 = vsel %vm1248, %v2675, %v2701
        %v2780 = vsel %vm1248, %v2676, %v2702
        %v2781 = vsel %vm1248, %v2677, %v2703
        %v2782 = vsel %vm1248, %v2678, %v2704
        %2783 = vrot.lane.b32.xlu0 %v2631, 126
        %v2784 = vpop.permute.xlu0 %2783
        %v2785 = vsel %vm563, %v2332, %v2784
        %2788 = vrot.lane.b32.xlu0 %v2658, 124
        %v2789 = vpop.permute.xlu0 %2788
        %v2790 = vsel %vm666, %v2365, %v2789
        %2793 = vrot.lane.b32.xlu0 %v2578, 122
        %v2794 = vpop.permute.xlu0 %2793
        %v2795 = vsel %vm2399, %v2398, %v2794
        %2798 = vrot.lane.b32.xlu0 %v2298, 66
        %v2799 = vpop.permute.xlu0 %2798
        %2800 = vrot.lane.b32.xlu0 %v2299, 66
        %v2801 = vpop.permute.xlu0 %2800
        %2802 = vrot.lane.b32.xlu0 %v2300, 66
        %v2803 = vpop.permute.xlu0 %2802
        %2804 = vrot.lane.b32.xlu0 %v2301, 66
        %v2805 = vpop.permute.xlu0 %2804
        %2806 = vrot.lane.b32.xlu0 %v2302, 66
        %v2807 = vpop.permute.xlu0 %2806
        %2808 = vrot.lane.b32.xlu0 %v2303, 66
        %v2809 = vpop.permute.xlu0 %2808
        %vm2810 = vcmask 539648
        %v2811 = vsel %vm2810, %v2799, %v2801
        %v2812 = vsel %vm2810, %v2801, %v2803
        %v2813 = vsel %vm2810, %v2803, %v2805
        %v2814 = vsel %vm2810, %v2805, %v2807
        %v2815 = vsel %vm2810, %v2807, %v2809
        %v2824 = vrot.slane %v2304, 2
        %2825 = vrot.lane.b32.xlu0 %v2631, 64
        %v2826 = vpop.permute.xlu0 %2825
        %2827 = vrot.lane.b32.xlu0 %v2824, 64
        %v2828 = vpop.permute.xlu0 %2827
        %v2829 = vsel %vm957, %v2452, %v2826
        %v2830 = vsel %vm957, %v2826, %v2828
        %v2834 = vrot.slane %v2304, 4
        %2835 = vrot.lane.b32.xlu0 %v2658, 62
        %v2836 = vpop.permute.xlu0 %2835
        %2837 = vrot.lane.b32.xlu0 %v2834, 62
        %v2838 = vpop.permute.xlu0 %2837
        %v2839 = vsel %vm1043, %v2478, %v2836
        %v2840 = vsel %vm1043, %v2836, %v2838
        %v2844 = vrot.slane %v2304, 6
        %2845 = vrot.lane.b32.xlu0 %v2578, 60
        %v2846 = vpop.permute.xlu0 %2845
        %2847 = vrot.lane.b32.xlu0 %v2844, 60
        %v2848 = vpop.permute.xlu0 %2847
        %v2849 = vsel %vm1129, %v2504, %v2846
        %v2850 = vsel %vm1129, %v2846, %v2848
        %2854 = vrot.lane.b32.xlu0 %v2303, 58
        %v2855 = vpop.permute.xlu0 %2854
        %2856 = vrot.lane.b32.xlu0 %v2304, 58
        %v2857 = vpop.permute.xlu0 %2856
        %v2858 = vsel %vm2531, %v2530, %v2855
        %v2859 = vsel %vm2531, %v2855, %v2857
        %v2860 = vsel %vm1204, %v2302, %v2785
        %v2861 = vsel %vm1204, %v2303, %v2784
        %v2862 = vsel %vm1226, %v2785, %v2790
        %v2863 = vsel %vm1226, %v2784, %v2789
        %v2864 = vsel %vm1248, %v2790, %v2795
        %v2865 = vsel %vm1248, %v2789, %v2794
        %v2866 = vsel %vm1204, %v2799, %v2444
        %v2867 = vsel %vm1204, %v2811, %v2455
        %v2868 = vsel %vm1204, %v2812, %v2456
        %v2869 = vsel %vm1204, %v2813, %v2457
        %v2870 = vsel %vm1204, %v2814, %v2458
        %v2871 = vsel %vm1204, %v2815, %v2829
        %v2872 = vsel %vm1204, %v2809, %v2830
        %v2873 = vsel %vm1226, %v2444, %v2470
        %v2874 = vsel %vm1226, %v2829, %v2839
        %v2875 = vsel %vm1226, %v2830, %v2840
        %v2876 = vsel %vm1248, %v2470, %v2496
        %v2877 = vsel %vm1248, %v2839, %v2849
        %v2878 = vsel %vm1248, %v2840, %v2850
        %2921 = vrot.lane.b32.xlu0 %v2712, 62
        %v2922 = vpop.permute.xlu0 %2921
        %2923 = vrot.lane.b32.xlu0 %v2713, 62
        %v2924 = vpop.permute.xlu0 %2923
        %2925 = vrot.lane.b32.xlu0 %v2714, 62
        %v2926 = vpop.permute.xlu0 %2925
        %2927 = vrot.lane.b32.xlu0 %v2715, 62
        %v2928 = vpop.permute.xlu0 %2927
        %2929 = vrot.lane.b32.xlu0 %v2716, 62
        %v2930 = vpop.permute.xlu0 %2929
        %2931 = vrot.lane.b32.xlu0 %v2860, 62
        %v2932 = vpop.permute.xlu0 %2931
        %2933 = vrot.lane.b32.xlu0 %v2861, 62
        %v2934 = vpop.permute.xlu0 %2933
        %2935 = vrot.lane.b32.xlu0 %v2718, 62
        %v2936 = vpop.permute.xlu0 %2935
        %2937 = vrot.lane.b32.xlu0 %v2719, 62
        %v2938 = vpop.permute.xlu0 %2937
        %2939 = vrot.lane.b32.xlu0 %v2720, 62
        %v2940 = vpop.permute.xlu0 %2939
        %2941 = vrot.lane.b32.xlu0 %v2721, 62
        %v2942 = vpop.permute.xlu0 %2941
        %2943 = vrot.lane.b32.xlu0 %v2722, 62
        %v2944 = vpop.permute.xlu0 %2943
        %2945 = vrot.lane.b32.xlu0 %v2862, 62
        %v2946 = vpop.permute.xlu0 %2945
        %2947 = vrot.lane.b32.xlu0 %v2863, 62
        %v2948 = vpop.permute.xlu0 %2947
        %2949 = vrot.lane.b32.xlu0 %v2724, 62
        %v2950 = vpop.permute.xlu0 %2949
        %2951 = vrot.lane.b32.xlu0 %v2725, 62
        %v2952 = vpop.permute.xlu0 %2951
        %2953 = vrot.lane.b32.xlu0 %v2726, 62
        %v2954 = vpop.permute.xlu0 %2953
        %2955 = vrot.lane.b32.xlu0 %v2727, 62
        %v2956 = vpop.permute.xlu0 %2955
        %2957 = vrot.lane.b32.xlu0 %v2728, 62
        %v2958 = vpop.permute.xlu0 %2957
        %2959 = vrot.lane.b32.xlu0 %v2864, 62
        %v2960 = vpop.permute.xlu0 %2959
        %2961 = vrot.lane.b32.xlu0 %v2865, 62
        %v2962 = vpop.permute.xlu0 %2961
        %2963 = vrot.lane.b32.xlu0 %v2866, 62
        %v2964 = vpop.permute.xlu0 %2963
        %2965 = vrot.lane.b32.xlu0 %v2867, 62
        %v2966 = vpop.permute.xlu0 %2965
        %2967 = vrot.lane.b32.xlu0 %v2868, 62
        %v2968 = vpop.permute.xlu0 %2967
        %2969 = vrot.lane.b32.xlu0 %v2869, 62
        %v2970 = vpop.permute.xlu0 %2969
        %2971 = vrot.lane.b32.xlu0 %v2870, 62
        %v2972 = vpop.permute.xlu0 %2971
        %2973 = vrot.lane.b32.xlu0 %v2871, 62
        %v2974 = vpop.permute.xlu0 %2973
        %2975 = vrot.lane.b32.xlu0 %v2872, 62
        %v2976 = vpop.permute.xlu0 %2975
        %2977 = vrot.lane.b32.xlu0 %v2873, 62
        %v2978 = vpop.permute.xlu0 %2977
        %2979 = vrot.lane.b32.xlu0 %v2737, 62
        %v2980 = vpop.permute.xlu0 %2979
        %2981 = vrot.lane.b32.xlu0 %v2738, 62
        %v2982 = vpop.permute.xlu0 %2981
        %2983 = vrot.lane.b32.xlu0 %v2739, 62
        %v2984 = vpop.permute.xlu0 %2983
        %2985 = vrot.lane.b32.xlu0 %v2740, 62
        %v2986 = vpop.permute.xlu0 %2985
        %2987 = vrot.lane.b32.xlu0 %v2874, 62
        %v2988 = vpop.permute.xlu0 %2987
        %2989 = vrot.lane.b32.xlu0 %v2875, 62
        %v2990 = vpop.permute.xlu0 %2989
        %2991 = vrot.lane.b32.xlu0 %v2876, 62
        %v2992 = vpop.permute.xlu0 %2991
        %2993 = vrot.lane.b32.xlu0 %v2743, 62
        %v2994 = vpop.permute.xlu0 %2993
        %2995 = vrot.lane.b32.xlu0 %v2744, 62
        %v2996 = vpop.permute.xlu0 %2995
        %2997 = vrot.lane.b32.xlu0 %v2745, 62
        %v2998 = vpop.permute.xlu0 %2997
        %2999 = vrot.lane.b32.xlu0 %v2746, 62
        %v3000 = vpop.permute.xlu0 %2999
        %3001 = vrot.lane.b32.xlu0 %v2877, 62
        %v3002 = vpop.permute.xlu0 %3001
        %3003 = vrot.lane.b32.xlu0 %v2878, 62
        %v3004 = vpop.permute.xlu0 %3003
        %3005 = vrot.lane.b32.xlu0 %v2522, 62
        %v3006 = vpop.permute.xlu0 %3005
        %3007 = vrot.lane.b32.xlu0 %v2534, 62
        %v3008 = vpop.permute.xlu0 %3007
        %3009 = vrot.lane.b32.xlu0 %v2535, 62
        %v3010 = vpop.permute.xlu0 %3009
        %3011 = vrot.lane.b32.xlu0 %v2536, 62
        %v3012 = vpop.permute.xlu0 %3011
        %3013 = vrot.lane.b32.xlu0 %v2537, 62
        %v3014 = vpop.permute.xlu0 %3013
        %3015 = vrot.lane.b32.xlu0 %v2858, 62
        %v3016 = vpop.permute.xlu0 %3015
        %3017 = vrot.lane.b32.xlu0 %v2859, 62
        %v3018 = vpop.permute.xlu0 %3017
        %v3019 = vsel %vm1043, %v2922, %v2924
        %v3020 = vsel %vm1043, %v2924, %v2926
        %v3021 = vsel %vm1043, %v2926, %v2928
        %v3022 = vsel %vm1043, %v2928, %v2930
        %v3023 = vsel %vm1043, %v2930, %v2932
        %v3024 = vsel %vm1043, %v2932, %v2934
        %v3025 = vsel %vm1043, %v2936, %v2938
        %v3026 = vsel %vm1043, %v2938, %v2940
        %v3027 = vsel %vm1043, %v2940, %v2942
        %v3028 = vsel %vm1043, %v2942, %v2944
        %v3029 = vsel %vm1043, %v2944, %v2946
        %v3030 = vsel %vm1043, %v2946, %v2948
        %v3031 = vsel %vm1043, %v2950, %v2952
        %v3032 = vsel %vm1043, %v2952, %v2954
        %v3033 = vsel %vm1043, %v2954, %v2956
        %v3034 = vsel %vm1043, %v2956, %v2958
        %v3035 = vsel %vm1043, %v2958, %v2960
        %v3036 = vsel %vm1043, %v2960, %v2962
        %v3037 = vsel %vm1043, %v2964, %v2966
        %v3038 = vsel %vm1043, %v2966, %v2968
        %v3039 = vsel %vm1043, %v2968, %v2970
        %v3040 = vsel %vm1043, %v2970, %v2972
        %v3041 = vsel %vm1043, %v2972, %v2974
        %v3042 = vsel %vm1043, %v2974, %v2976
        %v3043 = vsel %vm1043, %v2978, %v2980
        %v3044 = vsel %vm1043, %v2980, %v2982
        %v3045 = vsel %vm1043, %v2982, %v2984
        %v3046 = vsel %vm1043, %v2984, %v2986
        %v3047 = vsel %vm1043, %v2986, %v2988
        %v3048 = vsel %vm1043, %v2988, %v2990
        %v3049 = vsel %vm1043, %v2992, %v2994
        %v3050 = vsel %vm1043, %v2994, %v2996
        %v3051 = vsel %vm1043, %v2996, %v2998
        %v3052 = vsel %vm1043, %v2998, %v3000
        %v3053 = vsel %vm1043, %v3000, %v3002
        %v3054 = vsel %vm1043, %v3002, %v3004
        %v3055 = vsel %vm1043, %v3006, %v3008
        %v3056 = vsel %vm1043, %v3008, %v3010
        %v3057 = vsel %vm1043, %v3010, %v3012
        %v3058 = vsel %vm1043, %v3012, %v3014
        %v3059 = vsel %vm1043, %v3014, %v3016
        %v3060 = vsel %vm1043, %v3016, %v3018
        %v3103 = vpack.c.bf16 %v2717, %v2711
        %v3104 = vpack.c.bf16 %v2718, %v2712
        %v3105 = vpack.c.bf16 %v2719, %v2713
        %v3106 = vpack.c.bf16 %v2720, %v2714
        %v3107 = vpack.c.bf16 %v2721, %v2715
        %v3108 = vpack.c.bf16 %v2722, %v2716
        %v3109 = vpack.c.bf16 %v2729, %v2723
        %v3110 = vpack.c.bf16 %v2730, %v2724
        %v3111 = vpack.c.bf16 %v2731, %v2725
        %v3112 = vpack.c.bf16 %v2732, %v2726
        %v3113 = vpack.c.bf16 %v2733, %v2727
        %v3114 = vpack.c.bf16 %v2734, %v2728
        %v3115 = vpack.c.bf16 %v2741, %v2735
        %v3116 = vpack.c.bf16 %v2742, %v2736
        %v3117 = vpack.c.bf16 %v2743, %v2737
        %v3118 = vpack.c.bf16 %v2744, %v2738
        %v3119 = vpack.c.bf16 %v2745, %v2739
        %v3120 = vpack.c.bf16 %v2746, %v2740
        %v3121 = vpack.c.bf16 %v2753, %v2747
        %v3122 = vpack.c.bf16 %v2754, %v2748
        %v3123 = vpack.c.bf16 %v2755, %v2749
        %v3124 = vpack.c.bf16 %v2756, %v2750
        %v3125 = vpack.c.bf16 %v2757, %v2751
        %v3126 = vpack.c.bf16 %v2758, %v2752
        %v3127 = vpack.c.bf16 %v2765, %v2759
        %v3128 = vpack.c.bf16 %v2766, %v2760
        %v3129 = vpack.c.bf16 %v2767, %v2761
        %v3130 = vpack.c.bf16 %v2768, %v2762
        %v3131 = vpack.c.bf16 %v2769, %v2763
        %v3132 = vpack.c.bf16 %v2770, %v2764
        %v3133 = vpack.c.bf16 %v2777, %v2771
        %v3134 = vpack.c.bf16 %v2778, %v2772
        %v3135 = vpack.c.bf16 %v2779, %v2773
        %v3136 = vpack.c.bf16 %v2780, %v2774
        %v3137 = vpack.c.bf16 %v2781, %v2775
        %v3138 = vpack.c.bf16 %v2782, %v2776
        %v3139 = vpack.c.bf16 %v3025, %v3019
        %v3140 = vpack.c.bf16 %v3026, %v3020
        %v3141 = vpack.c.bf16 %v3027, %v3021
        %v3142 = vpack.c.bf16 %v3028, %v3022
        %v3143 = vpack.c.bf16 %v3029, %v3023
        %v3144 = vpack.c.bf16 %v3030, %v3024
        %v3145 = vpack.c.bf16 %v3037, %v3031
        %v3146 = vpack.c.bf16 %v3038, %v3032
        %v3147 = vpack.c.bf16 %v3039, %v3033
        %v3148 = vpack.c.bf16 %v3040, %v3034
        %v3149 = vpack.c.bf16 %v3041, %v3035
        %v3150 = vpack.c.bf16 %v3042, %v3036
        %v3151 = vpack.c.bf16 %v3049, %v3043
        %v3152 = vpack.c.bf16 %v3050, %v3044
        %v3153 = vpack.c.bf16 %v3051, %v3045
        %v3154 = vpack.c.bf16 %v3052, %v3046
        %v3155 = vpack.c.bf16 %v3053, %v3047
        %v3156 = vpack.c.bf16 %v3054, %v3048
        %v3157 = vpack.c.bf16 %v3055, %v3055
        %v3158 = vpack.c.bf16 %v3056, %v3056
        %v3159 = vpack.c.bf16 %v3057, %v3057
        %v3160 = vpack.c.bf16 %v3058, %v3058
        %v3161 = vpack.c.bf16 %v3059, %v3059
        %v3162 = vpack.c.bf16 %v3060, %v3060
        %v3163 = vld [vmem:[%s4] sm:$0xff]
        %v3164 = vld [vmem:[%s4 + $0x8] sm:$0xff]
        %v3165 = vld [vmem:[%s5] sm:$0xff]
        %v3166 = vld [vmem:[%s5 + $0x8] sm:$0xff]
        %3168 = vset.pattern.permute.xlu0 0
        %3169 = vperm.xlu0 %3168, %v3165
        %v3170 = vpop.permute.xlu0 %3169
        %3173 = vset.pattern.permute.xlu0 0
        %3174 = vperm.xlu0 %3173, %v3166
        %v3175 = vpop.permute.xlu0 %3174
        %v3179 = vunpack.c.l.b16 %v3163
        %v3180 = vunpack.c.h.b16 %v3163
        %v3181 = vunpack.c.l.b16 %v3164
        %v3182 = vunpack.c.h.b16 %v3164
        %v3183 = vpack.c.b16 %v3181, %v3179
        %v3184 = vpack.c.b16 %v3182, %v3180
        %vm3186 = vcmask 179200
        %v3188 = vsel %vm3186, %v3184, 0
        %v3191 = vsel %vm1193, %v3157, 0
        %v3194 = vsel %vm1193, %v3158, 0
        %v3197 = vsel %vm1193, %v3159, 0
        %v3200 = vsel %vm1193, %v3160, 0
        %v3203 = vsel %vm1193, %v3161, 0
        %v3206 = vsel %vm1193, %v3162, 0
        %3208 = vmatprep.subr.bf16.mxu0 %v3104
        %3209 = vmatpush1.bf16.msra.mxu0 %v3103
        %3210 = vmatprep.subr.bf16.mxu0 %v3110
        %3211 = vmatpush1.bf16.msra.mxu0 %v3109
        %3212 = vmatprep.subr.bf16.mxu0 %v3116
        %3213 = vmatpush1.bf16.msra.mxu0 %v3115
        %3214 = vmatprep.subr.bf16.mxu0 %v3122
        %3215 = vmatpush1.bf16.msra.mxu0 %v3121
        %3216 = vmatprep.subr.bf16.mxu0 %v3128
        %3217 = vmatpush1.bf16.msra.mxu0 %v3127
        %3218 = vmatprep.subr.bf16.mxu0 %v3134
        %3219 = vmatpush1.bf16.msra.mxu0 %v3133
        %3220 = vmatprep.subr.bf16.mxu0 %v3140
        %3221 = vmatpush1.bf16.msra.mxu0 %v3139
        %3222 = vmatprep.subr.bf16.mxu0 %v3146
        %3223 = vmatpush1.bf16.msra.mxu0 %v3145
        %3224 = vmatprep.subr.bf16.mxu0 %v3152
        %3225 = vmatpush1.bf16.msra.mxu0 %v3151
        %3226 = vmatprep.subr.bf16.mxu0 %v3194
        %3227 = vmatpush1.bf16.msra.mxu0 %v3191
        %3228 = vmatprep.subr.bf16.mxu0 0
        %3229 = vmatpush1.bf16.msra.mxu0 0
        %3230 = vmatprep.subr.bf16.mxu0 0
        %3231 = vmatpush1.bf16.msra.mxu0 0
        %3232 = vmatprep.subr.bf16.mxu0 0
        %3233 = vmatpush1.bf16.msra.mxu0 0
        %3234 = vmatprep.subr.bf16.mxu0 0
        %3235 = vmatpush1.bf16.msra.mxu0 0
        %3236 = vmatprep.subr.bf16.mxu0 0
        %3237 = vmatpush1.bf16.msra.mxu0 0
        %3238 = vmatprep.subr.bf16.mxu0 0
        %3239 = vmatpush1.bf16.msra.mxu0 0
        %3240 = vmatprep.mubr.bf16.mxu0 %v3188
        %3241 = vmatmul.mubr.bf16.gmra.mrb[0].mxu0 %v3183
        %v3242 = vpop.f32.mrb[0].mxu0
        %v3243 = vadd.f32 %v3170, %v3242
        %v3244 = vpop.f32.mrb[0].mxu0
        %v3245 = vadd.f32 %v3170, %v3244
        %v3246 = vpop.f32.mrb[0].mxu0
        %v3247 = vadd.f32 %v3175, %v3246
        %v3248 = vpop.f32.mrb[0].mxu0
        %v3249 = vadd.f32 %v3175, %v3248
        %3250 = vdwg.mxu0
        %3251 = vmatprep.subr.bf16.mxu0 %v3106
        %3252 = vmatpush1.bf16.msra.mxu0 %v3105
        %3253 = vmatprep.subr.bf16.mxu0 %v3112
        %3254 = vmatpush1.bf16.msra.mxu0 %v3111
        %3255 = vmatprep.subr.bf16.mxu0 %v3118
        %3256 = vmatpush1.bf16.msra.mxu0 %v3117
        %3257 = vmatprep.subr.bf16.mxu0 %v3124
        %3258 = vmatpush1.bf16.msra.mxu0 %v3123
        %3259 = vmatprep.subr.bf16.mxu0 %v3130
        %3260 = vmatpush1.bf16.msra.mxu0 %v3129
        %3261 = vmatprep.subr.bf16.mxu0 %v3136
        %3262 = vmatpush1.bf16.msra.mxu0 %v3135
        %3263 = vmatprep.subr.bf16.mxu0 %v3142
        %3264 = vmatpush1.bf16.msra.mxu0 %v3141
        %3265 = vmatprep.subr.bf16.mxu0 %v3148
        %3266 = vmatpush1.bf16.msra.mxu0 %v3147
        %3267 = vmatprep.subr.bf16.mxu0 %v3154
        %3268 = vmatpush1.bf16.msra.mxu0 %v3153
        %3269 = vmatprep.subr.bf16.mxu0 %v3200
        %3270 = vmatpush1.bf16.msra.mxu0 %v3197
        %3271 = vmatprep.subr.bf16.mxu0 0
        %3272 = vmatpush1.bf16.msra.mxu0 0
        %3273 = vmatprep.subr.bf16.mxu0 0
        %3274 = vmatpush1.bf16.msra.mxu0 0
        %3275 = vmatprep.subr.bf16.mxu0 0
        %3276 = vmatpush1.bf16.msra.mxu0 0
        %3277 = vmatprep.subr.bf16.mxu0 0
        %3278 = vmatpush1.bf16.msra.mxu0 0
        %3279 = vmatprep.subr.bf16.mxu0 0
        %3280 = vmatpush1.bf16.msra.mxu0 0
        %3281 = vmatprep.subr.bf16.mxu0 0
        %3282 = vmatpush1.bf16.msra.mxu0 0
        %3283 = vmatprep.mubr.bf16.mxu0 %v3188
        %3284 = vmatmul.mubr.bf16.gmra.mrb[0].mxu0 %v3183
        %v3285 = vpop.f32.mrb[0].mxu0
        %v3286 = vadd.f32 %v3170, %v3285
        %v3287 = vpop.f32.mrb[0].mxu0
        %v3288 = vadd.f32 %v3170, %v3287
        %v3289 = vpop.f32.mrb[0].mxu0
        %v3290 = vadd.f32 %v3175, %v3289
        %v3291 = vpop.f32.mrb[0].mxu0
        %v3292 = vadd.f32 %v3175, %v3291
        %3293 = vdwg.mxu0
        %3294 = vmatprep.subr.bf16.mxu0 %v3108
        %3295 = vmatpush1.bf16.msra.mxu0 %v3107
        %3296 = vmatprep.subr.bf16.mxu0 %v3114
        %3297 = vmatpush1.bf16.msra.mxu0 %v3113
        %3298 = vmatprep.subr.bf16.mxu0 %v3120
        %3299 = vmatpush1.bf16.msra.mxu0 %v3119
        %3300 = vmatprep.subr.bf16.mxu0 %v3126
        %3301 = vmatpush1.bf16.msra.mxu0 %v3125
        %3302 = vmatprep.subr.bf16.mxu0 %v3132
        %3303 = vmatpush1.bf16.msra.mxu0 %v3131
        %3304 = vmatprep.subr.bf16.mxu0 %v3138
        %3305 = vmatpush1.bf16.msra.mxu0 %v3137
        %3306 = vmatprep.subr.bf16.mxu0 %v3144
        %3307 = vmatpush1.bf16.msra.mxu0 %v3143
        %3308 = vmatprep.subr.bf16.mxu0 %v3150
        %3309 = vmatpush1.bf16.msra.mxu0 %v3149
        %3310 = vmatprep.subr.bf16.mxu0 %v3156
        %3311 = vmatpush1.bf16.msra.mxu0 %v3155
        %3312 = vmatprep.subr.bf16.mxu0 %v3206
        %3313 = vmatpush1.bf16.msra.mxu0 %v3203
        %3314 = vmatprep.subr.bf16.mxu0 0
        %3315 = vmatpush1.bf16.msra.mxu0 0
        %3316 = vmatprep.subr.bf16.mxu0 0
        %3317 = vmatpush1.bf16.msra.mxu0 0
        %3318 = vmatprep.subr.bf16.mxu0 0
        %3319 = vmatpush1.bf16.msra.mxu0 0
        %3320 = vmatprep.subr.bf16.mxu0 0
        %3321 = vmatpush1.bf16.msra.mxu0 0
        %3322 = vmatprep.subr.bf16.mxu0 0
        %3323 = vmatpush1.bf16.msra.mxu0 0
        %3324 = vmatprep.subr.bf16.mxu0 0
        %3325 = vmatpush1.bf16.msra.mxu0 0
        %3326 = vmatprep.mubr.bf16.mxu0 %v3188
        %3327 = vmatmul.mubr.bf16.gmra.mrb[0].mxu0 %v3183
        %v3328 = vpop.f32.mrb[0].mxu0
        %v3329 = vadd.f32 %v3170, %v3328
        %v3330 = vpop.f32.mrb[0].mxu0
        %v3331 = vadd.f32 %v3170, %v3330
        %v3332 = vpop.f32.mrb[0].mxu0
        %v3333 = vadd.f32 %v3175, %v3332
        %v3334 = vpop.f32.mrb[0].mxu0
        %v3335 = vadd.f32 %v3175, %v3334
        %3336 = vdwg.mxu0
        %v3337 = vmax.f32 %v3243, 0.0
        %v3338 = vmax.f32 %v3245, 0.0
        %v3339 = vmax.f32 %v3286, 0.0
        %v3340 = vmax.f32 %v3288, 0.0
        %v3341 = vmax.f32 %v3329, 0.0
        %v3342 = vmax.f32 %v3331, 0.0
        %v3343 = vmax.f32 %v3247, 0.0
        %v3344 = vmax.f32 %v3249, 0.0
        %v3345 = vmax.f32 %v3290, 0.0
        %v3346 = vmax.f32 %v3292, 0.0
        %v3347 = vmax.f32 %v3333, 0.0
        %v3348 = vmax.f32 %v3335, 0.0
        %3349 = vst [vmem:[#allocation4] sm:$0xff] %v3337
        %3350 = vst [vmem:[#allocation4 + $0x8] sm:$0xff] %v3338
        %3351 = vst [vmem:[#allocation4 + $0x10] sm:$0xff] %v3339
        %3352 = vst [vmem:[#allocation4 + $0x18] sm:$0xff] %v3340
        %3353 = vst [vmem:[#allocation4 + $0x20] sm:$0xff] %v3341
        %3354 = vst [vmem:[#allocation4 + $0x28] sm:$0xff] %v3342
        %3355 = vst [vmem:[#allocation4 + $0x30] sm:$0xff] %v3343
        %3356 = vst [vmem:[#allocation4 + $0x38] sm:$0xff] %v3344
        %3357 = vst [vmem:[#allocation4 + $0x40] sm:$0xff] %v3345
        %3358 = vst [vmem:[#allocation4 + $0x48] sm:$0xff] %v3346
        %3359 = vst [vmem:[#allocation4 + $0x50] sm:$0xff] %v3347
        %3360 = vst [vmem:[#allocation4 + $0x58] sm:$0xff] %v3348
        %v3361 = vld [vmem:[#allocation4] sm:$0xff]
        %v3362 = vld [vmem:[#allocation4 + $0x8] sm:$0xff]
        %v3363 = vld [vmem:[#allocation4 + $0x10] sm:$0xff]
        %v3364 = vld [vmem:[#allocation4 + $0x18] sm:$0xff]
        %v3365 = vld [vmem:[#allocation4 + $0x20] sm:$0xff]
        %v3366 = vld [vmem:[#allocation4 + $0x30] sm:$0xff]
        %v3367 = vld [vmem:[#allocation4 + $0x38] sm:$0xff]
        %v3368 = vld [vmem:[#allocation4 + $0x40] sm:$0xff]
        %v3369 = vld [vmem:[#allocation4 + $0x48] sm:$0xff]
        %v3370 = vld [vmem:[#allocation4 + $0x50] sm:$0xff]
        %v3371 = vld [vmem:[#allocation4] sm:$0xff]
        %v3372 = vld [vmem:[#allocation4 + $0x8] sm:$0xff]
        %v3373 = vld [vmem:[#allocation4 + $0x10] sm:$0xff]
        %v3374 = vld [vmem:[#allocation4 + $0x18] sm:$0xff]
        %v3375 = vld [vmem:[#allocation4 + $0x20] sm:$0xff]
        %v3376 = vld [vmem:[#allocation4 + $0x28] sm:$0xff]
        %v3377 = vld [vmem:[#allocation4 + $0x30] sm:$0xff]
        %v3378 = vld [vmem:[#allocation4 + $0x38] sm:$0xff]
        %v3379 = vld [vmem:[#allocation4 + $0x40] sm:$0xff]
        %v3380 = vld [vmem:[#allocation4 + $0x48] sm:$0xff]
        %v3381 = vld [vmem:[#allocation4 + $0x50] sm:$0xff]
        %v3382 = vld [vmem:[#allocation4 + $0x58] sm:$0xff]
        %3395 = vrot.lane.b32.xlu0 %v3371, 126
        %v3396 = vpop.permute.xlu0 %3395
        %3397 = vrot.lane.b32.xlu0 %v3372, 126
        %v3398 = vpop.permute.xlu0 %3397
        %3399 = vrot.lane.b32.xlu0 %v3373, 126
        %v3400 = vpop.permute.xlu0 %3399
        %3401 = vrot.lane.b32.xlu0 %v3374, 126
        %v3402 = vpop.permute.xlu0 %3401
        %3403 = vrot.lane.b32.xlu0 %v3375, 126
        %v3404 = vpop.permute.xlu0 %3403
        %3405 = vrot.lane.b32.xlu0 %v3376, 126
        %v3406 = vpop.permute.xlu0 %3405
        %3407 = vrot.lane.b32.xlu0 %v3377, 126
        %v3408 = vpop.permute.xlu0 %3407
        %3409 = vrot.lane.b32.xlu0 %v3378, 126
        %v3410 = vpop.permute.xlu0 %3409
        %3411 = vrot.lane.b32.xlu0 %v3379, 126
        %v3412 = vpop.permute.xlu0 %3411
        %3413 = vrot.lane.b32.xlu0 %v3380, 126
        %v3414 = vpop.permute.xlu0 %3413
        %3415 = vrot.lane.b32.xlu0 %v3381, 126
        %v3416 = vpop.permute.xlu0 %3415
        %3417 = vrot.lane.b32.xlu0 %v3382, 126
        %v3418 = vpop.permute.xlu0 %3417
        %v3419 = vsel %vm563, %v3396, %v3398
        %v3420 = vsel %vm563, %v3398, %v3400
        %v3421 = vsel %vm563, %v3400, %v3402
        %v3422 = vsel %vm563, %v3402, %v3404
        %v3423 = vsel %vm563, %v3404, %v3406
        %v3424 = vsel %vm563, %v3408, %v3410
        %v3425 = vsel %vm563, %v3410, %v3412
        %v3426 = vsel %vm563, %v3412, %v3414
        %v3427 = vsel %vm563, %v3414, %v3416
        %v3428 = vsel %vm563, %v3416, %v3418
        %v3439 = vmax.f32 %v3361, %v3419
        %v3440 = vmax.f32 %v3362, %v3420
        %v3441 = vmax.f32 %v3363, %v3421
        %v3442 = vmax.f32 %v3364, %v3422
        %v3443 = vmax.f32 %v3365, %v3423
        %v3444 = vmax.f32 %v3366, %v3424
        %v3445 = vmax.f32 %v3367, %v3425
        %v3446 = vmax.f32 %v3368, %v3426
        %v3447 = vmax.f32 %v3369, %v3427
        %v3448 = vmax.f32 %v3370, %v3428
        %v3451 = vmax.f32 %v3371, %v3419
        %v3452 = vmax.f32 %v3372, %v3420
        %v3453 = vmax.f32 %v3373, %v3421
        %v3454 = vmax.f32 %v3374, %v3422
        %v3455 = vmax.f32 %v3375, %v3423
        %v3456 = vmax.f32 %v3376, %v3406
        %v3457 = vmax.f32 %v3377, %v3424
        %v3458 = vmax.f32 %v3378, %v3425
        %v3459 = vmax.f32 %v3379, %v3426
        %v3460 = vmax.f32 %v3380, %v3427
        %v3461 = vmax.f32 %v3381, %v3428
        %v3462 = vmax.f32 %v3382, %v3418
        %3475 = vrot.lane.b32.xlu0 %v3451, 64
        %v3476 = vpop.permute.xlu0 %3475
        %3477 = vrot.lane.b32.xlu0 %v3452, 64
        %v3478 = vpop.permute.xlu0 %3477
        %3479 = vrot.lane.b32.xlu0 %v3453, 64
        %v3480 = vpop.permute.xlu0 %3479
        %3481 = vrot.lane.b32.xlu0 %v3454, 64
        %v3482 = vpop.permute.xlu0 %3481
        %3483 = vrot.lane.b32.xlu0 %v3455, 64
        %v3484 = vpop.permute.xlu0 %3483
        %3485 = vrot.lane.b32.xlu0 %v3456, 64
        %v3486 = vpop.permute.xlu0 %3485
        %3487 = vrot.lane.b32.xlu0 %v3457, 64
        %v3488 = vpop.permute.xlu0 %3487
        %3489 = vrot.lane.b32.xlu0 %v3458, 64
        %v3490 = vpop.permute.xlu0 %3489
        %3491 = vrot.lane.b32.xlu0 %v3459, 64
        %v3492 = vpop.permute.xlu0 %3491
        %3493 = vrot.lane.b32.xlu0 %v3460, 64
        %v3494 = vpop.permute.xlu0 %3493
        %3495 = vrot.lane.b32.xlu0 %v3461, 64
        %v3496 = vpop.permute.xlu0 %3495
        %3497 = vrot.lane.b32.xlu0 %v3462, 64
        %v3498 = vpop.permute.xlu0 %3497
        %v3499 = vsel %vm957, %v3476, %v3478
        %v3500 = vsel %vm957, %v3478, %v3480
        %v3501 = vsel %vm957, %v3480, %v3482
        %v3502 = vsel %vm957, %v3482, %v3484
        %v3503 = vsel %vm957, %v3484, %v3486
        %v3504 = vsel %vm957, %v3488, %v3490
        %v3505 = vsel %vm957, %v3490, %v3492
        %v3506 = vsel %vm957, %v3492, %v3494
        %v3507 = vsel %vm957, %v3494, %v3496
        %v3508 = vsel %vm957, %v3496, %v3498
        %v3519 = vmax.f32 %v3439, %v3499
        %v3520 = vmax.f32 %v3440, %v3500
        %v3521 = vmax.f32 %v3441, %v3501
        %v3522 = vmax.f32 %v3442, %v3502
        %v3523 = vmax.f32 %v3443, %v3503
        %v3524 = vmax.f32 %v3444, %v3504
        %v3525 = vmax.f32 %v3445, %v3505
        %v3526 = vmax.f32 %v3446, %v3506
        %v3527 = vmax.f32 %v3447, %v3507
        %v3528 = vmax.f32 %v3448, %v3508
        %3529 = vst [vmem:[#allocation5] sm:$0xff] %v3519
        %3530 = vst [vmem:[#allocation5 + $0x8] sm:$0xff] %v3520
        %3531 = vst [vmem:[#allocation5 + $0x10] sm:$0xff] %v3521
        %3532 = vst [vmem:[#allocation5 + $0x18] sm:$0xff] %v3522
        %3533 = vst [vmem:[#allocation5 + $0x20] sm:$0xff] %v3523
        %3534 = vst [vmem:[#allocation5 + $0x28] sm:$0xff] %v3524
        %3535 = vst [vmem:[#allocation5 + $0x30] sm:$0xff] %v3525
        %3536 = vst [vmem:[#allocation5 + $0x38] sm:$0xff] %v3526
        %3537 = vst [vmem:[#allocation5 + $0x40] sm:$0xff] %v3527
        %3538 = vst [vmem:[#allocation5 + $0x48] sm:$0xff] %v3528
        %v3539 = vld [vmem:[#allocation5] sm:$0xff]
        %v3540 = vld [vmem:[#allocation5 + $0x8] sm:$0xff]
        %v3541 = vld [vmem:[#allocation5 + $0x10] sm:$0xff]
        %v3542 = vld [vmem:[#allocation5 + $0x18] sm:$0xff]
        %v3543 = vld [vmem:[#allocation5 + $0x20] sm:$0xff]
        %v3544 = vld [vmem:[#allocation5 + $0x28] sm:$0xff]
        %v3545 = vld [vmem:[#allocation5 + $0x30] sm:$0xff]
        %v3546 = vld [vmem:[#allocation5 + $0x38] sm:$0xff]
        %v3547 = vld [vmem:[#allocation5 + $0x40] sm:$0xff]
        %v3548 = vld [vmem:[#allocation5 + $0x48] sm:$0xff]
        %v3549 = vpack.c.bf16 %v3544, %v3539
        %v3550 = vpack.c.bf16 %v3545, %v3540
        %v3551 = vpack.c.bf16 %v3546, %v3541
        %v3552 = vpack.c.bf16 %v3547, %v3542
        %v3553 = vpack.c.bf16 %v3548, %v3543
        %v3554 = vld [vmem:[%s1] sm:$0xf]
        %v3555 = vld [vmem:[%s1 + $0x4] sm:$0xf]
        %v3556 = vld [vmem:[%s1 + $0x8] sm:$0xf]
        %v3557 = vld [vmem:[%s1 + $0xc] sm:$0xf]
        %v3558 = vld [vmem:[%s1 + $0x10] sm:$0xf]
        %v3559 = vld [vmem:[%s1 + $0x14] sm:$0xf]
        %v3560 = vld [vmem:[%s1 + $0x18] sm:$0xf]
        %v3561 = vld [vmem:[%s1 + $0x1c] sm:$0xf]
        %v3562 = vld [vmem:[%s1 + $0x20] sm:$0xf]
        %v3563 = vld [vmem:[%s1 + $0x24] sm:$0xf]
        %v3564 = vld [vmem:[%s1 + $0x28] sm:$0xf]
        %v3565 = vld [vmem:[%s1 + $0x2c] sm:$0xf]
        %v3566 = vld [vmem:[%s1 + $0x30] sm:$0xf]
        %v3567 = vld [vmem:[%s1 + $0x34] sm:$0xf]
        %v3568 = vld [vmem:[%s1 + $0x38] sm:$0xf]
        %v3569 = vld [vmem:[%s1 + $0x3c] sm:$0xf]
        %v3570 = vld [vmem:[%s1 + $0x40] sm:$0xf]
        %v3571 = vld [vmem:[%s1 + $0x44] sm:$0xf]
        %v3572 = vld [vmem:[%s1 + $0x48] sm:$0xf]
        %v3573 = vld [vmem:[%s1 + $0x4c] sm:$0xf]
        %v3574 = vld [vmem:[%s1 + $0x50] sm:$0xf]
        %v3575 = vld [vmem:[%s1 + $0x54] sm:$0xf]
        %v3576 = vld [vmem:[%s1 + $0x58] sm:$0xf]
        %v3577 = vld [vmem:[%s1 + $0x5c] sm:$0xf]
        %v3578 = vld [vmem:[%s1 + $0x60] sm:$0xf]
        %v3579 = vld [vmem:[%s1 + $0x64] sm:$0xf]
        %v3580 = vld [vmem:[%s1 + $0x68] sm:$0xf]
        %v3581 = vld [vmem:[%s1 + $0x6c] sm:$0xf]
        %v3582 = vld [vmem:[%s1 + $0x70] sm:$0xf]
        %v3583 = vld [vmem:[%s1 + $0x74] sm:$0xf]
        %v3584 = vld [vmem:[%s1 + $0x78] sm:$0xf]
        %v3585 = vld [vmem:[%s1 + $0x7c] sm:$0xf]
        %v3586 = vld [vmem:[%s1 + $0x80] sm:$0xf]
        %v3587 = vld [vmem:[%s1 + $0x84] sm:$0xf]
        %v3588 = vld [vmem:[%s1 + $0x88] sm:$0xf]
        %v3589 = vld [vmem:[%s1 + $0x8c] sm:$0xf]
        %v3590 = vld [vmem:[%s1 + $0x90] sm:$0xf]
        %v3591 = vld [vmem:[%s1 + $0x94] sm:$0xf]
        %v3592 = vld [vmem:[%s1 + $0x98] sm:$0xf]
        %v3593 = vld [vmem:[%s1 + $0x9c] sm:$0xf]
        %v3594 = vld [vmem:[%s1 + $0xa0] sm:$0xf]
        %v3595 = vld [vmem:[%s1 + $0xa4] sm:$0xf]
        %v3596 = vld [vmem:[%s1 + $0xa8] sm:$0xf]
        %v3597 = vld [vmem:[%s1 + $0xac] sm:$0xf]
        %v3598 = vld [vmem:[%s1 + $0xb0] sm:$0xf]
        %v3599 = vld [vmem:[%s1 + $0xb4] sm:$0xf]
        %v3600 = vld [vmem:[%s1 + $0xb8] sm:$0xf]
        %v3601 = vld [vmem:[%s1 + $0xbc] sm:$0xf]
        %v3602 = vld [vmem:[%s1 + $0xc0] sm:$0xf]
        %v3603 = vld [vmem:[%s1 + $0xc4] sm:$0xf]
        %v3604 = vld [vmem:[%s1 + $0xc8] sm:$0xf]
        %v3605 = vld [vmem:[%s1 + $0xcc] sm:$0xf]
        %v3606 = vld [vmem:[%s1 + $0xd0] sm:$0xf]
        %v3607 = vld [vmem:[%s1 + $0xd4] sm:$0xf]
        %v3608 = vld [vmem:[%s1 + $0xd8] sm:$0xf]
        %v3609 = vld [vmem:[%s1 + $0xdc] sm:$0xf]
        %v3610 = vld [vmem:[%s1 + $0xe0] sm:$0xf]
        %v3611 = vld [vmem:[%s1 + $0xe4] sm:$0xf]
        %v3612 = vld [vmem:[%s1 + $0xe8] sm:$0xf]
        %v3613 = vld [vmem:[%s1 + $0xec] sm:$0xf]
        %v3614 = vld [vmem:[%s1 + $0xf0] sm:$0xf]
        %v3615 = vld [vmem:[%s1 + $0xf4] sm:$0xf]
        %v3616 = vld [vmem:[%s1 + $0xf8] sm:$0xf]
        %v3617 = vld [vmem:[%s1 + $0xfc] sm:$0xf]
        %v3618 = vld [vmem:[%s1 + $0x100] sm:$0xf]
        %v3619 = vld [vmem:[%s1 + $0x104] sm:$0xf]
        %v3620 = vld [vmem:[%s1 + $0x108] sm:$0xf]
        %v3621 = vld [vmem:[%s1 + $0x10c] sm:$0xf]
        %v3622 = vld [vmem:[%s1 + $0x110] sm:$0xf]
        %v3623 = vld [vmem:[%s1 + $0x114] sm:$0xf]
        %v3624 = vld [vmem:[%s1 + $0x118] sm:$0xf]
        %v3625 = vld [vmem:[%s1 + $0x11c] sm:$0xf]
        %v3626 = vld [vmem:[%s1 + $0x120] sm:$0xf]
        %v3627 = vld [vmem:[%s1 + $0x124] sm:$0xf]
        %v3628 = vld [vmem:[%s1 + $0x128] sm:$0xf]
        %v3629 = vld [vmem:[%s1 + $0x12c] sm:$0xf]
        %v3630 = vld [vmem:[%s1 + $0x130] sm:$0xf]
        %v3631 = vld [vmem:[%s1 + $0x134] sm:$0xf]
        %v3632 = vld [vmem:[%s1 + $0x138] sm:$0xf]
        %v3633 = vld [vmem:[%s1 + $0x13c] sm:$0xf]
        %v3714 = vunpack.c.l.b16 %v3554
        %v3715 = vunpack.c.l.b16 %v3555
        %v3716 = vunpack.c.l.b16 %v3556
        %v3717 = vunpack.c.l.b16 %v3557
        %v3718 = vunpack.c.l.b16 %v3558
        %v3719 = vunpack.c.l.b16 %v3559
        %v3720 = vunpack.c.l.b16 %v3560
        %v3721 = vunpack.c.l.b16 %v3561
        %v3722 = vunpack.c.l.b16 %v3562
        %v3723 = vunpack.c.l.b16 %v3563
        %v3724 = vunpack.c.l.b16 %v3564
        %v3725 = vunpack.c.l.b16 %v3565
        %v3726 = vunpack.c.l.b16 %v3566
        %v3727 = vunpack.c.l.b16 %v3567
        %v3728 = vunpack.c.l.b16 %v3568
        %v3729 = vunpack.c.l.b16 %v3569
        %v3730 = vunpack.c.l.b16 %v3570
        %v3731 = vunpack.c.l.b16 %v3571
        %v3732 = vunpack.c.l.b16 %v3572
        %v3733 = vunpack.c.l.b16 %v3573
        %v3734 = vunpack.c.l.b16 %v3574
        %v3735 = vunpack.c.l.b16 %v3575
        %v3736 = vunpack.c.l.b16 %v3576
        %v3737 = vunpack.c.l.b16 %v3577
        %v3738 = vunpack.c.l.b16 %v3578
        %v3739 = vunpack.c.l.b16 %v3579
        %v3740 = vunpack.c.l.b16 %v3580
        %v3741 = vunpack.c.l.b16 %v3581
        %v3742 = vunpack.c.l.b16 %v3582
        %v3743 = vunpack.c.l.b16 %v3583
        %v3744 = vunpack.c.l.b16 %v3584
        %v3745 = vunpack.c.l.b16 %v3585
        %v3746 = vunpack.c.l.b16 %v3586
        %v3747 = vunpack.c.l.b16 %v3587
        %v3748 = vunpack.c.l.b16 %v3588
        %v3749 = vunpack.c.l.b16 %v3589
        %v3750 = vunpack.c.l.b16 %v3590
        %v3751 = vunpack.c.l.b16 %v3591
        %v3752 = vunpack.c.l.b16 %v3592
        %v3753 = vunpack.c.l.b16 %v3593
        %v3754 = vunpack.c.l.b16 %v3594
        %v3755 = vunpack.c.l.b16 %v3595
        %v3756 = vunpack.c.l.b16 %v3596
        %v3757 = vunpack.c.l.b16 %v3597
        %v3758 = vunpack.c.l.b16 %v3598
        %v3759 = vunpack.c.l.b16 %v3599
        %v3760 = vunpack.c.l.b16 %v3600
        %v3761 = vunpack.c.l.b16 %v3601
        %v3762 = vunpack.c.l.b16 %v3602
        %v3763 = vunpack.c.l.b16 %v3603
        %v3764 = vunpack.c.l.b16 %v3604
        %v3765 = vunpack.c.l.b16 %v3605
        %v3766 = vunpack.c.l.b16 %v3606
        %v3767 = vunpack.c.l.b16 %v3607
        %v3768 = vunpack.c.l.b16 %v3608
        %v3769 = vunpack.c.l.b16 %v3609
        %v3770 = vunpack.c.l.b16 %v3610
        %v3771 = vunpack.c.l.b16 %v3611
        %v3772 = vunpack.c.l.b16 %v3612
        %v3773 = vunpack.c.l.b16 %v3613
        %v3774 = vunpack.c.l.b16 %v3614
        %v3775 = vunpack.c.l.b16 %v3615
        %v3776 = vunpack.c.l.b16 %v3616
        %v3777 = vunpack.c.l.b16 %v3617
        %v3778 = vunpack.c.l.b16 %v3618
        %v3779 = vunpack.c.l.b16 %v3619
        %v3780 = vunpack.c.l.b16 %v3620
        %v3781 = vunpack.c.l.b16 %v3621
        %v3782 = vunpack.c.l.b16 %v3622
        %v3783 = vunpack.c.l.b16 %v3623
        %v3784 = vunpack.c.l.b16 %v3624
        %v3785 = vunpack.c.l.b16 %v3625
        %v3786 = vunpack.c.l.b16 %v3626
        %v3787 = vunpack.c.l.b16 %v3627
        %v3788 = vunpack.c.l.b16 %v3628
        %v3789 = vunpack.c.l.b16 %v3629
        %v3790 = vunpack.c.l.b16 %v3630
        %v3791 = vunpack.c.l.b16 %v3631
        %v3792 = vunpack.c.l.b16 %v3632
        %v3793 = vunpack.c.l.b16 %v3633
        %v3794 = vpack.c.b16 %v3715, %v3714
        %v3795 = vpack.c.b16 %v3717, %v3716
        %v3796 = vpack.c.b16 %v3719, %v3718
        %v3797 = vpack.c.b16 %v3721, %v3720
        %v3798 = vpack.c.b16 %v3723, %v3722
        %v3799 = vpack.c.b16 %v3725, %v3724
        %v3800 = vpack.c.b16 %v3727, %v3726
        %v3801 = vpack.c.b16 %v3729, %v3728
        %v3802 = vpack.c.b16 %v3731, %v3730
        %v3803 = vpack.c.b16 %v3733, %v3732
        %v3804 = vpack.c.b16 %v3735, %v3734
        %v3805 = vpack.c.b16 %v3737, %v3736
        %v3806 = vpack.c.b16 %v3739, %v3738
        %v3807 = vpack.c.b16 %v3741, %v3740
        %v3808 = vpack.c.b16 %v3743, %v3742
        %v3809 = vpack.c.b16 %v3745, %v3744
        %v3810 = vpack.c.b16 %v3747, %v3746
        %v3811 = vpack.c.b16 %v3749, %v3748
        %v3812 = vpack.c.b16 %v3751, %v3750
        %v3813 = vpack.c.b16 %v3753, %v3752
        %v3814 = vpack.c.b16 %v3755, %v3754
        %v3815 = vpack.c.b16 %v3757, %v3756
        %v3816 = vpack.c.b16 %v3759, %v3758
        %v3817 = vpack.c.b16 %v3761, %v3760
        %v3818 = vpack.c.b16 %v3763, %v3762
        %v3819 = vpack.c.b16 %v3765, %v3764
        %v3820 = vpack.c.b16 %v3767, %v3766
        %v3821 = vpack.c.b16 %v3769, %v3768
        %v3822 = vpack.c.b16 %v3771, %v3770
        %v3823 = vpack.c.b16 %v3773, %v3772
        %v3824 = vpack.c.b16 %v3775, %v3774
        %v3825 = vpack.c.b16 %v3777, %v3776
        %v3826 = vpack.c.b16 %v3779, %v3778
        %v3827 = vpack.c.b16 %v3781, %v3780
        %v3828 = vpack.c.b16 %v3783, %v3782
        %v3829 = vpack.c.b16 %v3785, %v3784
        %v3830 = vpack.c.b16 %v3787, %v3786
        %v3831 = vpack.c.b16 %v3789, %v3788
        %v3832 = vpack.c.b16 %v3791, %v3790
        %v3833 = vpack.c.b16 %v3793, %v3792
        %3874 = vmatprep.subr.bf16.mxu0 0
        %3875 = vmatpush1.bf16.msra.mxu0 %v3794
        %3876 = vmatprep.subr.bf16.mxu0 0
        %3877 = vmatpush1.bf16.msra.mxu0 %v3795
        %3878 = vmatprep.subr.bf16.mxu0 0
        %3879 = vmatpush1.bf16.msra.mxu0 %v3796
        %3880 = vmatprep.subr.bf16.mxu0 0
        %3881 = vmatpush1.bf16.msra.mxu0 %v3797
        %3882 = vmatprep.subr.bf16.mxu0 0
        %3883 = vmatpush1.bf16.msra.mxu0 %v3798
        %3884 = vmatprep.subr.bf16.mxu0 0
        %3885 = vmatpush1.bf16.msra.mxu0 %v3799
        %3886 = vmatprep.subr.bf16.mxu0 0
        %3887 = vmatpush1.bf16.msra.mxu0 %v3800
        %3888 = vmatprep.subr.bf16.mxu0 0
        %3889 = vmatpush1.bf16.msra.mxu0 %v3801
        %3890 = vmatprep.subr.bf16.mxu0 0
        %3891 = vmatpush1.bf16.msra.mxu0 %v3802
        %3892 = vmatprep.subr.bf16.mxu0 0
        %3893 = vmatpush1.bf16.msra.mxu0 %v3803
        %3894 = vmatprep.subr.bf16.mxu0 0
        %3895 = vmatpush1.bf16.msra.mxu0 %v3804
        %3896 = vmatprep.subr.bf16.mxu0 0
        %3897 = vmatpush1.bf16.msra.mxu0 %v3805
        %3898 = vmatprep.subr.bf16.mxu0 0
        %3899 = vmatpush1.bf16.msra.mxu0 %v3806
        %3900 = vmatprep.subr.bf16.mxu0 0
        %3901 = vmatpush1.bf16.msra.mxu0 %v3807
        %3902 = vmatprep.subr.bf16.mxu0 0
        %3903 = vmatpush1.bf16.msra.mxu0 %v3808
        %3904 = vmatprep.subr.bf16.mxu0 0
        %3905 = vmatpush1.bf16.msra.mxu0 %v3809
        %3906 = vmatprep.mubr.bf16.mxu0 %v3550
        %3907 = vmatmul.mubr.bf16.gmra.mrb[0].mxu0 %v3549
        %v3908 = vpop.f32.mrb[0].mxu0
        %v3909 = vadd.f32 0.0, %v3908
        %v3910 = vpop.f32.mrb[0].mxu0
        %v3911 = vpop.f32.mrb[0].mxu0
        %v3912 = vadd.f32 0.0, %v3911
        %v3913 = vpop.f32.mrb[0].mxu0
        %3914 = vdwg.mxu0
        %3915 = vmatprep.subr.bf16.mxu0 0
        %3916 = vmatpush1.bf16.msra.mxu0 %v3810
        %3917 = vmatprep.subr.bf16.mxu0 0
        %3918 = vmatpush1.bf16.msra.mxu0 %v3811
        %3919 = vmatprep.subr.bf16.mxu0 0
        %3920 = vmatpush1.bf16.msra.mxu0 %v3812
        %3921 = vmatprep.subr.bf16.mxu0 0
        %3922 = vmatpush1.bf16.msra.mxu0 %v3813
        %3923 = vmatprep.subr.bf16.mxu0 0
        %3924 = vmatpush1.bf16.msra.mxu0 %v3814
        %3925 = vmatprep.subr.bf16.mxu0 0
        %3926 = vmatpush1.bf16.msra.mxu0 %v3815
        %3927 = vmatprep.subr.bf16.mxu0 0
        %3928 = vmatpush1.bf16.msra.mxu0 %v3816
        %3929 = vmatprep.subr.bf16.mxu0 0
        %3930 = vmatpush1.bf16.msra.mxu0 %v3817
        %3931 = vmatprep.subr.bf16.mxu0 0
        %3932 = vmatpush1.bf16.msra.mxu0 %v3818
        %3933 = vmatprep.subr.bf16.mxu0 0
        %3934 = vmatpush1.bf16.msra.mxu0 %v3819
        %3935 = vmatprep.subr.bf16.mxu0 0
        %3936 = vmatpush1.bf16.msra.mxu0 %v3820
        %3937 = vmatprep.subr.bf16.mxu0 0
        %3938 = vmatpush1.bf16.msra.mxu0 %v3821
        %3939 = vmatprep.subr.bf16.mxu0 0
        %3940 = vmatpush1.bf16.msra.mxu0 %v3822
        %3941 = vmatprep.subr.bf16.mxu0 0
        %3942 = vmatpush1.bf16.msra.mxu0 %v3823
        %3943 = vmatprep.subr.bf16.mxu0 0
        %3944 = vmatpush1.bf16.msra.mxu0 %v3824
        %3945 = vmatprep.subr.bf16.mxu0 0
        %3946 = vmatpush1.bf16.msra.mxu0 %v3825
        %3947 = vmatprep.mubr.bf16.mxu0 %v3552
        %3948 = vmatmul.mubr.bf16.gmra.mrb[0].mxu0 %v3551
        %v3949 = vpop.f32.mrb[0].mxu0
        %v3950 = vadd.f32 %v3909, %v3949
        %v3951 = vpop.f32.mrb[0].mxu0
        %v3952 = vpop.f32.mrb[0].mxu0
        %v3953 = vadd.f32 %v3912, %v3952
        %v3954 = vpop.f32.mrb[0].mxu0
        %3955 = vdwg.mxu0
        %3956 = vmatprep.subr.bf16.mxu0 0
        %3957 = vmatpush1.bf16.msra.mxu0 %v3826
        %3958 = vmatprep.subr.bf16.mxu0 0
        %3959 = vmatpush1.bf16.msra.mxu0 %v3827
        %3960 = vmatprep.subr.bf16.mxu0 0
        %3961 = vmatpush1.bf16.msra.mxu0 %v3828
        %3962 = vmatprep.subr.bf16.mxu0 0
        %3963 = vmatpush1.bf16.msra.mxu0 %v3829
        %3964 = vmatprep.subr.bf16.mxu0 0
        %3965 = vmatpush1.bf16.msra.mxu0 %v3830
        %3966 = vmatprep.subr.bf16.mxu0 0
        %3967 = vmatpush1.bf16.msra.mxu0 %v3831
        %3968 = vmatprep.subr.bf16.mxu0 0
        %3969 = vmatpush1.bf16.msra.mxu0 %v3832
        %3970 = vmatprep.subr.bf16.mxu0 0
        %3971 = vmatpush1.bf16.msra.mxu0 %v3833
        %3972 = vmatprep.subr.bf16.mxu0 0
        %3973 = vmatpush1.bf16.msra.mxu0 0
        %3974 = vmatprep.subr.bf16.mxu0 0
        %3975 = vmatpush1.bf16.msra.mxu0 0
        %3976 = vmatprep.subr.bf16.mxu0 0
        %3977 = vmatpush1.bf16.msra.mxu0 0
        %3978 = vmatprep.subr.bf16.mxu0 0
        %3979 = vmatpush1.bf16.msra.mxu0 0
        %3980 = vmatprep.subr.bf16.mxu0 0
        %3981 = vmatpush1.bf16.msra.mxu0 0
        %3982 = vmatprep.subr.bf16.mxu0 0
        %3983 = vmatpush1.bf16.msra.mxu0 0
        %3984 = vmatprep.subr.bf16.mxu0 0
        %3985 = vmatpush1.bf16.msra.mxu0 0
        %3986 = vmatprep.subr.bf16.mxu0 0
        %3987 = vmatpush1.bf16.msra.mxu0 0
        %3988 = vmatprep.mubr.bf16.mxu0 0
        %3989 = vmatmul.mubr.bf16.gmra.mrb[0].mxu0 %v3553
        %v3990 = vpop.f32.mrb[0].mxu0
        %v3991 = vadd.f32 %v3950, %v3990
        %v3992 = vpop.f32.mrb[0].mxu0
        %v3993 = vpop.f32.mrb[0].mxu0
        %v3994 = vadd.f32 %v3953, %v3993
        %v3995 = vpop.f32.mrb[0].mxu0
        %3996 = vdwg.mxu0
        %v3997 = vpack.c.bf16 %v3994, %v3991
        %v3998 = vld [vmem:[%s6] sm:$0xf]
        %v3999 = vld [vmem:[%s6 + $0x4] sm:$0xf]
        %v4000 = vld [vmem:[%s6 + $0x8] sm:$0xf]
        %v4001 = vld [vmem:[%s6 + $0xc] sm:$0xf]
        %s4002 = scalar_lea.vmem %s6, 16
        %v4003 = vld [vmem:[%s4002] sm:$0xf]
        %v4004 = vld [vmem:[%s4002 + $0x4] sm:$0xf]
        %v4005 = vld [vmem:[%s4002 + $0x8] sm:$0xf]
        %v4006 = vld [vmem:[%s4002 + $0xc] sm:$0xf]
        %v4008 = vshrl.u32 %v3997, 16
        %v4014 = vunpack.c.l.b16 %v4003
        %v4015 = vunpack.c.l.b16 %v4004
        %v4016 = vunpack.c.l.b16 %v4005
        %v4017 = vunpack.c.l.b16 %v4006
        %v4018 = vpack.c.b16 %v4015, %v4014
        %v4019 = vpack.c.b16 %v4017, %v4016
        %v4023 = vsel %vm1172, %v4008, 0
        %4025 = vmatprep.subr.bf16.mxu0 0
        %4026 = vmatpush1.bf16.msra.mxu0 %v4018
        %4027 = vmatprep.subr.bf16.mxu0 0
        %4028 = vmatpush1.bf16.msra.mxu0 %v4019
        %4029 = vmatprep.subr.bf16.mxu0 0
        %4030 = vmatpush1.bf16.msra.mxu0 0
        %4031 = vmatprep.subr.bf16.mxu0 0
        %4032 = vmatpush1.bf16.msra.mxu0 0
        %4033 = vmatprep.subr.bf16.mxu0 0
        %4034 = vmatpush1.bf16.msra.mxu0 0
        %4035 = vmatprep.subr.bf16.mxu0 0
        %4036 = vmatpush1.bf16.msra.mxu0 0
        %4037 = vmatprep.subr.bf16.mxu0 0
        %4038 = vmatpush1.bf16.msra.mxu0 0
        %4039 = vmatprep.subr.bf16.mxu0 0
        %4040 = vmatpush1.bf16.msra.mxu0 0
        %4041 = vmatprep.subr.bf16.mxu0 0
        %4042 = vmatpush1.bf16.msra.mxu0 0
        %4043 = vmatprep.subr.bf16.mxu0 0
        %4044 = vmatpush1.bf16.msra.mxu0 0
        %4045 = vmatprep.subr.bf16.mxu0 0
        %4046 = vmatpush1.bf16.msra.mxu0 0
        %4047 = vmatprep.subr.bf16.mxu0 0
        %4048 = vmatpush1.bf16.msra.mxu0 0
        %4049 = vmatprep.subr.bf16.mxu0 0
        %4050 = vmatpush1.bf16.msra.mxu0 0
        %4051 = vmatprep.subr.bf16.mxu0 0
        %4052 = vmatpush1.bf16.msra.mxu0 0
        %4053 = vmatprep.subr.bf16.mxu0 0
        %4054 = vmatpush1.bf16.msra.mxu0 0
        %4055 = vmatprep.subr.bf16.mxu0 0
        %4056 = vmatpush1.bf16.msra.mxu0 0
        %4057 = vmatprep.mubr.bf16.mxu0 0
        %4058 = vmatmul.mubr.bf16.gmra.mrb[0].mxu0 %v4023
        %v4059 = vpop.f32.mrb[0].mxu0
        %v4060 = vadd.f32 0.0, %v4059
        %v4061 = vpop.f32.mrb[0].mxu0
        %v4062 = vpop.f32.mrb[0].mxu0
        %v4063 = vpop.f32.mrb[0].mxu0
        %4064 = vdwg.mxu0
        %v4069 = vunpack.c.l.b16 %v3998
        %v4070 = vunpack.c.l.b16 %v3999
        %v4071 = vunpack.c.l.b16 %v4000
        %v4072 = vunpack.c.l.b16 %v4001
        %v4073 = vpack.c.b16 %v4070, %v4069
        %v4074 = vpack.c.b16 %v4072, %v4071
        %v4077 = vsel %vm1172, %v3997, 0
        %4079 = vmatprep.subr.bf16.mxu0 0
        %4080 = vmatpush1.bf16.msra.mxu0 %v4073
        %4081 = vmatprep.subr.bf16.mxu0 0
        %4082 = vmatpush1.bf16.msra.mxu0 %v4074
        %4083 = vmatprep.subr.bf16.mxu0 0
        %4084 = vmatpush1.bf16.msra.mxu0 0
        %4085 = vmatprep.subr.bf16.mxu0 0
        %4086 = vmatpush1.bf16.msra.mxu0 0
        %4087 = vmatprep.subr.bf16.mxu0 0
        %4088 = vmatpush1.bf16.msra.mxu0 0
        %4089 = vmatprep.subr.bf16.mxu0 0
        %4090 = vmatpush1.bf16.msra.mxu0 0
        %4091 = vmatprep.subr.bf16.mxu0 0
        %4092 = vmatpush1.bf16.msra.mxu0 0
        %4093 = vmatprep.subr.bf16.mxu0 0
        %4094 = vmatpush1.bf16.msra.mxu0 0
        %4095 = vmatprep.subr.bf16.mxu0 0
        %4096 = vmatpush1.bf16.msra.mxu0 0
        %4097 = vmatprep.subr.bf16.mxu0 0
        %4098 = vmatpush1.bf16.msra.mxu0 0
        %4099 = vmatprep.subr.bf16.mxu0 0
        %4100 = vmatpush1.bf16.msra.mxu0 0
        %4101 = vmatprep.subr.bf16.mxu0 0
        %4102 = vmatpush1.bf16.msra.mxu0 0
        %4103 = vmatprep.subr.bf16.mxu0 0
        %4104 = vmatpush1.bf16.msra.mxu0 0
        %4105 = vmatprep.subr.bf16.mxu0 0
        %4106 = vmatpush1.bf16.msra.mxu0 0
        %4107 = vmatprep.subr.bf16.mxu0 0
        %4108 = vmatpush1.bf16.msra.mxu0 0
        %4109 = vmatprep.subr.bf16.mxu0 0
        %4110 = vmatpush1.bf16.msra.mxu0 0
        %4111 = vmatprep.mubr.bf16.mxu0 0
        %4112 = vmatmul.mubr.bf16.gmra.mrb[0].mxu0 %v4077
        %v4113 = vpop.f32.mrb[0].mxu0
        %v4114 = vadd.f32 %v4060, %v4113
        %v4115 = vpop.f32.mrb[0].mxu0
        %v4116 = vpop.f32.mrb[0].mxu0
        %v4117 = vpop.f32.mrb[0].mxu0
        %4118 = vdwg.mxu0
        %s4119 = scalar_lea.vmem %s6, 32
        %v4120 = vld [vmem:[%s4119] sm:$0xf]
        %v4121 = vld [vmem:[%s4119 + $0x4] sm:$0xf]
        %v4122 = vld [vmem:[%s4119 + $0x8] sm:$0xf]
        %v4123 = vld [vmem:[%s4119 + $0xc] sm:$0xf]
        %v4125 = vrot.slane %v3997, 1
        %v4130 = vunpack.c.l.b16 %v4120
        %v4131 = vunpack.c.l.b16 %v4121
        %v4132 = vunpack.c.l.b16 %v4122
        %v4133 = vunpack.c.l.b16 %v4123
        %v4134 = vpack.c.b16 %v4131, %v4130
        %v4135 = vpack.c.b16 %v4133, %v4132
        %v4139 = vsel %vm1172, %v4125, 0
        %4141 = vmatprep.subr.bf16.mxu0 0
        %4142 = vmatpush1.bf16.msra.mxu0 %v4134
        %4143 = vmatprep.subr.bf16.mxu0 0
        %4144 = vmatpush1.bf16.msra.mxu0 %v4135
        %4145 = vmatprep.subr.bf16.mxu0 0
        %4146 = vmatpush1.bf16.msra.mxu0 0
        %4147 = vmatprep.subr.bf16.mxu0 0
        %4148 = vmatpush1.bf16.msra.mxu0 0
        %4149 = vmatprep.subr.bf16.mxu0 0
        %4150 = vmatpush1.bf16.msra.mxu0 0
        %4151 = vmatprep.subr.bf16.mxu0 0
        %4152 = vmatpush1.bf16.msra.mxu0 0
        %4153 = vmatprep.subr.bf16.mxu0 0
        %4154 = vmatpush1.bf16.msra.mxu0 0
        %4155 = vmatprep.subr.bf16.mxu0 0
        %4156 = vmatpush1.bf16.msra.mxu0 0
        %4157 = vmatprep.subr.bf16.mxu0 0
        %4158 = vmatpush1.bf16.msra.mxu0 0
        %4159 = vmatprep.subr.bf16.mxu0 0
        %4160 = vmatpush1.bf16.msra.mxu0 0
        %4161 = vmatprep.subr.bf16.mxu0 0
        %4162 = vmatpush1.bf16.msra.mxu0 0
        %4163 = vmatprep.subr.bf16.mxu0 0
        %4164 = vmatpush1.bf16.msra.mxu0 0
        %4165 = vmatprep.subr.bf16.mxu0 0
        %4166 = vmatpush1.bf16.msra.mxu0 0
        %4167 = vmatprep.subr.bf16.mxu0 0
        %4168 = vmatpush1.bf16.msra.mxu0 0
        %4169 = vmatprep.subr.bf16.mxu0 0
        %4170 = vmatpush1.bf16.msra.mxu0 0
        %4171 = vmatprep.subr.bf16.mxu0 0
        %4172 = vmatpush1.bf16.msra.mxu0 0
        %4173 = vmatprep.mubr.bf16.mxu0 0
        %4174 = vmatmul.mubr.bf16.gmra.mrb[0].mxu0 %v4139
        %v4175 = vpop.f32.mrb[0].mxu0
        %v4176 = vadd.f32 0.0, %v4175
        %v4177 = vpop.f32.mrb[0].mxu0
        %v4178 = vpop.f32.mrb[0].mxu0
        %v4179 = vpop.f32.mrb[0].mxu0
        %4180 = vdwg.mxu0
        %v4181 = vadd.f32 %v4114, %v4176
        %s4182 = scalar_lea.vmem %s6, 48
        %v4183 = vld [vmem:[%s4182] sm:$0xf]
        %v4184 = vld [vmem:[%s4182 + $0x4] sm:$0xf]
        %v4185 = vld [vmem:[%s4182 + $0x8] sm:$0xf]
        %v4186 = vld [vmem:[%s4182 + $0xc] sm:$0xf]
        %v4187 = vrot.slane %v4008, 1
        %v4192 = vunpack.c.l.b16 %v4183
        %v4193 = vunpack.c.l.b16 %v4184
        %v4194 = vunpack.c.l.b16 %v4185
        %v4195 = vunpack.c.l.b16 %v4186
        %v4196 = vpack.c.b16 %v4193, %v4192
        %v4197 = vpack.c.b16 %v4195, %v4194
        %v4201 = vsel %vm1172, %v4187, 0
        %4203 = vmatprep.subr.bf16.mxu0 0
        %4204 = vmatpush1.bf16.msra.mxu0 %v4196
        %4205 = vmatprep.subr.bf16.mxu0 0
        %4206 = vmatpush1.bf16.msra.mxu0 %v4197
        %4207 = vmatprep.subr.bf16.mxu0 0
        %4208 = vmatpush1.bf16.msra.mxu0 0
        %4209 = vmatprep.subr.bf16.mxu0 0
        %4210 = vmatpush1.bf16.msra.mxu0 0
        %4211 = vmatprep.subr.bf16.mxu0 0
        %4212 = vmatpush1.bf16.msra.mxu0 0
        %4213 = vmatprep.subr.bf16.mxu0 0
        %4214 = vmatpush1.bf16.msra.mxu0 0
        %4215 = vmatprep.subr.bf16.mxu0 0
        %4216 = vmatpush1.bf16.msra.mxu0 0
        %4217 = vmatprep.subr.bf16.mxu0 0
        %4218 = vmatpush1.bf16.msra.mxu0 0
        %4219 = vmatprep.subr.bf16.mxu0 0
        %4220 = vmatpush1.bf16.msra.mxu0 0
        %4221 = vmatprep.subr.bf16.mxu0 0
        %4222 = vmatpush1.bf16.msra.mxu0 0
        %4223 = vmatprep.subr.bf16.mxu0 0
        %4224 = vmatpush1.bf16.msra.mxu0 0
        %4225 = vmatprep.subr.bf16.mxu0 0
        %4226 = vmatpush1.bf16.msra.mxu0 0
        %4227 = vmatprep.subr.bf16.mxu0 0
        %4228 = vmatpush1.bf16.msra.mxu0 0
        %4229 = vmatprep.subr.bf16.mxu0 0
        %4230 = vmatpush1.bf16.msra.mxu0 0
        %4231 = vmatprep.subr.bf16.mxu0 0
        %4232 = vmatpush1.bf16.msra.mxu0 0
        %4233 = vmatprep.subr.bf16.mxu0 0
        %4234 = vmatpush1.bf16.msra.mxu0 0
        %4235 = vmatprep.mubr.bf16.mxu0 0
        %4236 = vmatmul.mubr.bf16.gmra.mrb[0].mxu0 %v4201
        %v4237 = vpop.f32.mrb[0].mxu0
        %v4238 = vadd.f32 0.0, %v4237
        %v4239 = vpop.f32.mrb[0].mxu0
        %v4240 = vpop.f32.mrb[0].mxu0
        %v4241 = vpop.f32.mrb[0].mxu0
        %4242 = vdwg.mxu0
        %v4243 = vadd.f32 %v4181, %v4238
        %s4244 = scalar_lea.vmem %s6, 64
        %v4245 = vld [vmem:[%s4244] sm:$0xf]
        %v4246 = vld [vmem:[%s4244 + $0x4] sm:$0xf]
        %v4247 = vld [vmem:[%s4244 + $0x8] sm:$0xf]
        %v4248 = vld [vmem:[%s4244 + $0xc] sm:$0xf]
        %v4249 = vrot.slane %v3997, 2
        %v4254 = vunpack.c.l.b16 %v4245
        %v4255 = vunpack.c.l.b16 %v4246
        %v4256 = vunpack.c.l.b16 %v4247
        %v4257 = vunpack.c.l.b16 %v4248
        %v4258 = vpack.c.b16 %v4255, %v4254
        %v4259 = vpack.c.b16 %v4257, %v4256
        %v4263 = vsel %vm1172, %v4249, 0
        %4265 = vmatprep.subr.bf16.mxu0 0
        %4266 = vmatpush1.bf16.msra.mxu0 %v4258
        %4267 = vmatprep.subr.bf16.mxu0 0
        %4268 = vmatpush1.bf16.msra.mxu0 %v4259
        %4269 = vmatprep.subr.bf16.mxu0 0
        %4270 = vmatpush1.bf16.msra.mxu0 0
        %4271 = vmatprep.subr.bf16.mxu0 0
        %4272 = vmatpush1.bf16.msra.mxu0 0
        %4273 = vmatprep.subr.bf16.mxu0 0
        %4274 = vmatpush1.bf16.msra.mxu0 0
        %4275 = vmatprep.subr.bf16.mxu0 0
        %4276 = vmatpush1.bf16.msra.mxu0 0
        %4277 = vmatprep.subr.bf16.mxu0 0
        %4278 = vmatpush1.bf16.msra.mxu0 0
        %4279 = vmatprep.subr.bf16.mxu0 0
        %4280 = vmatpush1.bf16.msra.mxu0 0
        %4281 = vmatprep.subr.bf16.mxu0 0
        %4282 = vmatpush1.bf16.msra.mxu0 0
        %4283 = vmatprep.subr.bf16.mxu0 0
        %4284 = vmatpush1.bf16.msra.mxu0 0
        %4285 = vmatprep.subr.bf16.mxu0 0
        %4286 = vmatpush1.bf16.msra.mxu0 0
        %4287 = vmatprep.subr.bf16.mxu0 0
        %4288 = vmatpush1.bf16.msra.mxu0 0
        %4289 = vmatprep.subr.bf16.mxu0 0
        %4290 = vmatpush1.bf16.msra.mxu0 0
        %4291 = vmatprep.subr.bf16.mxu0 0
        %4292 = vmatpush1.bf16.msra.mxu0 0
        %4293 = vmatprep.subr.bf16.mxu0 0
        %4294 = vmatpush1.bf16.msra.mxu0 0
        %4295 = vmatprep.subr.bf16.mxu0 0
        %4296 = vmatpush1.bf16.msra.mxu0 0
        %4297 = vmatprep.mubr.bf16.mxu0 0
        %4298 = vmatmul.mubr.bf16.gmra.mrb[0].mxu0 %v4263
        %v4299 = vpop.f32.mrb[0].mxu0
        %v4300 = vadd.f32 0.0, %v4299
        %v4301 = vpop.f32.mrb[0].mxu0
        %v4302 = vpop.f32.mrb[0].mxu0
        %v4303 = vpop.f32.mrb[0].mxu0
        %4304 = vdwg.mxu0
        %v4305 = vadd.f32 %v4243, %v4300
        %s4306 = scalar_lea.vmem %s6, 80
        %v4307 = vld [vmem:[%s4306] sm:$0xf]
        %v4308 = vld [vmem:[%s4306 + $0x4] sm:$0xf]
        %v4309 = vld [vmem:[%s4306 + $0x8] sm:$0xf]
        %v4310 = vld [vmem:[%s4306 + $0xc] sm:$0xf]
        %v4311 = vrot.slane %v4008, 2
        %v4316 = vunpack.c.l.b16 %v4307
        %v4317 = vunpack.c.l.b16 %v4308
        %v4318 = vunpack.c.l.b16 %v4309
        %v4319 = vunpack.c.l.b16 %v4310
        %v4320 = vpack.c.b16 %v4317, %v4316
        %v4321 = vpack.c.b16 %v4319, %v4318
        %v4325 = vsel %vm1172, %v4311, 0
        %4327 = vmatprep.subr.bf16.mxu0 0
        %4328 = vmatpush1.bf16.msra.mxu0 %v4320
        %4329 = vmatprep.subr.bf16.mxu0 0
        %4330 = vmatpush1.bf16.msra.mxu0 %v4321
        %4331 = vmatprep.subr.bf16.mxu0 0
        %4332 = vmatpush1.bf16.msra.mxu0 0
        %4333 = vmatprep.subr.bf16.mxu0 0
        %4334 = vmatpush1.bf16.msra.mxu0 0
        %4335 = vmatprep.subr.bf16.mxu0 0
        %4336 = vmatpush1.bf16.msra.mxu0 0
        %4337 = vmatprep.subr.bf16.mxu0 0
        %4338 = vmatpush1.bf16.msra.mxu0 0
        %4339 = vmatprep.subr.bf16.mxu0 0
        %4340 = vmatpush1.bf16.msra.mxu0 0
        %4341 = vmatprep.subr.bf16.mxu0 0
        %4342 = vmatpush1.bf16.msra.mxu0 0
        %4343 = vmatprep.subr.bf16.mxu0 0
        %4344 = vmatpush1.bf16.msra.mxu0 0
        %4345 = vmatprep.subr.bf16.mxu0 0
        %4346 = vmatpush1.bf16.msra.mxu0 0
        %4347 = vmatprep.subr.bf16.mxu0 0
        %4348 = vmatpush1.bf16.msra.mxu0 0
        %4349 = vmatprep.subr.bf16.mxu0 0
        %4350 = vmatpush1.bf16.msra.mxu0 0
        %4351 = vmatprep.subr.bf16.mxu0 0
        %4352 = vmatpush1.bf16.msra.mxu0 0
        %4353 = vmatprep.subr.bf16.mxu0 0
        %4354 = vmatpush1.bf16.msra.mxu0 0
        %4355 = vmatprep.subr.bf16.mxu0 0
        %4356 = vmatpush1.bf16.msra.mxu0 0
        %4357 = vmatprep.subr.bf16.mxu0 0
        %4358 = vmatpush1.bf16.msra.mxu0 0
        %4359 = vmatprep.mubr.bf16.mxu0 0
        %4360 = vmatmul.mubr.bf16.gmra.mrb[0].mxu0 %v4325
        %v4361 = vpop.f32.mrb[0].mxu0
        %v4362 = vadd.f32 0.0, %v4361
        %v4363 = vpop.f32.mrb[0].mxu0
        %v4364 = vpop.f32.mrb[0].mxu0
        %v4365 = vpop.f32.mrb[0].mxu0
        %4366 = vdwg.mxu0
        %v4367 = vadd.f32 %v4305, %v4362
        %s4368 = scalar_lea.vmem %s6, 96
        %v4369 = vld [vmem:[%s4368] sm:$0xf]
        %v4370 = vld [vmem:[%s4368 + $0x4] sm:$0xf]
        %v4371 = vld [vmem:[%s4368 + $0x8] sm:$0xf]
        %v4372 = vld [vmem:[%s4368 + $0xc] sm:$0xf]
        %v4373 = vrot.slane %v3997, 3
        %v4378 = vunpack.c.l.b16 %v4369
        %v4379 = vunpack.c.l.b16 %v4370
        %v4380 = vunpack.c.l.b16 %v4371
        %v4381 = vunpack.c.l.b16 %v4372
        %v4382 = vpack.c.b16 %v4379, %v4378
        %v4383 = vpack.c.b16 %v4381, %v4380
        %v4387 = vsel %vm1172, %v4373, 0
        %4389 = vmatprep.subr.bf16.mxu0 0
        %4390 = vmatpush1.bf16.msra.mxu0 %v4382
        %4391 = vmatprep.subr.bf16.mxu0 0
        %4392 = vmatpush1.bf16.msra.mxu0 %v4383
        %4393 = vmatprep.subr.bf16.mxu0 0
        %4394 = vmatpush1.bf16.msra.mxu0 0
        %4395 = vmatprep.subr.bf16.mxu0 0
        %4396 = vmatpush1.bf16.msra.mxu0 0
        %4397 = vmatprep.subr.bf16.mxu0 0
        %4398 = vmatpush1.bf16.msra.mxu0 0
        %4399 = vmatprep.subr.bf16.mxu0 0
        %4400 = vmatpush1.bf16.msra.mxu0 0
        %4401 = vmatprep.subr.bf16.mxu0 0
        %4402 = vmatpush1.bf16.msra.mxu0 0
        %4403 = vmatprep.subr.bf16.mxu0 0
        %4404 = vmatpush1.bf16.msra.mxu0 0
        %4405 = vmatprep.subr.bf16.mxu0 0
        %4406 = vmatpush1.bf16.msra.mxu0 0
        %4407 = vmatprep.subr.bf16.mxu0 0
        %4408 = vmatpush1.bf16.msra.mxu0 0
        %4409 = vmatprep.subr.bf16.mxu0 0
        %4410 = vmatpush1.bf16.msra.mxu0 0
        %4411 = vmatprep.subr.bf16.mxu0 0
        %4412 = vmatpush1.bf16.msra.mxu0 0
        %4413 = vmatprep.subr.bf16.mxu0 0
        %4414 = vmatpush1.bf16.msra.mxu0 0
        %4415 = vmatprep.subr.bf16.mxu0 0
        %4416 = vmatpush1.bf16.msra.mxu0 0
        %4417 = vmatprep.subr.bf16.mxu0 0
        %4418 = vmatpush1.bf16.msra.mxu0 0
        %4419 = vmatprep.subr.bf16.mxu0 0
        %4420 = vmatpush1.bf16.msra.mxu0 0
        %4421 = vmatprep.mubr.bf16.mxu0 0
        %4422 = vmatmul.mubr.bf16.gmra.mrb[0].mxu0 %v4387
        %v4423 = vpop.f32.mrb[0].mxu0
        %v4424 = vadd.f32 0.0, %v4423
        %v4425 = vpop.f32.mrb[0].mxu0
        %v4426 = vpop.f32.mrb[0].mxu0
        %v4427 = vpop.f32.mrb[0].mxu0
        %4428 = vdwg.mxu0
        %v4429 = vadd.f32 %v4367, %v4424
        %s4430 = scalar_lea.vmem %s6, 112
        %v4431 = vld [vmem:[%s4430] sm:$0xf]
        %v4432 = vld [vmem:[%s4430 + $0x4] sm:$0xf]
        %v4433 = vld [vmem:[%s4430 + $0x8] sm:$0xf]
        %v4434 = vld [vmem:[%s4430 + $0xc] sm:$0xf]
        %v4435 = vrot.slane %v4008, 3
        %v4440 = vunpack.c.l.b16 %v4431
        %v4441 = vunpack.c.l.b16 %v4432
        %v4442 = vunpack.c.l.b16 %v4433
        %v4443 = vunpack.c.l.b16 %v4434
        %v4444 = vpack.c.b16 %v4441, %v4440
        %v4445 = vpack.c.b16 %v4443, %v4442
        %v4449 = vsel %vm1172, %v4435, 0
        %4451 = vmatprep.subr.bf16.mxu0 0
        %4452 = vmatpush1.bf16.msra.mxu0 %v4444
        %4453 = vmatprep.subr.bf16.mxu0 0
        %4454 = vmatpush1.bf16.msra.mxu0 %v4445
        %4455 = vmatprep.subr.bf16.mxu0 0
        %4456 = vmatpush1.bf16.msra.mxu0 0
        %4457 = vmatprep.subr.bf16.mxu0 0
        %4458 = vmatpush1.bf16.msra.mxu0 0
        %4459 = vmatprep.subr.bf16.mxu0 0
        %4460 = vmatpush1.bf16.msra.mxu0 0
        %4461 = vmatprep.subr.bf16.mxu0 0
        %4462 = vmatpush1.bf16.msra.mxu0 0
        %4463 = vmatprep.subr.bf16.mxu0 0
        %4464 = vmatpush1.bf16.msra.mxu0 0
        %4465 = vmatprep.subr.bf16.mxu0 0
        %4466 = vmatpush1.bf16.msra.mxu0 0
        %4467 = vmatprep.subr.bf16.mxu0 0
        %4468 = vmatpush1.bf16.msra.mxu0 0
        %4469 = vmatprep.subr.bf16.mxu0 0
        %4470 = vmatpush1.bf16.msra.mxu0 0
        %4471 = vmatprep.subr.bf16.mxu0 0
        %4472 = vmatpush1.bf16.msra.mxu0 0
        %4473 = vmatprep.subr.bf16.mxu0 0
        %4474 = vmatpush1.bf16.msra.mxu0 0
        %4475 = vmatprep.subr.bf16.mxu0 0
        %4476 = vmatpush1.bf16.msra.mxu0 0
        %4477 = vmatprep.subr.bf16.mxu0 0
        %4478 = vmatpush1.bf16.msra.mxu0 0
        %4479 = vmatprep.subr.bf16.mxu0 0
        %4480 = vmatpush1.bf16.msra.mxu0 0
        %4481 = vmatprep.subr.bf16.mxu0 0
        %4482 = vmatpush1.bf16.msra.mxu0 0
        %4483 = vmatprep.mubr.bf16.mxu0 0
        %4484 = vmatmul.mubr.bf16.gmra.mrb[0].mxu0 %v4449
        %v4485 = vpop.f32.mrb[0].mxu0
        %v4486 = vadd.f32 0.0, %v4485
        %v4487 = vpop.f32.mrb[0].mxu0
        %v4488 = vpop.f32.mrb[0].mxu0
        %v4489 = vpop.f32.mrb[0].mxu0
        %4490 = vdwg.mxu0
        %v4491 = vadd.f32 %v4429, %v4486
        %s4492 = scalar_lea.vmem %s6, 128
        %v4493 = vld [vmem:[%s4492] sm:$0xf]
        %v4494 = vld [vmem:[%s4492 + $0x4] sm:$0xf]
        %v4495 = vld [vmem:[%s4492 + $0x8] sm:$0xf]
        %v4496 = vld [vmem:[%s4492 + $0xc] sm:$0xf]
        %v4497 = vrot.slane %v3997, 4
        %v4502 = vunpack.c.l.b16 %v4493
        %v4503 = vunpack.c.l.b16 %v4494
        %v4504 = vunpack.c.l.b16 %v4495
        %v4505 = vunpack.c.l.b16 %v4496
        %v4506 = vpack.c.b16 %v4503, %v4502
        %v4507 = vpack.c.b16 %v4505, %v4504
        %v4511 = vsel %vm1172, %v4497, 0
        %4513 = vmatprep.subr.bf16.mxu0 0
        %4514 = vmatpush1.bf16.msra.mxu0 %v4506
        %4515 = vmatprep.subr.bf16.mxu0 0
        %4516 = vmatpush1.bf16.msra.mxu0 %v4507
        %4517 = vmatprep.subr.bf16.mxu0 0
        %4518 = vmatpush1.bf16.msra.mxu0 0
        %4519 = vmatprep.subr.bf16.mxu0 0
        %4520 = vmatpush1.bf16.msra.mxu0 0
        %4521 = vmatprep.subr.bf16.mxu0 0
        %4522 = vmatpush1.bf16.msra.mxu0 0
        %4523 = vmatprep.subr.bf16.mxu0 0
        %4524 = vmatpush1.bf16.msra.mxu0 0
        %4525 = vmatprep.subr.bf16.mxu0 0
        %4526 = vmatpush1.bf16.msra.mxu0 0
        %4527 = vmatprep.subr.bf16.mxu0 0
        %4528 = vmatpush1.bf16.msra.mxu0 0
        %4529 = vmatprep.subr.bf16.mxu0 0
        %4530 = vmatpush1.bf16.msra.mxu0 0
        %4531 = vmatprep.subr.bf16.mxu0 0
        %4532 = vmatpush1.bf16.msra.mxu0 0
        %4533 = vmatprep.subr.bf16.mxu0 0
        %4534 = vmatpush1.bf16.msra.mxu0 0
        %4535 = vmatprep.subr.bf16.mxu0 0
        %4536 = vmatpush1.bf16.msra.mxu0 0
        %4537 = vmatprep.subr.bf16.mxu0 0
        %4538 = vmatpush1.bf16.msra.mxu0 0
        %4539 = vmatprep.subr.bf16.mxu0 0
        %4540 = vmatpush1.bf16.msra.mxu0 0
        %4541 = vmatprep.subr.bf16.mxu0 0
        %4542 = vmatpush1.bf16.msra.mxu0 0
        %4543 = vmatprep.subr.bf16.mxu0 0
        %4544 = vmatpush1.bf16.msra.mxu0 0
        %4545 = vmatprep.mubr.bf16.mxu0 0
        %4546 = vmatmul.mubr.bf16.gmra.mrb[0].mxu0 %v4511
        %v4547 = vpop.f32.mrb[0].mxu0
        %v4548 = vadd.f32 0.0, %v4547
        %v4549 = vpop.f32.mrb[0].mxu0
        %v4550 = vpop.f32.mrb[0].mxu0
        %v4551 = vpop.f32.mrb[0].mxu0
        %4552 = vdwg.mxu0
        %v4553 = vadd.f32 %v4491, %v4548
        %s4554 = scalar_lea.vmem %s6, 144
        %v4555 = vld [vmem:[%s4554] sm:$0xf]
        %v4556 = vld [vmem:[%s4554 + $0x4] sm:$0xf]
        %v4557 = vld [vmem:[%s4554 + $0x8] sm:$0xf]
        %v4558 = vld [vmem:[%s4554 + $0xc] sm:$0xf]
        %v4559 = vrot.slane %v4008, 4
        %v4564 = vunpack.c.l.b16 %v4555
        %v4565 = vunpack.c.l.b16 %v4556
        %v4566 = vunpack.c.l.b16 %v4557
        %v4567 = vunpack.c.l.b16 %v4558
        %v4568 = vpack.c.b16 %v4565, %v4564
        %v4569 = vpack.c.b16 %v4567, %v4566
        %v4573 = vsel %vm1172, %v4559, 0
        %4575 = vmatprep.subr.bf16.mxu0 0
        %4576 = vmatpush1.bf16.msra.mxu0 %v4568
        %4577 = vmatprep.subr.bf16.mxu0 0
        %4578 = vmatpush1.bf16.msra.mxu0 %v4569
        %4579 = vmatprep.subr.bf16.mxu0 0
        %4580 = vmatpush1.bf16.msra.mxu0 0
        %4581 = vmatprep.subr.bf16.mxu0 0
        %4582 = vmatpush1.bf16.msra.mxu0 0
        %4583 = vmatprep.subr.bf16.mxu0 0
        %4584 = vmatpush1.bf16.msra.mxu0 0
        %4585 = vmatprep.subr.bf16.mxu0 0
        %4586 = vmatpush1.bf16.msra.mxu0 0
        %4587 = vmatprep.subr.bf16.mxu0 0
        %4588 = vmatpush1.bf16.msra.mxu0 0
        %4589 = vmatprep.subr.bf16.mxu0 0
        %4590 = vmatpush1.bf16.msra.mxu0 0
        %4591 = vmatprep.subr.bf16.mxu0 0
        %4592 = vmatpush1.bf16.msra.mxu0 0
        %4593 = vmatprep.subr.bf16.mxu0 0
        %4594 = vmatpush1.bf16.msra.mxu0 0
        %4595 = vmatprep.subr.bf16.mxu0 0
        %4596 = vmatpush1.bf16.msra.mxu0 0
        %4597 = vmatprep.subr.bf16.mxu0 0
        %4598 = vmatpush1.bf16.msra.mxu0 0
        %4599 = vmatprep.subr.bf16.mxu0 0
        %4600 = vmatpush1.bf16.msra.mxu0 0
        %4601 = vmatprep.subr.bf16.mxu0 0
        %4602 = vmatpush1.bf16.msra.mxu0 0
        %4603 = vmatprep.subr.bf16.mxu0 0
        %4604 = vmatpush1.bf16.msra.mxu0 0
        %4605 = vmatprep.subr.bf16.mxu0 0
        %4606 = vmatpush1.bf16.msra.mxu0 0
        %4607 = vmatprep.mubr.bf16.mxu0 0
        %4608 = vmatmul.mubr.bf16.gmra.mrb[0].mxu0 %v4573
        %v4609 = vpop.f32.mrb[0].mxu0
        %v4610 = vadd.f32 0.0, %v4609
        %v4611 = vpop.f32.mrb[0].mxu0
        %v4612 = vpop.f32.mrb[0].mxu0
        %v4613 = vpop.f32.mrb[0].mxu0
        %4614 = vdwg.mxu0
        %v4615 = vadd.f32 %v4553, %v4610
        %s4616 = scalar_lea.vmem %s6, 160
        %v4617 = vld [vmem:[%s4616] sm:$0xf]
        %v4618 = vld [vmem:[%s4616 + $0x4] sm:$0xf]
        %v4619 = vld [vmem:[%s4616 + $0x8] sm:$0xf]
        %v4620 = vld [vmem:[%s4616 + $0xc] sm:$0xf]
        %v4621 = vrot.slane %v3997, 5
        %v4626 = vunpack.c.l.b16 %v4617
        %v4627 = vunpack.c.l.b16 %v4618
        %v4628 = vunpack.c.l.b16 %v4619
        %v4629 = vunpack.c.l.b16 %v4620
        %v4630 = vpack.c.b16 %v4627, %v4626
        %v4631 = vpack.c.b16 %v4629, %v4628
        %v4635 = vsel %vm1172, %v4621, 0
        %4637 = vmatprep.subr.bf16.mxu0 0
        %4638 = vmatpush1.bf16.msra.mxu0 %v4630
        %4639 = vmatprep.subr.bf16.mxu0 0
        %4640 = vmatpush1.bf16.msra.mxu0 %v4631
        %4641 = vmatprep.subr.bf16.mxu0 0
        %4642 = vmatpush1.bf16.msra.mxu0 0
        %4643 = vmatprep.subr.bf16.mxu0 0
        %4644 = vmatpush1.bf16.msra.mxu0 0
        %4645 = vmatprep.subr.bf16.mxu0 0
        %4646 = vmatpush1.bf16.msra.mxu0 0
        %4647 = vmatprep.subr.bf16.mxu0 0
        %4648 = vmatpush1.bf16.msra.mxu0 0
        %4649 = vmatprep.subr.bf16.mxu0 0
        %4650 = vmatpush1.bf16.msra.mxu0 0
        %4651 = vmatprep.subr.bf16.mxu0 0
        %4652 = vmatpush1.bf16.msra.mxu0 0
        %4653 = vmatprep.subr.bf16.mxu0 0
        %4654 = vmatpush1.bf16.msra.mxu0 0
        %4655 = vmatprep.subr.bf16.mxu0 0
        %4656 = vmatpush1.bf16.msra.mxu0 0
        %4657 = vmatprep.subr.bf16.mxu0 0
        %4658 = vmatpush1.bf16.msra.mxu0 0
        %4659 = vmatprep.subr.bf16.mxu0 0
        %4660 = vmatpush1.bf16.msra.mxu0 0
        %4661 = vmatprep.subr.bf16.mxu0 0
        %4662 = vmatpush1.bf16.msra.mxu0 0
        %4663 = vmatprep.subr.bf16.mxu0 0
        %4664 = vmatpush1.bf16.msra.mxu0 0
        %4665 = vmatprep.subr.bf16.mxu0 0
        %4666 = vmatpush1.bf16.msra.mxu0 0
        %4667 = vmatprep.subr.bf16.mxu0 0
        %4668 = vmatpush1.bf16.msra.mxu0 0
        %4669 = vmatprep.mubr.bf16.mxu0 0
        %4670 = vmatmul.mubr.bf16.gmra.mrb[0].mxu0 %v4635
        %v4671 = vpop.f32.mrb[0].mxu0
        %v4672 = vadd.f32 0.0, %v4671
        %v4673 = vpop.f32.mrb[0].mxu0
        %v4674 = vpop.f32.mrb[0].mxu0
        %v4675 = vpop.f32.mrb[0].mxu0
        %4676 = vdwg.mxu0
        %v4677 = vadd.f32 %v4615, %v4672
        %s4678 = scalar_lea.vmem %s6, 176
        %v4679 = vld [vmem:[%s4678] sm:$0xf]
        %v4680 = vld [vmem:[%s4678 + $0x4] sm:$0xf]
        %v4681 = vld [vmem:[%s4678 + $0x8] sm:$0xf]
        %v4682 = vld [vmem:[%s4678 + $0xc] sm:$0xf]
        %v4683 = vrot.slane %v4008, 5
        %v4688 = vunpack.c.l.b16 %v4679
        %v4689 = vunpack.c.l.b16 %v4680
        %v4690 = vunpack.c.l.b16 %v4681
        %v4691 = vunpack.c.l.b16 %v4682
        %v4692 = vpack.c.b16 %v4689, %v4688
        %v4693 = vpack.c.b16 %v4691, %v4690
        %v4697 = vsel %vm1172, %v4683, 0
        %4699 = vmatprep.subr.bf16.mxu0 0
        %4700 = vmatpush1.bf16.msra.mxu0 %v4692
        %4701 = vmatprep.subr.bf16.mxu0 0
        %4702 = vmatpush1.bf16.msra.mxu0 %v4693
        %4703 = vmatprep.subr.bf16.mxu0 0
        %4704 = vmatpush1.bf16.msra.mxu0 0
        %4705 = vmatprep.subr.bf16.mxu0 0
        %4706 = vmatpush1.bf16.msra.mxu0 0
        %4707 = vmatprep.subr.bf16.mxu0 0
        %4708 = vmatpush1.bf16.msra.mxu0 0
        %4709 = vmatprep.subr.bf16.mxu0 0
        %4710 = vmatpush1.bf16.msra.mxu0 0
        %4711 = vmatprep.subr.bf16.mxu0 0
        %4712 = vmatpush1.bf16.msra.mxu0 0
        %4713 = vmatprep.subr.bf16.mxu0 0
        %4714 = vmatpush1.bf16.msra.mxu0 0
        %4715 = vmatprep.subr.bf16.mxu0 0
        %4716 = vmatpush1.bf16.msra.mxu0 0
        %4717 = vmatprep.subr.bf16.mxu0 0
        %4718 = vmatpush1.bf16.msra.mxu0 0
        %4719 = vmatprep.subr.bf16.mxu0 0
        %4720 = vmatpush1.bf16.msra.mxu0 0
        %4721 = vmatprep.subr.bf16.mxu0 0
        %4722 = vmatpush1.bf16.msra.mxu0 0
        %4723 = vmatprep.subr.bf16.mxu0 0
        %4724 = vmatpush1.bf16.msra.mxu0 0
        %4725 = vmatprep.subr.bf16.mxu0 0
        %4726 = vmatpush1.bf16.msra.mxu0 0
        %4727 = vmatprep.subr.bf16.mxu0 0
        %4728 = vmatpush1.bf16.msra.mxu0 0
        %4729 = vmatprep.subr.bf16.mxu0 0
        %4730 = vmatpush1.bf16.msra.mxu0 0
        %4731 = vmatprep.mubr.bf16.mxu0 0
        %4732 = vmatmul.mubr.bf16.gmra.mrb[0].mxu0 %v4697
        %v4733 = vpop.f32.mrb[0].mxu0
        %v4734 = vadd.f32 0.0, %v4733
        %v4735 = vpop.f32.mrb[0].mxu0
        %v4736 = vpop.f32.mrb[0].mxu0
        %v4737 = vpop.f32.mrb[0].mxu0
        %4738 = vdwg.mxu0
        %v4739 = vadd.f32 %v4677, %v4734
        %s4740 = scalar_lea.vmem %s6, 192
        %v4741 = vld [vmem:[%s4740] sm:$0xf]
        %v4742 = vld [vmem:[%s4740 + $0x4] sm:$0xf]
        %v4743 = vld [vmem:[%s4740 + $0x8] sm:$0xf]
        %v4744 = vld [vmem:[%s4740 + $0xc] sm:$0xf]
        %v4745 = vrot.slane %v3997, 6
        %v4750 = vunpack.c.l.b16 %v4741
        %v4751 = vunpack.c.l.b16 %v4742
        %v4752 = vunpack.c.l.b16 %v4743
        %v4753 = vunpack.c.l.b16 %v4744
        %v4754 = vpack.c.b16 %v4751, %v4750
        %v4755 = vpack.c.b16 %v4753, %v4752
        %v4759 = vsel %vm1172, %v4745, 0
        %4761 = vmatprep.subr.bf16.mxu0 0
        %4762 = vmatpush1.bf16.msra.mxu0 %v4754
        %4763 = vmatprep.subr.bf16.mxu0 0
        %4764 = vmatpush1.bf16.msra.mxu0 %v4755
        %4765 = vmatprep.subr.bf16.mxu0 0
        %4766 = vmatpush1.bf16.msra.mxu0 0
        %4767 = vmatprep.subr.bf16.mxu0 0
        %4768 = vmatpush1.bf16.msra.mxu0 0
        %4769 = vmatprep.subr.bf16.mxu0 0
        %4770 = vmatpush1.bf16.msra.mxu0 0
        %4771 = vmatprep.subr.bf16.mxu0 0
        %4772 = vmatpush1.bf16.msra.mxu0 0
        %4773 = vmatprep.subr.bf16.mxu0 0
        %4774 = vmatpush1.bf16.msra.mxu0 0
        %4775 = vmatprep.subr.bf16.mxu0 0
        %4776 = vmatpush1.bf16.msra.mxu0 0
        %4777 = vmatprep.subr.bf16.mxu0 0
        %4778 = vmatpush1.bf16.msra.mxu0 0
        %4779 = vmatprep.subr.bf16.mxu0 0
        %4780 = vmatpush1.bf16.msra.mxu0 0
        %4781 = vmatprep.subr.bf16.mxu0 0
        %4782 = vmatpush1.bf16.msra.mxu0 0
        %4783 = vmatprep.subr.bf16.mxu0 0
        %4784 = vmatpush1.bf16.msra.mxu0 0
        %4785 = vmatprep.subr.bf16.mxu0 0
        %4786 = vmatpush1.bf16.msra.mxu0 0
        %4787 = vmatprep.subr.bf16.mxu0 0
        %4788 = vmatpush1.bf16.msra.mxu0 0
        %4789 = vmatprep.subr.bf16.mxu0 0
        %4790 = vmatpush1.bf16.msra.mxu0 0
        %4791 = vmatprep.subr.bf16.mxu0 0
        %4792 = vmatpush1.bf16.msra.mxu0 0
        %4793 = vmatprep.mubr.bf16.mxu0 0
        %4794 = vmatmul.mubr.bf16.gmra.mrb[0].mxu0 %v4759
        %v4795 = vpop.f32.mrb[0].mxu0
        %v4796 = vadd.f32 0.0, %v4795
        %v4797 = vpop.f32.mrb[0].mxu0
        %v4798 = vpop.f32.mrb[0].mxu0
        %v4799 = vpop.f32.mrb[0].mxu0
        %4800 = vdwg.mxu0
        %v4801 = vadd.f32 %v4739, %v4796
        %s4802 = scalar_lea.vmem %s6, 208
        %v4803 = vld [vmem:[%s4802] sm:$0xf]
        %v4804 = vld [vmem:[%s4802 + $0x4] sm:$0xf]
        %v4805 = vld [vmem:[%s4802 + $0x8] sm:$0xf]
        %v4806 = vld [vmem:[%s4802 + $0xc] sm:$0xf]
        %v4807 = vrot.slane %v4008, 6
        %v4812 = vunpack.c.l.b16 %v4803
        %v4813 = vunpack.c.l.b16 %v4804
        %v4814 = vunpack.c.l.b16 %v4805
        %v4815 = vunpack.c.l.b16 %v4806
        %v4816 = vpack.c.b16 %v4813, %v4812
        %v4817 = vpack.c.b16 %v4815, %v4814
        %v4821 = vsel %vm1172, %v4807, 0
        %4823 = vmatprep.subr.bf16.mxu0 0
        %4824 = vmatpush1.bf16.msra.mxu0 %v4816
        %4825 = vmatprep.subr.bf16.mxu0 0
        %4826 = vmatpush1.bf16.msra.mxu0 %v4817
        %4827 = vmatprep.subr.bf16.mxu0 0
        %4828 = vmatpush1.bf16.msra.mxu0 0
        %4829 = vmatprep.subr.bf16.mxu0 0
        %4830 = vmatpush1.bf16.msra.mxu0 0
        %4831 = vmatprep.subr.bf16.mxu0 0
        %4832 = vmatpush1.bf16.msra.mxu0 0
        %4833 = vmatprep.subr.bf16.mxu0 0
        %4834 = vmatpush1.bf16.msra.mxu0 0
        %4835 = vmatprep.subr.bf16.mxu0 0
        %4836 = vmatpush1.bf16.msra.mxu0 0
        %4837 = vmatprep.subr.bf16.mxu0 0
        %4838 = vmatpush1.bf16.msra.mxu0 0
        %4839 = vmatprep.subr.bf16.mxu0 0
        %4840 = vmatpush1.bf16.msra.mxu0 0
        %4841 = vmatprep.subr.bf16.mxu0 0
        %4842 = vmatpush1.bf16.msra.mxu0 0
        %4843 = vmatprep.subr.bf16.mxu0 0
        %4844 = vmatpush1.bf16.msra.mxu0 0
        %4845 = vmatprep.subr.bf16.mxu0 0
        %4846 = vmatpush1.bf16.msra.mxu0 0
        %4847 = vmatprep.subr.bf16.mxu0 0
        %4848 = vmatpush1.bf16.msra.mxu0 0
        %4849 = vmatprep.subr.bf16.mxu0 0
        %4850 = vmatpush1.bf16.msra.mxu0 0
        %4851 = vmatprep.subr.bf16.mxu0 0
        %4852 = vmatpush1.bf16.msra.mxu0 0
        %4853 = vmatprep.subr.bf16.mxu0 0
        %4854 = vmatpush1.bf16.msra.mxu0 0
        %4855 = vmatprep.mubr.bf16.mxu0 0
        %4856 = vmatmul.mubr.bf16.gmra.mrb[0].mxu0 %v4821
        %v4857 = vpop.f32.mrb[0].mxu0
        %v4858 = vadd.f32 0.0, %v4857
        %v4859 = vpop.f32.mrb[0].mxu0
        %v4860 = vpop.f32.mrb[0].mxu0
        %v4861 = vpop.f32.mrb[0].mxu0
        %4862 = vdwg.mxu0
        %v4863 = vadd.f32 %v4801, %v4858
        %s4864 = scalar_lea.vmem %s6, 224
        %v4865 = vld [vmem:[%s4864] sm:$0xf]
        %v4866 = vld [vmem:[%s4864 + $0x4] sm:$0xf]
        %v4867 = vld [vmem:[%s4864 + $0x8] sm:$0xf]
        %v4868 = vld [vmem:[%s4864 + $0xc] sm:$0xf]
        %v4869 = vrot.slane %v3997, 7
        %v4874 = vunpack.c.l.b16 %v4865
        %v4875 = vunpack.c.l.b16 %v4866
        %v4876 = vunpack.c.l.b16 %v4867
        %v4877 = vunpack.c.l.b16 %v4868
        %v4878 = vpack.c.b16 %v4875, %v4874
        %v4879 = vpack.c.b16 %v4877, %v4876
        %v4883 = vsel %vm1172, %v4869, 0
        %4885 = vmatprep.subr.bf16.mxu0 0
        %4886 = vmatpush1.bf16.msra.mxu0 %v4878
        %4887 = vmatprep.subr.bf16.mxu0 0
        %4888 = vmatpush1.bf16.msra.mxu0 %v4879
        %4889 = vmatprep.subr.bf16.mxu0 0
        %4890 = vmatpush1.bf16.msra.mxu0 0
        %4891 = vmatprep.subr.bf16.mxu0 0
        %4892 = vmatpush1.bf16.msra.mxu0 0
        %4893 = vmatprep.subr.bf16.mxu0 0
        %4894 = vmatpush1.bf16.msra.mxu0 0
        %4895 = vmatprep.subr.bf16.mxu0 0
        %4896 = vmatpush1.bf16.msra.mxu0 0
        %4897 = vmatprep.subr.bf16.mxu0 0
        %4898 = vmatpush1.bf16.msra.mxu0 0
        %4899 = vmatprep.subr.bf16.mxu0 0
        %4900 = vmatpush1.bf16.msra.mxu0 0
        %4901 = vmatprep.subr.bf16.mxu0 0
        %4902 = vmatpush1.bf16.msra.mxu0 0
        %4903 = vmatprep.subr.bf16.mxu0 0
        %4904 = vmatpush1.bf16.msra.mxu0 0
        %4905 = vmatprep.subr.bf16.mxu0 0
        %4906 = vmatpush1.bf16.msra.mxu0 0
        %4907 = vmatprep.subr.bf16.mxu0 0
        %4908 = vmatpush1.bf16.msra.mxu0 0
        %4909 = vmatprep.subr.bf16.mxu0 0
        %4910 = vmatpush1.bf16.msra.mxu0 0
        %4911 = vmatprep.subr.bf16.mxu0 0
        %4912 = vmatpush1.bf16.msra.mxu0 0
        %4913 = vmatprep.subr.bf16.mxu0 0
        %4914 = vmatpush1.bf16.msra.mxu0 0
        %4915 = vmatprep.subr.bf16.mxu0 0
        %4916 = vmatpush1.bf16.msra.mxu0 0
        %4917 = vmatprep.mubr.bf16.mxu0 0
        %4918 = vmatmul.mubr.bf16.gmra.mrb[0].mxu0 %v4883
        %v4919 = vpop.f32.mrb[0].mxu0
        %v4920 = vadd.f32 0.0, %v4919
        %v4921 = vpop.f32.mrb[0].mxu0
        %v4922 = vpop.f32.mrb[0].mxu0
        %v4923 = vpop.f32.mrb[0].mxu0
        %4924 = vdwg.mxu0
        %v4925 = vadd.f32 %v4863, %v4920
        %s4926 = scalar_lea.vmem %s6, 240
        %v4927 = vld [vmem:[%s4926] sm:$0xf]
        %v4928 = vld [vmem:[%s4926 + $0x4] sm:$0xf]
        %v4929 = vld [vmem:[%s4926 + $0x8] sm:$0xf]
        %v4930 = vld [vmem:[%s4926 + $0xc] sm:$0xf]
        %v4931 = vrot.slane %v4008, 7
        %v4936 = vunpack.c.l.b16 %v4927
        %v4937 = vunpack.c.l.b16 %v4928
        %v4938 = vunpack.c.l.b16 %v4929
        %v4939 = vunpack.c.l.b16 %v4930
        %v4940 = vpack.c.b16 %v4937, %v4936
        %v4941 = vpack.c.b16 %v4939, %v4938
        %v4945 = vsel %vm1172, %v4931, 0
        %4947 = vmatprep.subr.bf16.mxu0 0
        %4948 = vmatpush1.bf16.msra.mxu0 %v4940
        %4949 = vmatprep.subr.bf16.mxu0 0
        %4950 = vmatpush1.bf16.msra.mxu0 %v4941
        %4951 = vmatprep.subr.bf16.mxu0 0
        %4952 = vmatpush1.bf16.msra.mxu0 0
        %4953 = vmatprep.subr.bf16.mxu0 0
        %4954 = vmatpush1.bf16.msra.mxu0 0
        %4955 = vmatprep.subr.bf16.mxu0 0
        %4956 = vmatpush1.bf16.msra.mxu0 0
        %4957 = vmatprep.subr.bf16.mxu0 0
        %4958 = vmatpush1.bf16.msra.mxu0 0
        %4959 = vmatprep.subr.bf16.mxu0 0
        %4960 = vmatpush1.bf16.msra.mxu0 0
        %4961 = vmatprep.subr.bf16.mxu0 0
        %4962 = vmatpush1.bf16.msra.mxu0 0
        %4963 = vmatprep.subr.bf16.mxu0 0
        %4964 = vmatpush1.bf16.msra.mxu0 0
        %4965 = vmatprep.subr.bf16.mxu0 0
        %4966 = vmatpush1.bf16.msra.mxu0 0
        %4967 = vmatprep.subr.bf16.mxu0 0
        %4968 = vmatpush1.bf16.msra.mxu0 0
        %4969 = vmatprep.subr.bf16.mxu0 0
        %4970 = vmatpush1.bf16.msra.mxu0 0
        %4971 = vmatprep.subr.bf16.mxu0 0
        %4972 = vmatpush1.bf16.msra.mxu0 0
        %4973 = vmatprep.subr.bf16.mxu0 0
        %4974 = vmatpush1.bf16.msra.mxu0 0
        %4975 = vmatprep.subr.bf16.mxu0 0
        %4976 = vmatpush1.bf16.msra.mxu0 0
        %4977 = vmatprep.subr.bf16.mxu0 0
        %4978 = vmatpush1.bf16.msra.mxu0 0
        %4979 = vmatprep.mubr.bf16.mxu0 0
        %4980 = vmatmul.mubr.bf16.gmra.mrb[0].mxu0 %v4945
        %v4981 = vpop.f32.mrb[0].mxu0
        %v4982 = vadd.f32 0.0, %v4981
        %v4983 = vpop.f32.mrb[0].mxu0
        %v4984 = vpop.f32.mrb[0].mxu0
        %v4985 = vpop.f32.mrb[0].mxu0
        %4986 = vdwg.mxu0
        %v4987 = vadd.f32 %v4925, %v4982
        %v4988 = vld [vmem:[%s7] sm:$0x1]
        %v4989 = vadd.f32 %v4987, %v4988
        %v4990 = vmax.f32 %v4989, 0.0
        %v4991 = vpack.c.bf16 %v4990, %v4990
        %v4992 = vld [vmem:[%s8] sm:$0xf]
        %v4993 = vld [vmem:[%s8 + $0x4] sm:$0xf]
        %v4994 = vld [vmem:[%s8 + $0x8] sm:$0xf]
        %v4995 = vld [vmem:[%s8 + $0xc] sm:$0xf]
        %v4996 = vld [vmem:[%s8 + $0x10] sm:$0xf]
        %v4997 = vld [vmem:[%s8 + $0x14] sm:$0xf]
        %v4998 = vld [vmem:[%s8 + $0x18] sm:$0xf]
        %v4999 = vld [vmem:[%s8 + $0x1c] sm:$0xf]
        %v5000 = vld [vmem:[%s8 + $0x20] sm:$0xf]
        %v5001 = vld [vmem:[%s8 + $0x24] sm:$0xf]
        %v5002 = vld [vmem:[%s8 + $0x28] sm:$0xf]
        %v5003 = vld [vmem:[%s8 + $0x2c] sm:$0xf]
        %v5004 = vld [vmem:[%s8 + $0x30] sm:$0xf]
        %v5005 = vld [vmem:[%s8 + $0x34] sm:$0xf]
        %v5006 = vld [vmem:[%s8 + $0x38] sm:$0xf]
        %v5007 = vld [vmem:[%s8 + $0x3c] sm:$0xf]
        %v5008 = vld [vmem:[%s9] sm:$0x1]
        %v5025 = vunpack.c.l.b16 %v4992
        %v5026 = vunpack.c.l.b16 %v4993
        %v5027 = vunpack.c.l.b16 %v4994
        %v5028 = vunpack.c.l.b16 %v4995
        %v5029 = vunpack.c.l.b16 %v4996
        %v5030 = vunpack.c.l.b16 %v4997
        %v5031 = vunpack.c.l.b16 %v4998
        %v5032 = vunpack.c.l.b16 %v4999
        %v5033 = vunpack.c.l.b16 %v5000
        %v5034 = vunpack.c.l.b16 %v5001
        %v5035 = vunpack.c.l.b16 %v5002
        %v5036 = vunpack.c.l.b16 %v5003
        %v5037 = vunpack.c.l.b16 %v5004
        %v5038 = vunpack.c.l.b16 %v5005
        %v5039 = vunpack.c.l.b16 %v5006
        %v5040 = vunpack.c.l.b16 %v5007
        %v5041 = vpack.c.b16 %v5026, %v5025
        %v5042 = vpack.c.b16 %v5028, %v5027
        %v5043 = vpack.c.b16 %v5030, %v5029
        %v5044 = vpack.c.b16 %v5032, %v5031
        %v5045 = vpack.c.b16 %v5034, %v5033
        %v5046 = vpack.c.b16 %v5036, %v5035
        %v5047 = vpack.c.b16 %v5038, %v5037
        %v5048 = vpack.c.b16 %v5040, %v5039
        %5057 = vmatprep.subr.bf16.mxu0 0
        %5058 = vmatpush1.bf16.msra.mxu0 %v5041
        %5059 = vmatprep.subr.bf16.mxu0 0
        %5060 = vmatpush1.bf16.msra.mxu0 %v5042
        %5061 = vmatprep.subr.bf16.mxu0 0
        %5062 = vmatpush1.bf16.msra.mxu0 %v5043
        %5063 = vmatprep.subr.bf16.mxu0 0
        %5064 = vmatpush1.bf16.msra.mxu0 %v5044
        %5065 = vmatprep.subr.bf16.mxu0 0
        %5066 = vmatpush1.bf16.msra.mxu0 %v5045
        %5067 = vmatprep.subr.bf16.mxu0 0
        %5068 = vmatpush1.bf16.msra.mxu0 %v5046
        %5069 = vmatprep.subr.bf16.mxu0 0
        %5070 = vmatpush1.bf16.msra.mxu0 %v5047
        %5071 = vmatprep.subr.bf16.mxu0 0
        %5072 = vmatpush1.bf16.msra.mxu0 %v5048
        %5073 = vmatprep.subr.bf16.mxu0 0
        %5074 = vmatpush1.bf16.msra.mxu0 0
        %5075 = vmatprep.subr.bf16.mxu0 0
        %5076 = vmatpush1.bf16.msra.mxu0 0
        %5077 = vmatprep.subr.bf16.mxu0 0
        %5078 = vmatpush1.bf16.msra.mxu0 0
        %5079 = vmatprep.subr.bf16.mxu0 0
        %5080 = vmatpush1.bf16.msra.mxu0 0
        %5081 = vmatprep.subr.bf16.mxu0 0
        %5082 = vmatpush1.bf16.msra.mxu0 0
        %5083 = vmatprep.subr.bf16.mxu0 0
        %5084 = vmatpush1.bf16.msra.mxu0 0
        %5085 = vmatprep.subr.bf16.mxu0 0
        %5086 = vmatpush1.bf16.msra.mxu0 0
        %5087 = vmatprep.subr.bf16.mxu0 0
        %5088 = vmatpush1.bf16.msra.mxu0 0
        %5089 = vmatprep.mubr.bf16.mxu0 0
        %5090 = vmatmul.mubr.bf16.gmra.mrb[0].mxu0 %v4991
        %v5091 = vpop.f32.mrb[0].mxu0
        %v5092 = vadd.f32 %v5008, %v5091
        %v5093 = vpop.f32.mrb[0].mxu0
        %v5094 = vpop.f32.mrb[0].mxu0
        %v5095 = vpop.f32.mrb[0].mxu0
        %5096 = vdwg.mxu0
        %v5097 = vmax.f32 %v5092, 0.0
        %5098 = vst [vmem:[%s446] sm:$0x1] %v5097
        %v5099 = vpack.c.bf16 %v5097, %v5097
        %v5100 = vld [vmem:[%s10] sm:$0xf]
        %v5101 = vld [vmem:[%s10 + $0x4] sm:$0xf]
        %v5102 = vld [vmem:[%s10 + $0x8] sm:$0xf]
        %v5103 = vld [vmem:[%s10 + $0xc] sm:$0xf]
        %v5104 = vld [vmem:[%s10 + $0x10] sm:$0xf]
        %v5105 = vld [vmem:[%s10 + $0x14] sm:$0xf]
        %v5106 = vld [vmem:[%s10 + $0x18] sm:$0xf]
        %v5107 = vld [vmem:[%s10 + $0x1c] sm:$0xf]
        %v5108 = vld [vmem:[%s10 + $0x20] sm:$0xf]
        %v5109 = vld [vmem:[%s10 + $0x24] sm:$0xf]
        %v5110 = vld [vmem:[%s10 + $0x28] sm:$0xf]
        %v5111 = vld [vmem:[%s10 + $0x2c] sm:$0xf]
        %v5112 = vld [vmem:[%s10 + $0x30] sm:$0xf]
        %v5113 = vld [vmem:[%s10 + $0x34] sm:$0xf]
        %v5114 = vld [vmem:[%s10 + $0x38] sm:$0xf]
        %v5115 = vld [vmem:[%s10 + $0x3c] sm:$0xf]
        %v5116 = vld [vmem:[%s11] sm:$0x1]
        %v5133 = vunpack.c.l.b16 %v5100
        %v5134 = vunpack.c.l.b16 %v5101
        %v5135 = vunpack.c.l.b16 %v5102
        %v5136 = vunpack.c.l.b16 %v5103
        %v5137 = vunpack.c.l.b16 %v5104
        %v5138 = vunpack.c.l.b16 %v5105
        %v5139 = vunpack.c.l.b16 %v5106
        %v5140 = vunpack.c.l.b16 %v5107
        %v5141 = vunpack.c.l.b16 %v5108
        %v5142 = vunpack.c.l.b16 %v5109
        %v5143 = vunpack.c.l.b16 %v5110
        %v5144 = vunpack.c.l.b16 %v5111
        %v5145 = vunpack.c.l.b16 %v5112
        %v5146 = vunpack.c.l.b16 %v5113
        %v5147 = vunpack.c.l.b16 %v5114
        %v5148 = vunpack.c.l.b16 %v5115
        %v5149 = vpack.c.b16 %v5134, %v5133
        %v5150 = vpack.c.b16 %v5136, %v5135
        %v5151 = vpack.c.b16 %v5138, %v5137
        %v5152 = vpack.c.b16 %v5140, %v5139
        %v5153 = vpack.c.b16 %v5142, %v5141
        %v5154 = vpack.c.b16 %v5144, %v5143
        %v5155 = vpack.c.b16 %v5146, %v5145
        %v5156 = vpack.c.b16 %v5148, %v5147
        %5165 = vmatprep.subr.bf16.mxu0 0
        %5166 = vmatpush1.bf16.msra.mxu0 %v5149
        %5167 = vmatprep.subr.bf16.mxu0 0
        %5168 = vmatpush1.bf16.msra.mxu0 %v5150
        %5169 = vmatprep.subr.bf16.mxu0 0
        %5170 = vmatpush1.bf16.msra.mxu0 %v5151
        %5171 = vmatprep.subr.bf16.mxu0 0
        %5172 = vmatpush1.bf16.msra.mxu0 %v5152
        %5173 = vmatprep.subr.bf16.mxu0 0
        %5174 = vmatpush1.bf16.msra.mxu0 %v5153
        %5175 = vmatprep.subr.bf16.mxu0 0
        %5176 = vmatpush1.bf16.msra.mxu0 %v5154
        %5177 = vmatprep.subr.bf16.mxu0 0
        %5178 = vmatpush1.bf16.msra.mxu0 %v5155
        %5179 = vmatprep.subr.bf16.mxu0 0
        %5180 = vmatpush1.bf16.msra.mxu0 %v5156
        %5181 = vmatprep.subr.bf16.mxu0 0
        %5182 = vmatpush1.bf16.msra.mxu0 0
        %5183 = vmatprep.subr.bf16.mxu0 0
        %5184 = vmatpush1.bf16.msra.mxu0 0
        %5185 = vmatprep.subr.bf16.mxu0 0
        %5186 = vmatpush1.bf16.msra.mxu0 0
        %5187 = vmatprep.subr.bf16.mxu0 0
        %5188 = vmatpush1.bf16.msra.mxu0 0
        %5189 = vmatprep.subr.bf16.mxu0 0
        %5190 = vmatpush1.bf16.msra.mxu0 0
        %5191 = vmatprep.subr.bf16.mxu0 0
        %5192 = vmatpush1.bf16.msra.mxu0 0
        %5193 = vmatprep.subr.bf16.mxu0 0
        %5194 = vmatpush1.bf16.msra.mxu0 0
        %5195 = vmatprep.subr.bf16.mxu0 0
        %5196 = vmatpush1.bf16.msra.mxu0 0
        %5197 = vmatprep.mubr.bf16.mxu0 0
        %5198 = vmatmul.mubr.bf16.gmra.mrb[0].mxu0 %v5099
        %v5199 = vpop.f32.mrb[0].mxu0
        %v5200 = vadd.f32 %v5116, %v5199
        %v5201 = vpop.f32.mrb[0].mxu0
        %v5202 = vpop.f32.mrb[0].mxu0
        %v5203 = vpop.f32.mrb[0].mxu0
        %5204 = vdwg.mxu0
        %5205 = vst [vmem:[%s438] sm:$0x1] %v5200
        %p5206 = scmp.lt.s32.totalorder %s28, 1
        %s5207 = scalar_select %p5206, %s28, 1
        %s5208 = scalar_lea.vmem %s12, %s5207
        %s5209 = sand.u32 %s319, 1
        %s5210 = scalar_lea.sflag [#allocation7], %s5209
        %s5211 = sand.u32 %s319, 1
        %s5212 = scalar_lea.vmem [#allocation6], %s5211
        // Predicated region
        $region69: #{model_cifar_forward.1} parent=67 // pred_check
          %p5213 = pneg %p303
        $region70: #{model_cifar_forward.1} parent=67 // pred_check_branch
          %5215 = sbr.rel (%p5213) target = $region72
        $region71: #{model_cifar_forward.1} parent=67 // pred_region
          _
        $region72: #{model_cifar_forward.1} parent=67 // pred_fallthru
          _
        // Predicated region
        $region73: #{model_cifar_forward.1} parent=67 // pred_check
          %p5216 = pneg %p329
        $region74: #{model_cifar_forward.1} parent=67 // pred_check_branch
          %5218 = sbr.rel (%p5216) target = $region76
        $region75: #{model_cifar_forward.1} parent=67 // pred_region
          %s5220 = ssub.s32 16, 16
          %5221 = vsyncadd %s5210, %s5220
          %s5222 = smul.addr %s28, 16
          %s5223 = scalar_lea.hbm %s13, %s5222
          %s5225 = sshll.u32 %s5212, 4
          %s5226 = int_to_ptr.vmem [resolvable:$true] %s5225
          %5228 = dma.vmem_to_hbm [thread:$0]  %s5226, 16, %s5223, %s5210
        $region76: #{model_cifar_forward.1} parent=67 // pred_fallthru
          _
      $region68: #{model_cifar_forward.1} parent=5 // pred_fallthru
        _
      %p5229 = scmp.le.s32.totalorder 2, %s23
      // Predicated region
      $region77: #{model_cifar_forward.1} parent=5 // pred_check
        %p5230 = pneg %p5229
      $region78: #{model_cifar_forward.1} parent=5 // pred_check_branch
        %5232 = sbr.rel (%p5230) target = $region80
      $region79: #{model_cifar_forward.1} parent=5 // pred_region
        %s5233 = ssub.s32 %s23, 2
        // Predicated region
        $region81: #{model_cifar_forward.1} parent=79 // pred_check
          %p5234 = pneg %p309
        $region82: #{model_cifar_forward.1} parent=79 // pred_check_branch
          %5236 = sbr.rel (%p5234) target = $region84
        $region83: #{model_cifar_forward.1} parent=79 // pred_region
          %p5237 = scmp.lt.s32.totalorder %s29, 1
          %s5238 = scalar_select %p5237, %s29, 1
          %s5239 = scalar_lea.vmem %s12, %s5238
        $region84: #{model_cifar_forward.1} parent=79 // pred_fallthru
          _
        // Predicated region
        $region85: #{model_cifar_forward.1} parent=79 // pred_check
          %p5240 = pneg %p335
        $region86: #{model_cifar_forward.1} parent=79 // pred_check_branch
          %5242 = sbr.rel (%p5240) target = $region88
        $region87: #{model_cifar_forward.1} parent=79 // pred_region
          %s5243 = sand.u32 %s320, 1
          %s5244 = scalar_lea.sflag [#allocation7], %s5243
          %s5245 = sand.u32 %s320, 1
          %s5246 = scalar_lea.vmem [#allocation6], %s5245
          %5247 = dma.done %s5244, 16
        $region88: #{model_cifar_forward.1} parent=79 // pred_fallthru
          _
      $region80: #{model_cifar_forward.1} parent=5 // pred_fallthru
        _
    $region6: #{model_cifar_forward.1} parent=1 // loop_footer
      %s27 = sadd.s32 1, %s23
    $region7: #{model_cifar_forward.1} parent=1 // loop_footer_branch
      %22 = sbr.rel target = $region3
    $region8: #{model_cifar_forward.1} parent=1 // loop_exit
      _
    %5248 = vsyncpa [#allocation7], 1
    %s5249 = scalar_lea.sflag [#allocation7], 1
    %5250 = vsyncpa %s5249, 1

</llo_original>
